<compile_context>
chip_gen: v7x
topology: tpu7x:2x2x1
jax: 0.10.0
libtpu: 0.0.40
codegen_flags: <defaults>
</compile_context>

<pallas_src>
import functools

import jax
import jax.numpy as jnp
from jax.experimental import pallas as pl
from jax.experimental.pallas import tpu as pltpu


def transformer_encoder_kernel(x_ref, wqkv_ref, bqkv_ref, wc_ref, bc_ref, o_ref,
                               *, local_batch, seq, heads, head_dim):
    """One grid step: `local_batch` batches (= local_batch*seq rows) of activations.

    x_ref    : (local_batch*seq, D)   bf16   activations (batch*seq flattened)
    wqkv_ref : (D, 3D)                bf16   block-diagonal fused q/k/v projection
                                             (attention scale folded into q block)
    bqkv_ref : (1, 3D)                f32    concatenated q/k/v biases (q scaled)
    wc_ref   : (D, D)                 bf16   transposed combine weight (in, out)
    bc_ref   : (1, D)                 f32    combine bias
    o_ref    : (local_batch*seq, D)   f32    output
    """
    D = heads * head_dim
    rows = local_batch * seq

    # ---- fused (block-diagonal) q/k/v projection: one lane-dense bf16 MXU matmul ----
    qkv = jnp.dot(x_ref[...], wqkv_ref[...], preferred_element_type=jnp.float32)
    qkv = qkv + bqkv_ref[...]                      # (1, 3D) broadcast over rows
    # columns [0:D) = q (pre-scaled), [D:2D) = k, [2D:3D) = v; heads contiguous inside.

    # ---- per-head attention, batched over the whole batch tile (flash-style einsums) ----
    att_heads = []
    for h in range(heads):
        c0 = h * head_dim
        qh = qkv[:, c0:c0 + head_dim].reshape(local_batch, seq, head_dim)
        kh = qkv[:, D + c0:D + c0 + head_dim].reshape(local_batch, seq, head_dim)
        vh = qkv[:, 2 * D + c0:2 * D + c0 + head_dim].reshape(local_batch, seq, head_dim)

        s = jnp.einsum('bqe,bke->bqk', qh, kh,
                       preferred_element_type=jnp.float32)       # (B_t, S, S)
        s = s - jnp.max(s, axis=-1, keepdims=True)
        p = jnp.exp(s)
        p = p * pl.reciprocal(jnp.sum(p, axis=-1, keepdims=True), approx=True)
        att = jnp.einsum('bqk,bke->bqe', p, vh,
                         preferred_element_type=jnp.float32)      # (B_t, S, E)
        att_heads.append(att.reshape(rows, head_dim))

    # ---- lane-dense head concat -> single full-depth combine matmul + bias ----
    att_cat = jnp.concatenate(att_heads, axis=-1).astype(jnp.bfloat16)   # (rows, D)
    out = jnp.dot(att_cat, wc_ref[...],
                  preferred_element_type=jnp.float32) + bc_ref[...]
    o_ref[...] = out.astype(o_ref.dtype)


def transformer_encoder_forward(x, wq, bq, wk, bk, wv, bv, wc, bc, *, block_batch=None):
    """x: (B, S, D).  wq/wk/wv: (H, E, E) in PyTorch (out,in) layout, bq/bk/bv: (H, E).
    wc: (D, D) in (out,in) layout, bc: (D,).  Returns (B, S, D) float32."""
    B, S, D = x.shape
    H, E, _ = wq.shape
    assert D == H * E, "input_data_dim must equal batches * each_batch_dim"
    scale = float(E) ** -0.5

    if block_batch is None or B % block_batch != 0:
        block_batch = B                 # biggest tile that fits VMEM (tiny here)
    tb = block_batch
    rows = tb * S                       # rows handled per grid step

    # ---- host-side parameter packing (lane-dense, MXU-friendly) ----
    def block_diag_t(w):                # (H,E,E) per-head (out,in) -> (D,D) block-diag of W^T
        bd = jnp.zeros((D, D), jnp.float32)
        for i in range(H):
            bd = bd.at[i * E:(i + 1) * E, i * E:(i + 1) * E].set(w[i].T)
        return bd

    # Fold the 1/sqrt(E) attention scale into the q projection (exact for power-of-two).
    wqkv = jnp.concatenate(
        [block_diag_t(wq * scale), block_diag_t(wk), block_diag_t(wv)], axis=1)   # (D, 3D)
    bqkv = jnp.concatenate(
        [(bq * scale).reshape(-1), bk.reshape(-1), bv.reshape(-1)]).reshape(1, 3 * D)
    wc_t = wc.T                                                                    # (D, D)
    bc2 = bc.reshape(1, D)

    x2 = x.reshape(B * S, D)            # flatten outside the kernel; kernel stays 2-D

    kernel = functools.partial(
        transformer_encoder_kernel, local_batch=tb, seq=S, heads=H, head_dim=E)

    out2 = pl.pallas_call(
        kernel,
        out_shape=jax.ShapeDtypeStruct((B * S, D), jnp.float32),
        grid=(B // tb,),
        in_specs=[
            pl.BlockSpec((rows, D), lambda i: (i, 0)),       # activations: tiled over batch
            pl.BlockSpec((D, 3 * D), lambda i: (0, 0)),      # fused qkv weight: resident
            pl.BlockSpec((1, 3 * D), lambda i: (0, 0)),      # qkv bias: resident
            pl.BlockSpec((D, D), lambda i: (0, 0)),          # combine weight: resident
            pl.BlockSpec((1, D), lambda i: (0, 0)),          # combine bias: resident
        ],
        out_specs=pl.BlockSpec((rows, D), lambda i: (i, 0)),
        compiler_params=pltpu.CompilerParams(
            dimension_semantics=("parallel",),
            vmem_limit_bytes=32 * 1024 * 1024,
        ),
    )(x2.astype(jnp.bfloat16), wqkv.astype(jnp.bfloat16), bqkv,
      wc_t.astype(jnp.bfloat16), bc2)

    return out2.reshape(B, S, D)


def reference_forward(x, wq, bq, wk, bk, wv, bv, wc, bc):
    """Pure-JAX reference; emulates bf16 MXU operands with f32 accumulation."""
    B, S, D = x.shape
    H, E, _ = wq.shape
    scale = float(E) ** -0.5
    hi = jax.lax.Precision.HIGHEST

    def c(a):                            # emulate bf16 operand rounding
        return a.astype(jnp.bfloat16).astype(jnp.float32)

    heads = []
    for h in range(H):
        xh = x[:, :, h * E:(h + 1) * E]
        q = jnp.einsum('bse,fe->bsf', c(xh), c(wq[h]), precision=hi) + bq[h]
        k = jnp.einsum('bse,fe->bsf', c(xh), c(wk[h]), precision=hi) + bk[h]
        v = jnp.einsum('bse,fe->bsf', c(xh), c(wv[h]), precision=hi) + bv[h]
        s = jnp.einsum('bqe,bke->bqk', q, k, precision=hi) * scale
        p = jax.nn.softmax(s, axis=-1)
        heads.append(jnp.einsum('bqk,bke->bqe', p, v, precision=hi))
    att = jnp.concatenate(heads, axis=-1)
    return jnp.einsum('bsd,fd->bsf', c(att), c(wc), precision=hi) + bc


if __name__ == "__main__":
    key = jax.random.PRNGKey(0)
    ks = jax.random.split(key, 9)

    # Small shapes consistent with the module: batches(H)=8, each_batch_dim(E)=16
    # -> input_data_dim D = 128 (lane-dense). batch=4, seq=8.
    # TODO(synk): the original forward's zeros-prefix cat only type-checks for seq==1;
    #             here the equivalent head-concat is used, which generalizes to seq>1.
    B, S = 4, 8
    H, E = 8, 16
    D = H * E

    x = jax.random.normal(ks[0], (B, S, D), jnp.float32)

    bound_h = 1.0 / (E ** 0.5)           # nn.Linear kaiming-uniform-style bounds
    bound_c = 1.0 / (D ** 0.5)
    wq = jax.random.uniform(ks[1], (H, E, E), jnp.float32, -bound_h, bound_h)
    bq = jax.random.uniform(ks[2], (H, E), jnp.float32, -bound_h, bound_h)
    wk = jax.random.uniform(ks[3], (H, E, E), jnp.float32, -bound_h, bound_h)
    bk = jax.random.uniform(ks[4], (H, E), jnp.float32, -bound_h, bound_h)
    wv = jax.random.uniform(ks[5], (H, E, E), jnp.float32, -bound_h, bound_h)
    bv = jax.random.uniform(ks[6], (H, E), jnp.float32, -bound_h, bound_h)
    wc = jax.random.uniform(ks[7], (D, D), jnp.float32, -bound_c, bound_c)
    bc = jax.random.uniform(ks[8], (D,), jnp.float32, -bound_c, bound_c)

    out = transformer_encoder_forward(x, wq, bq, wk, bk, wv, bv, wc, bc)
    out = jax.block_until_ready(out)

    ref = reference_forward(x, wq, bq, wk, bk, wv, bv, wc, bc)
    assert out.shape == (B, S, D)
    assert jnp.allclose(out, ref, atol=2e-2, rtol=2e-2), "mismatch vs reference"

    print("KERNEL_OK")
</pallas_src>

<mosaic_0001>
module attributes {stable_mosaic.version = 11 : i64} {
  func.func @transformer_encoder_kernel(%arg0: i32, %arg1: memref<32x128xbf16, #tpu.memory_space<vmem>>, %arg2: memref<128x384xbf16, #tpu.memory_space<vmem>>, %arg3: memref<1x384xf32, #tpu.memory_space<vmem>>, %arg4: memref<128x128xbf16, #tpu.memory_space<vmem>>, %arg5: memref<1x128xf32, #tpu.memory_space<vmem>>, %arg6: memref<32x128xf32, #tpu.memory_space<vmem>>) attributes {dimension_semantics = [#tpu.dimension_semantics<parallel>], iteration_bounds = array<i64: 1>, scalar_prefetch = 0 : i64, scratch_operands = 0 : i64, tpu.core_type = #tpu.core_type<tc>, window_params = [{transform_indices = @transform_0, window_bounds = array<i64: 32, 128>}, {pipeline_mode = #tpu.pipeline_mode<synchronous>, transform_indices = @transform_1, window_bounds = array<i64: 128, 384>}, {pipeline_mode = #tpu.pipeline_mode<synchronous>, transform_indices = @transform_2, window_bounds = array<i64: 1, 384>}, {pipeline_mode = #tpu.pipeline_mode<synchronous>, transform_indices = @transform_3, window_bounds = array<i64: 128, 128>}, {pipeline_mode = #tpu.pipeline_mode<synchronous>, transform_indices = @transform_4, window_bounds = array<i64: 1, 128>}, {transform_indices = @transform_5, window_bounds = array<i64: 32, 128>}]} {
    %c0 = arith.constant 0 : index
    %c0_0 = arith.constant 0 : index
    %0 = vector.load %arg1[%c0, %c0_0] : memref<32x128xbf16, #tpu.memory_space<vmem>>, vector<32x128xbf16>
    %c0_1 = arith.constant 0 : index
    %c0_2 = arith.constant 0 : index
    %1 = vector.load %arg2[%c0_1, %c0_2] : memref<128x384xbf16, #tpu.memory_space<vmem>>, vector<128x384xbf16>
    %cst = arith.constant dense<0.000000e+00> : vector<32x384xf32>
    %2 = tpu.matmul %0, %1, %cst {dimension_numbers = #tpu.dot_dimension_numbers<[1], [0], [0], [1], [0, 0, 1, 1], [], []>} : vector<32x128xbf16>, vector<128x384xbf16>, vector<32x384xf32> -> vector<32x384xf32>
    %c0_3 = arith.constant 0 : index
    %c0_4 = arith.constant 0 : index
    %3 = vector.load %arg3[%c0_3, %c0_4] : memref<1x384xf32, #tpu.memory_space<vmem>>, vector<1x384xf32>
    %4 = vector.broadcast %3 : vector<1x384xf32> to vector<32x384xf32>
    %5 = arith.addf %2, %4 : vector<32x384xf32>
    %6 = vector.extract_strided_slice %5 {offsets = [0, 0], sizes = [32, 16], strides = [1, 1]} : vector<32x384xf32> to vector<32x16xf32>
    %7 = vector.shape_cast %6 : vector<32x16xf32> to vector<4x8x16xf32>
    %8 = vector.extract_strided_slice %5 {offsets = [0, 128], sizes = [32, 16], strides = [1, 1]} : vector<32x384xf32> to vector<32x16xf32>
    %9 = vector.shape_cast %8 : vector<32x16xf32> to vector<4x8x16xf32>
    %10 = vector.extract_strided_slice %5 {offsets = [0, 256], sizes = [32, 16], strides = [1, 1]} : vector<32x384xf32> to vector<32x16xf32>
    %11 = vector.shape_cast %10 : vector<32x16xf32> to vector<4x8x16xf32>
    "tpu.trace_start"() <{level = 10 : i32, message = "bqe,bke->bqk"}> : () -> ()
    %cst_5 = arith.constant dense<0.000000e+00> : vector<4x8x8xf32>
    %12 = tpu.matmul %7, %9, %cst_5 {dimension_numbers = #tpu.dot_dimension_numbers<[2], [2], [1], [1], [0, 0, 0, 1, 1, 1], [0], [0]>} : vector<4x8x16xf32>, vector<4x8x16xf32>, vector<4x8x8xf32> -> vector<4x8x8xf32>
    "tpu.trace_stop"() : () -> ()
    %cst_6 = arith.constant dense<0xFF800000> : vector<4x8xf32>
    %13 = vector.multi_reduction <maximumf>, %12, %cst_6 [2] : vector<4x8x8xf32> to vector<4x8xf32>
    %14 = vector.shape_cast %13 : vector<4x8xf32> to vector<4x8x1xf32>
    %15 = vector.broadcast %14 : vector<4x8x1xf32> to vector<4x8x8xf32>
    %16 = arith.subf %12, %15 : vector<4x8x8xf32>
    %17 = math.exp %16 : vector<4x8x8xf32>
    %cst_7 = arith.constant dense<0.000000e+00> : vector<4x8xf32>
    %18 = vector.multi_reduction <add>, %17, %cst_7 [2] : vector<4x8x8xf32> to vector<4x8xf32>
    %19 = vector.shape_cast %18 : vector<4x8xf32> to vector<4x8x1xf32>
    %20 = tpu.reciprocal %19 {approx = true} : vector<4x8x1xf32> -> vector<4x8x1xf32>
    %21 = vector.broadcast %20 : vector<4x8x1xf32> to vector<4x8x8xf32>
    %22 = arith.mulf %17, %21 : vector<4x8x8xf32>
    "tpu.trace_start"() <{level = 10 : i32, message = "bqk,bke->bqe"}> : () -> ()
    %cst_8 = arith.constant dense<0.000000e+00> : vector<4x8x16xf32>
    %23 = tpu.matmul %22, %11, %cst_8 {dimension_numbers = #tpu.dot_dimension_numbers<[2], [1], [1], [2], [0, 0, 0, 1, 1, 2], [0], [0]>} : vector<4x8x8xf32>, vector<4x8x16xf32>, vector<4x8x16xf32> -> vector<4x8x16xf32>
    "tpu.trace_stop"() : () -> ()
    %24 = vector.shape_cast %23 : vector<4x8x16xf32> to vector<32x16xf32>
    %25 = vector.extract_strided_slice %5 {offsets = [0, 16], sizes = [32, 16], strides = [1, 1]} : vector<32x384xf32> to vector<32x16xf32>
    %26 = vector.shape_cast %25 : vector<32x16xf32> to vector<4x8x16xf32>
    %27 = vector.extract_strided_slice %5 {offsets = [0, 144], sizes = [32, 16], strides = [1, 1]} : vector<32x384xf32> to vector<32x16xf32>
    %28 = vector.shape_cast %27 : vector<32x16xf32> to vector<4x8x16xf32>
    %29 = vector.extract_strided_slice %5 {offsets = [0, 272], sizes = [32, 16], strides = [1, 1]} : vector<32x384xf32> to vector<32x16xf32>
    %30 = vector.shape_cast %29 : vector<32x16xf32> to vector<4x8x16xf32>
    "tpu.trace_start"() <{level = 10 : i32, message = "bqe,bke->bqk"}> : () -> ()
    %cst_9 = arith.constant dense<0.000000e+00> : vector<4x8x8xf32>
    %31 = tpu.matmul %26, %28, %cst_9 {dimension_numbers = #tpu.dot_dimension_numbers<[2], [2], [1], [1], [0, 0, 0, 1, 1, 1], [0], [0]>} : vector<4x8x16xf32>, vector<4x8x16xf32>, vector<4x8x8xf32> -> vector<4x8x8xf32>
    "tpu.trace_stop"() : () -> ()
    %cst_10 = arith.constant dense<0xFF800000> : vector<4x8xf32>
    %32 = vector.multi_reduction <maximumf>, %31, %cst_10 [2] : vector<4x8x8xf32> to vector<4x8xf32>
    %33 = vector.shape_cast %32 : vector<4x8xf32> to vector<4x8x1xf32>
    %34 = vector.broadcast %33 : vector<4x8x1xf32> to vector<4x8x8xf32>
    %35 = arith.subf %31, %34 : vector<4x8x8xf32>
    %36 = math.exp %35 : vector<4x8x8xf32>
    %cst_11 = arith.constant dense<0.000000e+00> : vector<4x8xf32>
    %37 = vector.multi_reduction <add>, %36, %cst_11 [2] : vector<4x8x8xf32> to vector<4x8xf32>
    %38 = vector.shape_cast %37 : vector<4x8xf32> to vector<4x8x1xf32>
    %39 = tpu.reciprocal %38 {approx = true} : vector<4x8x1xf32> -> vector<4x8x1xf32>
    %40 = vector.broadcast %39 : vector<4x8x1xf32> to vector<4x8x8xf32>
    %41 = arith.mulf %36, %40 : vector<4x8x8xf32>
    "tpu.trace_start"() <{level = 10 : i32, message = "bqk,bke->bqe"}> : () -> ()
    %cst_12 = arith.constant dense<0.000000e+00> : vector<4x8x16xf32>
    %42 = tpu.matmul %41, %30, %cst_12 {dimension_numbers = #tpu.dot_dimension_numbers<[2], [1], [1], [2], [0, 0, 0, 1, 1, 2], [0], [0]>} : vector<4x8x8xf32>, vector<4x8x16xf32>, vector<4x8x16xf32> -> vector<4x8x16xf32>
    "tpu.trace_stop"() : () -> ()
    %43 = vector.shape_cast %42 : vector<4x8x16xf32> to vector<32x16xf32>
    %44 = vector.extract_strided_slice %5 {offsets = [0, 32], sizes = [32, 16], strides = [1, 1]} : vector<32x384xf32> to vector<32x16xf32>
    %45 = vector.shape_cast %44 : vector<32x16xf32> to vector<4x8x16xf32>
    %46 = vector.extract_strided_slice %5 {offsets = [0, 160], sizes = [32, 16], strides = [1, 1]} : vector<32x384xf32> to vector<32x16xf32>
    %47 = vector.shape_cast %46 : vector<32x16xf32> to vector<4x8x16xf32>
    %48 = vector.extract_strided_slice %5 {offsets = [0, 288], sizes = [32, 16], strides = [1, 1]} : vector<32x384xf32> to vector<32x16xf32>
    %49 = vector.shape_cast %48 : vector<32x16xf32> to vector<4x8x16xf32>
    "tpu.trace_start"() <{level = 10 : i32, message = "bqe,bke->bqk"}> : () -> ()
    %cst_13 = arith.constant dense<0.000000e+00> : vector<4x8x8xf32>
    %50 = tpu.matmul %45, %47, %cst_13 {dimension_numbers = #tpu.dot_dimension_numbers<[2], [2], [1], [1], [0, 0, 0, 1, 1, 1], [0], [0]>} : vector<4x8x16xf32>, vector<4x8x16xf32>, vector<4x8x8xf32> -> vector<4x8x8xf32>
    "tpu.trace_stop"() : () -> ()
    %cst_14 = arith.constant dense<0xFF800000> : vector<4x8xf32>
    %51 = vector.multi_reduction <maximumf>, %50, %cst_14 [2] : vector<4x8x8xf32> to vector<4x8xf32>
    %52 = vector.shape_cast %51 : vector<4x8xf32> to vector<4x8x1xf32>
    %53 = vector.broadcast %52 : vector<4x8x1xf32> to vector<4x8x8xf32>
    %54 = arith.subf %50, %53 : vector<4x8x8xf32>
    %55 = math.exp %54 : vector<4x8x8xf32>
    %cst_15 = arith.constant dense<0.000000e+00> : vector<4x8xf32>
    %56 = vector.multi_reduction <add>, %55, %cst_15 [2] : vector<4x8x8xf32> to vector<4x8xf32>
    %57 = vector.shape_cast %56 : vector<4x8xf32> to vector<4x8x1xf32>
    %58 = tpu.reciprocal %57 {approx = true} : vector<4x8x1xf32> -> vector<4x8x1xf32>
    %59 = vector.broadcast %58 : vector<4x8x1xf32> to vector<4x8x8xf32>
    %60 = arith.mulf %55, %59 : vector<4x8x8xf32>
    "tpu.trace_start"() <{level = 10 : i32, message = "bqk,bke->bqe"}> : () -> ()
    %cst_16 = arith.constant dense<0.000000e+00> : vector<4x8x16xf32>
    %61 = tpu.matmul %60, %49, %cst_16 {dimension_numbers = #tpu.dot_dimension_numbers<[2], [1], [1], [2], [0, 0, 0, 1, 1, 2], [0], [0]>} : vector<4x8x8xf32>, vector<4x8x16xf32>, vector<4x8x16xf32> -> vector<4x8x16xf32>
    "tpu.trace_stop"() : () -> ()
    %62 = vector.shape_cast %61 : vector<4x8x16xf32> to vector<32x16xf32>
    %63 = vector.extract_strided_slice %5 {offsets = [0, 48], sizes = [32, 16], strides = [1, 1]} : vector<32x384xf32> to vector<32x16xf32>
    %64 = vector.shape_cast %63 : vector<32x16xf32> to vector<4x8x16xf32>
    %65 = vector.extract_strided_slice %5 {offsets = [0, 176], sizes = [32, 16], strides = [1, 1]} : vector<32x384xf32> to vector<32x16xf32>
    %66 = vector.shape_cast %65 : vector<32x16xf32> to vector<4x8x16xf32>
    %67 = vector.extract_strided_slice %5 {offsets = [0, 304], sizes = [32, 16], strides = [1, 1]} : vector<32x384xf32> to vector<32x16xf32>
    %68 = vector.shape_cast %67 : vector<32x16xf32> to vector<4x8x16xf32>
    "tpu.trace_start"() <{level = 10 : i32, message = "bqe,bke->bqk"}> : () -> ()
    %cst_17 = arith.constant dense<0.000000e+00> : vector<4x8x8xf32>
    %69 = tpu.matmul %64, %66, %cst_17 {dimension_numbers = #tpu.dot_dimension_numbers<[2], [2], [1], [1], [0, 0, 0, 1, 1, 1], [0], [0]>} : vector<4x8x16xf32>, vector<4x8x16xf32>, vector<4x8x8xf32> -> vector<4x8x8xf32>
    "tpu.trace_stop"() : () -> ()
    %cst_18 = arith.constant dense<0xFF800000> : vector<4x8xf32>
    %70 = vector.multi_reduction <maximumf>, %69, %cst_18 [2] : vector<4x8x8xf32> to vector<4x8xf32>
    %71 = vector.shape_cast %70 : vector<4x8xf32> to vector<4x8x1xf32>
    %72 = vector.broadcast %71 : vector<4x8x1xf32> to vector<4x8x8xf32>
    %73 = arith.subf %69, %72 : vector<4x8x8xf32>
    %74 = math.exp %73 : vector<4x8x8xf32>
    %cst_19 = arith.constant dense<0.000000e+00> : vector<4x8xf32>
    %75 = vector.multi_reduction <add>, %74, %cst_19 [2] : vector<4x8x8xf32> to vector<4x8xf32>
    %76 = vector.shape_cast %75 : vector<4x8xf32> to vector<4x8x1xf32>
    %77 = tpu.reciprocal %76 {approx = true} : vector<4x8x1xf32> -> vector<4x8x1xf32>
    %78 = vector.broadcast %77 : vector<4x8x1xf32> to vector<4x8x8xf32>
    %79 = arith.mulf %74, %78 : vector<4x8x8xf32>
    "tpu.trace_start"() <{level = 10 : i32, message = "bqk,bke->bqe"}> : () -> ()
    %cst_20 = arith.constant dense<0.000000e+00> : vector<4x8x16xf32>
    %80 = tpu.matmul %79, %68, %cst_20 {dimension_numbers = #tpu.dot_dimension_numbers<[2], [1], [1], [2], [0, 0, 0, 1, 1, 2], [0], [0]>} : vector<4x8x8xf32>, vector<4x8x16xf32>, vector<4x8x16xf32> -> vector<4x8x16xf32>
    "tpu.trace_stop"() : () -> ()
    %81 = vector.shape_cast %80 : vector<4x8x16xf32> to vector<32x16xf32>
    %82 = vector.extract_strided_slice %5 {offsets = [0, 64], sizes = [32, 16], strides = [1, 1]} : vector<32x384xf32> to vector<32x16xf32>
    %83 = vector.shape_cast %82 : vector<32x16xf32> to vector<4x8x16xf32>
    %84 = vector.extract_strided_slice %5 {offsets = [0, 192], sizes = [32, 16], strides = [1, 1]} : vector<32x384xf32> to vector<32x16xf32>
    %85 = vector.shape_cast %84 : vector<32x16xf32> to vector<4x8x16xf32>
    %86 = vector.extract_strided_slice %5 {offsets = [0, 320], sizes = [32, 16], strides = [1, 1]} : vector<32x384xf32> to vector<32x16xf32>
    %87 = vector.shape_cast %86 : vector<32x16xf32> to vector<4x8x16xf32>
    "tpu.trace_start"() <{level = 10 : i32, message = "bqe,bke->bqk"}> : () -> ()
    %cst_21 = arith.constant dense<0.000000e+00> : vector<4x8x8xf32>
    %88 = tpu.matmul %83, %85, %cst_21 {dimension_numbers = #tpu.dot_dimension_numbers<[2], [2], [1], [1], [0, 0, 0, 1, 1, 1], [0], [0]>} : vector<4x8x16xf32>, vector<4x8x16xf32>, vector<4x8x8xf32> -> vector<4x8x8xf32>
    "tpu.trace_stop"() : () -> ()
    %cst_22 = arith.constant dense<0xFF800000> : vector<4x8xf32>
    %89 = vector.multi_reduction <maximumf>, %88, %cst_22 [2] : vector<4x8x8xf32> to vector<4x8xf32>
    %90 = vector.shape_cast %89 : vector<4x8xf32> to vector<4x8x1xf32>
    %91 = vector.broadcast %90 : vector<4x8x1xf32> to vector<4x8x8xf32>
    %92 = arith.subf %88, %91 : vector<4x8x8xf32>
    %93 = math.exp %92 : vector<4x8x8xf32>
    %cst_23 = arith.constant dense<0.000000e+00> : vector<4x8xf32>
    %94 = vector.multi_reduction <add>, %93, %cst_23 [2] : vector<4x8x8xf32> to vector<4x8xf32>
    %95 = vector.shape_cast %94 : vector<4x8xf32> to vector<4x8x1xf32>
    %96 = tpu.reciprocal %95 {approx = true} : vector<4x8x1xf32> -> vector<4x8x1xf32>
    %97 = vector.broadcast %96 : vector<4x8x1xf32> to vector<4x8x8xf32>
    %98 = arith.mulf %93, %97 : vector<4x8x8xf32>
    "tpu.trace_start"() <{level = 10 : i32, message = "bqk,bke->bqe"}> : () -> ()
    %cst_24 = arith.constant dense<0.000000e+00> : vector<4x8x16xf32>
    %99 = tpu.matmul %98, %87, %cst_24 {dimension_numbers = #tpu.dot_dimension_numbers<[2], [1], [1], [2], [0, 0, 0, 1, 1, 2], [0], [0]>} : vector<4x8x8xf32>, vector<4x8x16xf32>, vector<4x8x16xf32> -> vector<4x8x16xf32>
    "tpu.trace_stop"() : () -> ()
    %100 = vector.shape_cast %99 : vector<4x8x16xf32> to vector<32x16xf32>
    %101 = vector.extract_strided_slice %5 {offsets = [0, 80], sizes = [32, 16], strides = [1, 1]} : vector<32x384xf32> to vector<32x16xf32>
    %102 = vector.shape_cast %101 : vector<32x16xf32> to vector<4x8x16xf32>
    %103 = vector.extract_strided_slice %5 {offsets = [0, 208], sizes = [32, 16], strides = [1, 1]} : vector<32x384xf32> to vector<32x16xf32>
    %104 = vector.shape_cast %103 : vector<32x16xf32> to vector<4x8x16xf32>
    %105 = vector.extract_strided_slice %5 {offsets = [0, 336], sizes = [32, 16], strides = [1, 1]} : vector<32x384xf32> to vector<32x16xf32>
    %106 = vector.shape_cast %105 : vector<32x16xf32> to vector<4x8x16xf32>
    "tpu.trace_start"() <{level = 10 : i32, message = "bqe,bke->bqk"}> : () -> ()
    %cst_25 = arith.constant dense<0.000000e+00> : vector<4x8x8xf32>
    %107 = tpu.matmul %102, %104, %cst_25 {dimension_numbers = #tpu.dot_dimension_numbers<[2], [2], [1], [1], [0, 0, 0, 1, 1, 1], [0], [0]>} : vector<4x8x16xf32>, vector<4x8x16xf32>, vector<4x8x8xf32> -> vector<4x8x8xf32>
    "tpu.trace_stop"() : () -> ()
    %cst_26 = arith.constant dense<0xFF800000> : vector<4x8xf32>
    %108 = vector.multi_reduction <maximumf>, %107, %cst_26 [2] : vector<4x8x8xf32> to vector<4x8xf32>
    %109 = vector.shape_cast %108 : vector<4x8xf32> to vector<4x8x1xf32>
    %110 = vector.broadcast %109 : vector<4x8x1xf32> to vector<4x8x8xf32>
    %111 = arith.subf %107, %110 : vector<4x8x8xf32>
    %112 = math.exp %111 : vector<4x8x8xf32>
    %cst_27 = arith.constant dense<0.000000e+00> : vector<4x8xf32>
    %113 = vector.multi_reduction <add>, %112, %cst_27 [2] : vector<4x8x8xf32> to vector<4x8xf32>
    %114 = vector.shape_cast %113 : vector<4x8xf32> to vector<4x8x1xf32>
    %115 = tpu.reciprocal %114 {approx = true} : vector<4x8x1xf32> -> vector<4x8x1xf32>
    %116 = vector.broadcast %115 : vector<4x8x1xf32> to vector<4x8x8xf32>
    %117 = arith.mulf %112, %116 : vector<4x8x8xf32>
    "tpu.trace_start"() <{level = 10 : i32, message = "bqk,bke->bqe"}> : () -> ()
    %cst_28 = arith.constant dense<0.000000e+00> : vector<4x8x16xf32>
    %118 = tpu.matmul %117, %106, %cst_28 {dimension_numbers = #tpu.dot_dimension_numbers<[2], [1], [1], [2], [0, 0, 0, 1, 1, 2], [0], [0]>} : vector<4x8x8xf32>, vector<4x8x16xf32>, vector<4x8x16xf32> -> vector<4x8x16xf32>
    "tpu.trace_stop"() : () -> ()
    %119 = vector.shape_cast %118 : vector<4x8x16xf32> to vector<32x16xf32>
    %120 = vector.extract_strided_slice %5 {offsets = [0, 96], sizes = [32, 16], strides = [1, 1]} : vector<32x384xf32> to vector<32x16xf32>
    %121 = vector.shape_cast %120 : vector<32x16xf32> to vector<4x8x16xf32>
    %122 = vector.extract_strided_slice %5 {offsets = [0, 224], sizes = [32, 16], strides = [1, 1]} : vector<32x384xf32> to vector<32x16xf32>
    %123 = vector.shape_cast %122 : vector<32x16xf32> to vector<4x8x16xf32>
    %124 = vector.extract_strided_slice %5 {offsets = [0, 352], sizes = [32, 16], strides = [1, 1]} : vector<32x384xf32> to vector<32x16xf32>
    %125 = vector.shape_cast %124 : vector<32x16xf32> to vector<4x8x16xf32>
    "tpu.trace_start"() <{level = 10 : i32, message = "bqe,bke->bqk"}> : () -> ()
    %cst_29 = arith.constant dense<0.000000e+00> : vector<4x8x8xf32>
    %126 = tpu.matmul %121, %123, %cst_29 {dimension_numbers = #tpu.dot_dimension_numbers<[2], [2], [1], [1], [0, 0, 0, 1, 1, 1], [0], [0]>} : vector<4x8x16xf32>, vector<4x8x16xf32>, vector<4x8x8xf32> -> vector<4x8x8xf32>
    "tpu.trace_stop"() : () -> ()
    %cst_30 = arith.constant dense<0xFF800000> : vector<4x8xf32>
    %127 = vector.multi_reduction <maximumf>, %126, %cst_30 [2] : vector<4x8x8xf32> to vector<4x8xf32>
    %128 = vector.shape_cast %127 : vector<4x8xf32> to vector<4x8x1xf32>
    %129 = vector.broadcast %128 : vector<4x8x1xf32> to vector<4x8x8xf32>
    %130 = arith.subf %126, %129 : vector<4x8x8xf32>
    %131 = math.exp %130 : vector<4x8x8xf32>
    %cst_31 = arith.constant dense<0.000000e+00> : vector<4x8xf32>
    %132 = vector.multi_reduction <add>, %131, %cst_31 [2] : vector<4x8x8xf32> to vector<4x8xf32>
    %133 = vector.shape_cast %132 : vector<4x8xf32> to vector<4x8x1xf32>
    %134 = tpu.reciprocal %133 {approx = true} : vector<4x8x1xf32> -> vector<4x8x1xf32>
    %135 = vector.broadcast %134 : vector<4x8x1xf32> to vector<4x8x8xf32>
    %136 = arith.mulf %131, %135 : vector<4x8x8xf32>
    "tpu.trace_start"() <{level = 10 : i32, message = "bqk,bke->bqe"}> : () -> ()
    %cst_32 = arith.constant dense<0.000000e+00> : vector<4x8x16xf32>
    %137 = tpu.matmul %136, %125, %cst_32 {dimension_numbers = #tpu.dot_dimension_numbers<[2], [1], [1], [2], [0, 0, 0, 1, 1, 2], [0], [0]>} : vector<4x8x8xf32>, vector<4x8x16xf32>, vector<4x8x16xf32> -> vector<4x8x16xf32>
    "tpu.trace_stop"() : () -> ()
    %138 = vector.shape_cast %137 : vector<4x8x16xf32> to vector<32x16xf32>
    %139 = vector.extract_strided_slice %5 {offsets = [0, 112], sizes = [32, 16], strides = [1, 1]} : vector<32x384xf32> to vector<32x16xf32>
    %140 = vector.shape_cast %139 : vector<32x16xf32> to vector<4x8x16xf32>
    %141 = vector.extract_strided_slice %5 {offsets = [0, 240], sizes = [32, 16], strides = [1, 1]} : vector<32x384xf32> to vector<32x16xf32>
    %142 = vector.shape_cast %141 : vector<32x16xf32> to vector<4x8x16xf32>
    %143 = vector.extract_strided_slice %5 {offsets = [0, 368], sizes = [32, 16], strides = [1, 1]} : vector<32x384xf32> to vector<32x16xf32>
    %144 = vector.shape_cast %143 : vector<32x16xf32> to vector<4x8x16xf32>
    "tpu.trace_start"() <{level = 10 : i32, message = "bqe,bke->bqk"}> : () -> ()
    %cst_33 = arith.constant dense<0.000000e+00> : vector<4x8x8xf32>
    %145 = tpu.matmul %140, %142, %cst_33 {dimension_numbers = #tpu.dot_dimension_numbers<[2], [2], [1], [1], [0, 0, 0, 1, 1, 1], [0], [0]>} : vector<4x8x16xf32>, vector<4x8x16xf32>, vector<4x8x8xf32> -> vector<4x8x8xf32>
    "tpu.trace_stop"() : () -> ()
    %cst_34 = arith.constant dense<0xFF800000> : vector<4x8xf32>
    %146 = vector.multi_reduction <maximumf>, %145, %cst_34 [2] : vector<4x8x8xf32> to vector<4x8xf32>
    %147 = vector.shape_cast %146 : vector<4x8xf32> to vector<4x8x1xf32>
    %148 = vector.broadcast %147 : vector<4x8x1xf32> to vector<4x8x8xf32>
    %149 = arith.subf %145, %148 : vector<4x8x8xf32>
    %150 = math.exp %149 : vector<4x8x8xf32>
    %cst_35 = arith.constant dense<0.000000e+00> : vector<4x8xf32>
    %151 = vector.multi_reduction <add>, %150, %cst_35 [2] : vector<4x8x8xf32> to vector<4x8xf32>
    %152 = vector.shape_cast %151 : vector<4x8xf32> to vector<4x8x1xf32>
    %153 = tpu.reciprocal %152 {approx = true} : vector<4x8x1xf32> -> vector<4x8x1xf32>
    %154 = vector.broadcast %153 : vector<4x8x1xf32> to vector<4x8x8xf32>
    %155 = arith.mulf %150, %154 : vector<4x8x8xf32>
    "tpu.trace_start"() <{level = 10 : i32, message = "bqk,bke->bqe"}> : () -> ()
    %cst_36 = arith.constant dense<0.000000e+00> : vector<4x8x16xf32>
    %156 = tpu.matmul %155, %144, %cst_36 {dimension_numbers = #tpu.dot_dimension_numbers<[2], [1], [1], [2], [0, 0, 0, 1, 1, 2], [0], [0]>} : vector<4x8x8xf32>, vector<4x8x16xf32>, vector<4x8x16xf32> -> vector<4x8x16xf32>
    "tpu.trace_stop"() : () -> ()
    %157 = vector.shape_cast %156 : vector<4x8x16xf32> to vector<32x16xf32>
    %158 = tpu.concatenate %24, %43, %62, %81, %100, %119, %138, %157 in 1 : vector<32x16xf32>, vector<32x16xf32>, vector<32x16xf32>, vector<32x16xf32>, vector<32x16xf32>, vector<32x16xf32>, vector<32x16xf32>, vector<32x16xf32> -> vector<32x128xf32>
    %159 = arith.truncf %158 : vector<32x128xf32> to vector<32x128xbf16>
    %c0_37 = arith.constant 0 : index
    %c0_38 = arith.constant 0 : index
    %160 = vector.load %arg4[%c0_37, %c0_38] : memref<128x128xbf16, #tpu.memory_space<vmem>>, vector<128x128xbf16>
    %cst_39 = arith.constant dense<0.000000e+00> : vector<32x128xf32>
    %161 = tpu.matmul %159, %160, %cst_39 {dimension_numbers = #tpu.dot_dimension_numbers<[1], [0], [0], [1], [0, 0, 1, 1], [], []>} : vector<32x128xbf16>, vector<128x128xbf16>, vector<32x128xf32> -> vector<32x128xf32>
    %c0_40 = arith.constant 0 : index
    %c0_41 = arith.constant 0 : index
    %162 = vector.load %arg5[%c0_40, %c0_41] : memref<1x128xf32, #tpu.memory_space<vmem>>, vector<1x128xf32>
    %163 = vector.broadcast %162 : vector<1x128xf32> to vector<32x128xf32>
    %164 = arith.addf %161, %163 : vector<32x128xf32>
    %c0_42 = arith.constant 0 : index
    %c0_43 = arith.constant 0 : index
    %165 = vector.load %arg6[%c0_42, %c0_43] : memref<32x128xf32, #tpu.memory_space<vmem>>, vector<32x128xf32>
    tpu.vector_store %arg6[%c0_42, %c0_43], %164 {strides = array<i32>} : memref<32x128xf32, #tpu.memory_space<vmem>>, vector<32x128xf32>,
    return
  }
  func.func @transform_0(%arg0: i32) -> (i32, i32) {
    %c0_i32 = arith.constant 0 : i32
    %c0_i32_0 = arith.constant 0 : i32
    return %arg0, %c0_i32 : i32, i32
  }
  func.func @transform_1(%arg0: i32) -> (i32, i32) {
    %c0_i32 = arith.constant 0 : i32
    %c0_i32_0 = arith.constant 0 : i32
    %c0_i32_1 = arith.constant 0 : i32
    return %c0_i32, %c0_i32_0 : i32, i32
  }
  func.func @transform_2(%arg0: i32) -> (i32, i32) {
    %c0_i32 = arith.constant 0 : i32
    %c0_i32_0 = arith.constant 0 : i32
    %c0_i32_1 = arith.constant 0 : i32
    return %c0_i32, %c0_i32_0 : i32, i32
  }
  func.func @transform_3(%arg0: i32) -> (i32, i32) {
    %c0_i32 = arith.constant 0 : i32
    %c0_i32_0 = arith.constant 0 : i32
    %c0_i32_1 = arith.constant 0 : i32
    return %c0_i32, %c0_i32_0 : i32, i32
  }
  func.func @transform_4(%arg0: i32) -> (i32, i32) {
    %c0_i32 = arith.constant 0 : i32
    %c0_i32_0 = arith.constant 0 : i32
    %c0_i32_1 = arith.constant 0 : i32
    return %c0_i32, %c0_i32_0 : i32, i32
  }
  func.func @transform_5(%arg0: i32) -> (i32, i32) {
    %c0_i32 = arith.constant 0 : i32
    %c0_i32_0 = arith.constant 0 : i32
    return %arg0, %c0_i32 : i32, i32
  }
}

</mosaic_0001>

<llo_original>
// kernel: tpu_custom_call.1
$region0: #{tpu_custom_call.1}
  #allocation0 [shape = 'u32[]', space=smem, size = 0x4, offset = 0x4, fixed_abs, tag = 'smem constant byte address 0x4 - core index']
  #allocation1 [shape = 'u32[144,128]{1,0:T(1,128)}', space=vmem, size = 0x12000, scoped, tag = 'internal scratch']
  %s0 = inlined_call_operand.hbm [shape: bf16[32,128], index: 0, kind: input, shape index: {}]
  %s1 = inlined_call_operand.hbm [shape: bf16[128,384], index: 1, kind: input, shape index: {}]
  %s2 = inlined_call_operand.vmem [shape: f32[1,384], index: 2, kind: input, shape index: {}]
  %s3 = inlined_call_operand.hbm [shape: bf16[128,128], index: 3, kind: input, shape index: {}]
  %s4 = inlined_call_operand.vmem [shape: f32[1,128], index: 4, kind: input, shape index: {}]
  %s5 = inlined_call_operand.hbm [shape: f32[32,128], index: 5, kind: output, shape index: {}]
  %s6 = sld [smem:[#allocation0]]
  $region42: #{tpu_custom_call.1} parent=0
    _
  %s8 = ssub.s32 1, %s6
  %s9 = scalar_select 0, %s8, %s6
  $region1: #{tpu_custom_call.1} parent=0
    #allocation2 [shape = 'u8[8192]{0}', space=vmem, size = 0x2000, scoped, tag = 'input window, operand 0, single buffered']
    #allocation3 [shape = 's32[1]{0}', space=sflag, size = 0x4, scoped, tag = 'scoped memory for tpu_custom_call.1']
    #allocation4 [shape = 's32[1]{0}', space=sflag, size = 0x4, scoped, tag = 'scoped memory for tpu_custom_call.1']
    #allocation5 [shape = 'u8[98304]{0}', space=vmem, size = 0x18000, scoped, tag = 'input window, operand 1, single buffered']
    #allocation6 [shape = 's32[1]{0}', space=sflag, size = 0x4, scoped, tag = 'scoped memory for tpu_custom_call.1']
    #allocation7 [shape = 'u8[32768]{0}', space=vmem, size = 0x8000, scoped, tag = 'input window, operand 3, single buffered']
    #allocation8 [shape = 'u8[16384]{0}', space=vmem, size = 0x4000, scoped, tag = 'output window, operand 0, single buffered']
    %10 = vsyncpa [#allocation3], 0
    %11 = vsyncpa [#allocation6], 0
    %12 = vsyncpa [#allocation4], 0
    // Predicated region
    $region2: #{tpu_custom_call.1} parent=1 // pred_check
      _
    $region3: #{tpu_custom_call.1} parent=1 // pred_check_branch
      %14 = sbr.rel (0) target = $region5
    $region4: #{tpu_custom_call.1} parent=1 // pred_region
      %s16 = ssub.s32 256, 256
      %17 = vsyncadd [#allocation3], %s16
      %s18 = sshll.u32 [#allocation2], 4
      %s19 = int_to_ptr.vmem [resolvable:$true] %s18
      %24 = dma.hbm_to_vmem [thread:$0]  %s0, 256, %s19, [#allocation3], 64, 64, 4
    $region5: #{tpu_custom_call.1} parent=1 // pred_fallthru
      _
    // Predicated region
    $region6: #{tpu_custom_call.1} parent=1 // pred_check
      _
    $region7: #{tpu_custom_call.1} parent=1 // pred_check_branch
      %26 = sbr.rel (0) target = $region9
    $region8: #{tpu_custom_call.1} parent=1 // pred_region
      %s28 = ssub.s32 3072, 3072
      %29 = vsyncadd [#allocation6], %s28
      %s30 = sshll.u32 [#allocation5], 4
      %s31 = int_to_ptr.vmem [resolvable:$true] %s30
      %36 = dma.hbm_to_vmem [thread:$0]  %s1, 3072, %s31, [#allocation6], 192, 192, 12
    $region9: #{tpu_custom_call.1} parent=1 // pred_fallthru
      _
    // Predicated region
    $region10: #{tpu_custom_call.1} parent=1 // pred_check
      _
    $region11: #{tpu_custom_call.1} parent=1 // pred_check_branch
      %38 = sbr.rel (0) target = $region13
    $region12: #{tpu_custom_call.1} parent=1 // pred_region
      _
    $region13: #{tpu_custom_call.1} parent=1 // pred_fallthru
      _
    // Predicated region
    $region14: #{tpu_custom_call.1} parent=1 // pred_check
      _
    $region15: #{tpu_custom_call.1} parent=1 // pred_check_branch
      %40 = sbr.rel (0) target = $region17
    $region16: #{tpu_custom_call.1} parent=1 // pred_region
      %s42 = ssub.s32 1024, 1024
      %43 = vsyncadd [#allocation6], %s42
      %s44 = sshll.u32 [#allocation7], 4
      %s45 = int_to_ptr.vmem [resolvable:$true] %s44
      %50 = dma.hbm_to_vmem [thread:$0]  %s3, 1024, %s45, [#allocation6], 64, 64, 4
    $region17: #{tpu_custom_call.1} parent=1 // pred_fallthru
      _
    // Predicated region
    $region18: #{tpu_custom_call.1} parent=1 // pred_check
      _
    $region19: #{tpu_custom_call.1} parent=1 // pred_check_branch
      %52 = sbr.rel (0) target = $region21
    $region20: #{tpu_custom_call.1} parent=1 // pred_region
      _
    $region21: #{tpu_custom_call.1} parent=1 // pred_fallthru
      _
    // Predicated region
    $region22: #{tpu_custom_call.1} parent=1 // pred_check
      _
    $region23: #{tpu_custom_call.1} parent=1 // pred_check_branch
      %54 = sbr.rel (0) target = $region25
    $region24: #{tpu_custom_call.1} parent=1 // pred_region
      %55 = dma.done [#allocation3], 256
    $region25: #{tpu_custom_call.1} parent=1 // pred_fallthru
      _
    // Predicated region
    $region26: #{tpu_custom_call.1} parent=1 // pred_check
      _
    $region27: #{tpu_custom_call.1} parent=1 // pred_check_branch
      %57 = sbr.rel (0) target = $region29
    $region28: #{tpu_custom_call.1} parent=1 // pred_region
      %58 = dma.done [#allocation6], 3072
    $region29: #{tpu_custom_call.1} parent=1 // pred_fallthru
      _
    // Predicated region
    $region30: #{tpu_custom_call.1} parent=1 // pred_check
      _
    $region31: #{tpu_custom_call.1} parent=1 // pred_check_branch
      %60 = sbr.rel (0) target = $region33
    $region32: #{tpu_custom_call.1} parent=1 // pred_region
      %61 = dma.done [#allocation6], 1024
    $region33: #{tpu_custom_call.1} parent=1 // pred_fallthru
      _
    %v63 = vld [vmem:[#allocation2] sm:$0xf]
    %v64 = vld [vmem:[#allocation2 + $0x4] sm:$0xf]
    %v65 = vld [vmem:[#allocation2 + $0x8] sm:$0xf]
    %v66 = vld [vmem:[#allocation2 + $0xc] sm:$0xf]
    %v67 = vld [vmem:[#allocation5] sm:$0xff]
    %v68 = vld [vmem:[#allocation5 + $0x8] sm:$0xf]
    %v69 = vld [vmem:[#allocation5 + $0xc] sm:$0xff]
    %v70 = vld [vmem:[#allocation5 + $0x14] sm:$0xf]
    %v71 = vld [vmem:[#allocation5 + $0x18] sm:$0xff]
    %v72 = vld [vmem:[#allocation5 + $0x20] sm:$0xf]
    %v73 = vld [vmem:[#allocation5 + $0x24] sm:$0xff]
    %v74 = vld [vmem:[#allocation5 + $0x2c] sm:$0xf]
    %v75 = vld [vmem:[#allocation5 + $0x30] sm:$0xff]
    %v76 = vld [vmem:[#allocation5 + $0x38] sm:$0xf]
    %v77 = vld [vmem:[#allocation5 + $0x3c] sm:$0xff]
    %v78 = vld [vmem:[#allocation5 + $0x44] sm:$0xf]
    %v79 = vld [vmem:[#allocation5 + $0x48] sm:$0xff]
    %v80 = vld [vmem:[#allocation5 + $0x50] sm:$0xf]
    %v81 = vld [vmem:[#allocation5 + $0x54] sm:$0xff]
    %v82 = vld [vmem:[#allocation5 + $0x5c] sm:$0xf]
    %v83 = vld [vmem:[#allocation5 + $0x60] sm:$0xff]
    %v84 = vld [vmem:[#allocation5 + $0x68] sm:$0xf]
    %v85 = vld [vmem:[#allocation5 + $0x6c] sm:$0xff]
    %v86 = vld [vmem:[#allocation5 + $0x74] sm:$0xf]
    %v87 = vld [vmem:[#allocation5 + $0x78] sm:$0xff]
    %v88 = vld [vmem:[#allocation5 + $0x80] sm:$0xf]
    %v89 = vld [vmem:[#allocation5 + $0x84] sm:$0xff]
    %v90 = vld [vmem:[#allocation5 + $0x8c] sm:$0xf]
    %v91 = vld [vmem:[#allocation5 + $0x90] sm:$0xff]
    %v92 = vld [vmem:[#allocation5 + $0x98] sm:$0xf]
    %v93 = vld [vmem:[#allocation5 + $0x9c] sm:$0xff]
    %v94 = vld [vmem:[#allocation5 + $0xa4] sm:$0xf]
    %v95 = vld [vmem:[#allocation5 + $0xa8] sm:$0xff]
    %v96 = vld [vmem:[#allocation5 + $0xb0] sm:$0xf]
    %v97 = vld [vmem:[#allocation5 + $0xb4] sm:$0xff]
    %v98 = vld [vmem:[#allocation5 + $0xbc] sm:$0xf]
    %v99 = vld [vmem:[%s2] sm:$0x7]
    %v101 = vlaneseq
    %v102 = vshrl.u32 %v101, 7
    %v103 = vsub.s32 0, %v102
    %v104 = vrot.slane %v99, %v103
    %v105 = vlaneseq
    %v106 = vshrl.u32 %v105, 7
    %v107 = vsub.s32 1, %v106
    %v108 = vrot.slane %v99, %v107
    %v109 = vlaneseq
    %v110 = vshrl.u32 %v109, 7
    %v111 = vsub.s32 2, %v110
    %v112 = vrot.slane %v99, %v111
    %v120 = vunpack.c.l.b16 %v63
    %v121 = vunpack.c.l.b16 %v64
    %v122 = vunpack.c.l.b16 %v65
    %v123 = vunpack.c.l.b16 %v66
    %v124 = vpack.c.b16 %v121, %v120
    %v125 = vpack.c.b16 %v123, %v122
    %v160 = vunpack.c.l.b16 %v67
    %v161 = vunpack.c.h.b16 %v67
    %v162 = vunpack.c.l.b16 %v68
    %v163 = vunpack.c.l.b16 %v69
    %v164 = vunpack.c.h.b16 %v69
    %v165 = vunpack.c.l.b16 %v70
    %v166 = vunpack.c.l.b16 %v71
    %v167 = vunpack.c.h.b16 %v71
    %v168 = vunpack.c.l.b16 %v72
    %v169 = vunpack.c.l.b16 %v73
    %v170 = vunpack.c.h.b16 %v73
    %v171 = vunpack.c.l.b16 %v74
    %v172 = vunpack.c.l.b16 %v75
    %v173 = vunpack.c.h.b16 %v75
    %v174 = vunpack.c.l.b16 %v76
    %v175 = vunpack.c.l.b16 %v77
    %v176 = vunpack.c.h.b16 %v77
    %v177 = vunpack.c.l.b16 %v78
    %v178 = vunpack.c.l.b16 %v79
    %v179 = vunpack.c.h.b16 %v79
    %v180 = vunpack.c.l.b16 %v80
    %v181 = vunpack.c.l.b16 %v81
    %v182 = vunpack.c.h.b16 %v81
    %v183 = vunpack.c.l.b16 %v82
    %v184 = vunpack.c.l.b16 %v83
    %v185 = vunpack.c.h.b16 %v83
    %v186 = vunpack.c.l.b16 %v84
    %v187 = vunpack.c.l.b16 %v85
    %v188 = vunpack.c.h.b16 %v85
    %v189 = vunpack.c.l.b16 %v86
    %v190 = vunpack.c.l.b16 %v87
    %v191 = vunpack.c.h.b16 %v87
    %v192 = vunpack.c.l.b16 %v88
    %v193 = vunpack.c.l.b16 %v89
    %v194 = vunpack.c.h.b16 %v89
    %v195 = vunpack.c.l.b16 %v90
    %v196 = vunpack.c.l.b16 %v91
    %v197 = vunpack.c.h.b16 %v91
    %v198 = vunpack.c.l.b16 %v92
    %v199 = vunpack.c.l.b16 %v93
    %v200 = vunpack.c.h.b16 %v93
    %v201 = vunpack.c.l.b16 %v94
    %v202 = vunpack.c.l.b16 %v95
    %v203 = vunpack.c.h.b16 %v95
    %v204 = vunpack.c.l.b16 %v96
    %v205 = vunpack.c.l.b16 %v97
    %v206 = vunpack.c.h.b16 %v97
    %v207 = vunpack.c.l.b16 %v98
    %v208 = vpack.c.b16 %v163, %v160
    %v209 = vpack.c.b16 %v164, %v161
    %v210 = vpack.c.b16 %v165, %v162
    %v211 = vpack.c.b16 %v169, %v166
    %v212 = vpack.c.b16 %v170, %v167
    %v213 = vpack.c.b16 %v171, %v168
    %v214 = vpack.c.b16 %v175, %v172
    %v215 = vpack.c.b16 %v176, %v173
    %v216 = vpack.c.b16 %v177, %v174
    %v217 = vpack.c.b16 %v181, %v178
    %v218 = vpack.c.b16 %v182, %v179
    %v219 = vpack.c.b16 %v183, %v180
    %v220 = vpack.c.b16 %v187, %v184
    %v221 = vpack.c.b16 %v188, %v185
    %v222 = vpack.c.b16 %v189, %v186
    %v223 = vpack.c.b16 %v193, %v190
    %v224 = vpack.c.b16 %v194, %v191
    %v225 = vpack.c.b16 %v195, %v192
    %v226 = vpack.c.b16 %v199, %v196
    %v227 = vpack.c.b16 %v200, %v197
    %v228 = vpack.c.b16 %v201, %v198
    %v229 = vpack.c.b16 %v205, %v202
    %v230 = vpack.c.b16 %v206, %v203
    %v231 = vpack.c.b16 %v207, %v204
    %256 = vmatprep.subr.bf16.mxu0 %v209
    %257 = vmatpush1.bf16.msra.mxu0 %v208
    %258 = vmatprep.subr.bf16.mxu0 %v212
    %259 = vmatpush1.bf16.msra.mxu0 %v211
    %260 = vmatprep.subr.bf16.mxu0 %v215
    %261 = vmatpush1.bf16.msra.mxu0 %v214
    %262 = vmatprep.subr.bf16.mxu0 %v218
    %263 = vmatpush1.bf16.msra.mxu0 %v217
    %264 = vmatprep.subr.bf16.mxu0 %v221
    %265 = vmatpush1.bf16.msra.mxu0 %v220
    %266 = vmatprep.subr.bf16.mxu0 %v224
    %267 = vmatpush1.bf16.msra.mxu0 %v223
    %268 = vmatprep.subr.bf16.mxu0 %v227
    %269 = vmatpush1.bf16.msra.mxu0 %v226
    %270 = vmatprep.subr.bf16.mxu0 %v230
    %271 = vmatpush1.bf16.msra.mxu0 %v229
    %272 = vmatprep.subr.bf16.mxu0 0
    %273 = vmatpush1.bf16.msra.mxu0 0
    %274 = vmatprep.subr.bf16.mxu0 0
    %275 = vmatpush1.bf16.msra.mxu0 0
    %276 = vmatprep.subr.bf16.mxu0 0
    %277 = vmatpush1.bf16.msra.mxu0 0
    %278 = vmatprep.subr.bf16.mxu0 0
    %279 = vmatpush1.bf16.msra.mxu0 0
    %280 = vmatprep.subr.bf16.mxu0 0
    %281 = vmatpush1.bf16.msra.mxu0 0
    %282 = vmatprep.subr.bf16.mxu0 0
    %283 = vmatpush1.bf16.msra.mxu0 0
    %284 = vmatprep.subr.bf16.mxu0 0
    %285 = vmatpush1.bf16.msra.mxu0 0
    %286 = vmatprep.subr.bf16.mxu0 0
    %287 = vmatpush1.bf16.msra.mxu0 0
    %288 = vmatprep.mubr.bf16.mxu0 0
    %289 = vmatmul.mubr.bf16.gmra.mrb[0].mxu0 %v124
    %v290 = vpop.f32.mrb[0].mxu0
    %v291 = vadd.f32 %v104, %v290
    %v292 = vpop.f32.mrb[0].mxu0
    %v293 = vadd.f32 %v108, %v292
    %v294 = vpop.f32.mrb[0].mxu0
    %v295 = vadd.f32 %v104, %v294
    %v296 = vpop.f32.mrb[0].mxu0
    %v297 = vadd.f32 %v108, %v296
    %298 = vmatprep.mubr.bf16.mxu0 0
    %299 = vmatmul.mubr.bf16.gmra.mrb[0].mxu0 %v125
    %v300 = vpop.f32.mrb[0].mxu0
    %v301 = vadd.f32 %v104, %v300
    %v302 = vpop.f32.mrb[0].mxu0
    %v303 = vadd.f32 %v108, %v302
    %v304 = vpop.f32.mrb[0].mxu0
    %v305 = vadd.f32 %v104, %v304
    %v306 = vpop.f32.mrb[0].mxu0
    %v307 = vadd.f32 %v108, %v306
    %308 = vdwg.mxu0
    %309 = vmatprep.subr.bf16.mxu0 0
    %310 = vmatpush1.bf16.msra.mxu0 %v210
    %311 = vmatprep.subr.bf16.mxu0 0
    %312 = vmatpush1.bf16.msra.mxu0 %v213
    %313 = vmatprep.subr.bf16.mxu0 0
    %314 = vmatpush1.bf16.msra.mxu0 %v216
    %315 = vmatprep.subr.bf16.mxu0 0
    %316 = vmatpush1.bf16.msra.mxu0 %v219
    %317 = vmatprep.subr.bf16.mxu0 0
    %318 = vmatpush1.bf16.msra.mxu0 %v222
    %319 = vmatprep.subr.bf16.mxu0 0
    %320 = vmatpush1.bf16.msra.mxu0 %v225
    %321 = vmatprep.subr.bf16.mxu0 0
    %322 = vmatpush1.bf16.msra.mxu0 %v228
    %323 = vmatprep.subr.bf16.mxu0 0
    %324 = vmatpush1.bf16.msra.mxu0 %v231
    %325 = vmatprep.subr.bf16.mxu0 0
    %326 = vmatpush1.bf16.msra.mxu0 0
    %327 = vmatprep.subr.bf16.mxu0 0
    %328 = vmatpush1.bf16.msra.mxu0 0
    %329 = vmatprep.subr.bf16.mxu0 0
    %330 = vmatpush1.bf16.msra.mxu0 0
    %331 = vmatprep.subr.bf16.mxu0 0
    %332 = vmatpush1.bf16.msra.mxu0 0
    %333 = vmatprep.subr.bf16.mxu0 0
    %334 = vmatpush1.bf16.msra.mxu0 0
    %335 = vmatprep.subr.bf16.mxu0 0
    %336 = vmatpush1.bf16.msra.mxu0 0
    %337 = vmatprep.subr.bf16.mxu0 0
    %338 = vmatpush1.bf16.msra.mxu0 0
    %339 = vmatprep.subr.bf16.mxu0 0
    %340 = vmatpush1.bf16.msra.mxu0 0
    %341 = vmatprep.mubr.bf16.mxu0 0
    %342 = vmatmul.mubr.bf16.gmra.mrb[0].mxu0 %v124
    %v343 = vpop.f32.mrb[0].mxu0
    %v344 = vadd.f32 %v112, %v343
    %v345 = vpop.f32.mrb[0].mxu0
    %v346 = vpop.f32.mrb[0].mxu0
    %v347 = vadd.f32 %v112, %v346
    %v348 = vpop.f32.mrb[0].mxu0
    %349 = vmatprep.mubr.bf16.mxu0 0
    %350 = vmatmul.mubr.bf16.gmra.mrb[0].mxu0 %v125
    %v351 = vpop.f32.mrb[0].mxu0
    %v352 = vadd.f32 %v112, %v351
    %v353 = vpop.f32.mrb[0].mxu0
    %v354 = vpop.f32.mrb[0].mxu0
    %v355 = vadd.f32 %v112, %v354
    %v356 = vpop.f32.mrb[0].mxu0
    %357 = vdwg.mxu0
    %vm358 = vcmask 130048
    %v360 = vsel %vm358, %v291, 0
    %v363 = vsel %vm358, %v293, 0
    %365 = vmatprep.subr.mxu0 0.0
    %366 = vmatpush1.xpose.msra.mxu0 %v363
    %367 = vmatprep.subr.mxu0 0.0
    %368 = vmatpush1.xpose.msra.mxu0 0.0
    %369 = vmatprep.subr.mxu0 0.0
    %370 = vmatpush1.xpose.msra.mxu0 0.0
    %371 = vmatprep.subr.mxu0 0.0
    %372 = vmatpush1.xpose.msra.mxu0 0.0
    %373 = vmatprep.subr.mxu0 0.0
    %374 = vmatpush1.xpose.msra.mxu0 0.0
    %375 = vmatprep.subr.mxu0 0.0
    %376 = vmatpush1.xpose.msra.mxu0 0.0
    %377 = vmatprep.subr.mxu0 0.0
    %378 = vmatpush1.xpose.msra.mxu0 0.0
    %379 = vmatprep.subr.mxu0 0.0
    %380 = vmatpush1.xpose.msra.mxu0 0.0
    %381 = vmatprep.subr.mxu0 0.0
    %382 = vmatpush1.xpose.msra.mxu0 0.0
    %383 = vmatprep.subr.mxu0 0.0
    %384 = vmatpush1.xpose.msra.mxu0 0.0
    %385 = vmatprep.subr.mxu0 0.0
    %386 = vmatpush1.xpose.msra.mxu0 0.0
    %387 = vmatprep.subr.mxu0 0.0
    %388 = vmatpush1.xpose.msra.mxu0 0.0
    %389 = vmatprep.subr.mxu0 0.0
    %390 = vmatpush1.xpose.msra.mxu0 0.0
    %391 = vmatprep.subr.mxu0 0.0
    %392 = vmatpush1.xpose.msra.mxu0 0.0
    %393 = vmatprep.subr.mxu0 0.0
    %394 = vmatpush1.xpose.msra.mxu0 0.0
    %395 = vmatprep.subr.mxu0 0.0
    %396 = vmatpush1.xpose.msra.mxu0 0.0
    %397 = vmatprep.subr.mxu0 0.0
    %398 = vmatpush1.xpose.msra.mxu0 0.0
    %399 = vmatprep.subr.mxu0 0.0
    %400 = vmatpush1.xpose.msra.mxu0 0.0
    %401 = vmatprep.subr.mxu0 0.0
    %402 = vmatpush1.xpose.msra.mxu0 0.0
    %403 = vmatprep.subr.mxu0 0.0
    %404 = vmatpush1.xpose.msra.mxu0 0.0
    %405 = vmatprep.subr.mxu0 0.0
    %406 = vmatpush1.xpose.msra.mxu0 0.0
    %407 = vmatprep.subr.mxu0 0.0
    %408 = vmatpush1.xpose.msra.mxu0 0.0
    %409 = vmatprep.subr.mxu0 0.0
    %410 = vmatpush1.xpose.msra.mxu0 0.0
    %411 = vmatprep.subr.mxu0 0.0
    %412 = vmatpush1.xpose.msra.mxu0 0.0
    %413 = vmatprep.subr.mxu0 0.0
    %414 = vmatpush1.xpose.msra.mxu0 0.0
    %415 = vmatprep.subr.mxu0 0.0
    %416 = vmatpush1.xpose.msra.mxu0 0.0
    %417 = vmatprep.subr.mxu0 0.0
    %418 = vmatpush1.xpose.msra.mxu0 0.0
    %419 = vmatprep.subr.mxu0 0.0
    %420 = vmatpush1.xpose.msra.mxu0 0.0
    %421 = vmatprep.subr.mxu0 0.0
    %422 = vmatpush1.xpose.msra.mxu0 0.0
    %423 = vmatprep.subr.mxu0 0.0
    %424 = vmatpush1.xpose.msra.mxu0 0.0
    %425 = vmatprep.subr.mxu0 0.0
    %426 = vmatpush1.xpose.msra.mxu0 0.0
    %427 = vmatprep.subr.mxu0 0.0
    %428 = vmatpush1.xpose.msra.mxu0 0.0
    %429 = vmatprep.mubr.f32.mxu0 0.0
    %430 = vmatmul.mubr.f32.gmra.mrb[0].mxu0 %v360
    %v431 = vpop.f32.mrb[0].mxu0
    %v432 = vadd.f32 0.0, %v431
    %v433 = vpop.f32.mrb[0].mxu0
    %434 = vdwg.mxu0
    %v436 = vsel %vm358, %v295, 0
    %v439 = vsel %vm358, %v297, 0
    %441 = vmatprep.subr.mxu0 0.0
    %442 = vmatpush1.xpose.msra.mxu0 %v439
    %443 = vmatprep.subr.mxu0 0.0
    %444 = vmatpush1.xpose.msra.mxu0 0.0
    %445 = vmatprep.subr.mxu0 0.0
    %446 = vmatpush1.xpose.msra.mxu0 0.0
    %447 = vmatprep.subr.mxu0 0.0
    %448 = vmatpush1.xpose.msra.mxu0 0.0
    %449 = vmatprep.subr.mxu0 0.0
    %450 = vmatpush1.xpose.msra.mxu0 0.0
    %451 = vmatprep.subr.mxu0 0.0
    %452 = vmatpush1.xpose.msra.mxu0 0.0
    %453 = vmatprep.subr.mxu0 0.0
    %454 = vmatpush1.xpose.msra.mxu0 0.0
    %455 = vmatprep.subr.mxu0 0.0
    %456 = vmatpush1.xpose.msra.mxu0 0.0
    %457 = vmatprep.subr.mxu0 0.0
    %458 = vmatpush1.xpose.msra.mxu0 0.0
    %459 = vmatprep.subr.mxu0 0.0
    %460 = vmatpush1.xpose.msra.mxu0 0.0
    %461 = vmatprep.subr.mxu0 0.0
    %462 = vmatpush1.xpose.msra.mxu0 0.0
    %463 = vmatprep.subr.mxu0 0.0
    %464 = vmatpush1.xpose.msra.mxu0 0.0
    %465 = vmatprep.subr.mxu0 0.0
    %466 = vmatpush1.xpose.msra.mxu0 0.0
    %467 = vmatprep.subr.mxu0 0.0
    %468 = vmatpush1.xpose.msra.mxu0 0.0
    %469 = vmatprep.subr.mxu0 0.0
    %470 = vmatpush1.xpose.msra.mxu0 0.0
    %471 = vmatprep.subr.mxu0 0.0
    %472 = vmatpush1.xpose.msra.mxu0 0.0
    %473 = vmatprep.subr.mxu0 0.0
    %474 = vmatpush1.xpose.msra.mxu0 0.0
    %475 = vmatprep.subr.mxu0 0.0
    %476 = vmatpush1.xpose.msra.mxu0 0.0
    %477 = vmatprep.subr.mxu0 0.0
    %478 = vmatpush1.xpose.msra.mxu0 0.0
    %479 = vmatprep.subr.mxu0 0.0
    %480 = vmatpush1.xpose.msra.mxu0 0.0
    %481 = vmatprep.subr.mxu0 0.0
    %482 = vmatpush1.xpose.msra.mxu0 0.0
    %483 = vmatprep.subr.mxu0 0.0
    %484 = vmatpush1.xpose.msra.mxu0 0.0
    %485 = vmatprep.subr.mxu0 0.0
    %486 = vmatpush1.xpose.msra.mxu0 0.0
    %487 = vmatprep.subr.mxu0 0.0
    %488 = vmatpush1.xpose.msra.mxu0 0.0
    %489 = vmatprep.subr.mxu0 0.0
    %490 = vmatpush1.xpose.msra.mxu0 0.0
    %491 = vmatprep.subr.mxu0 0.0
    %492 = vmatpush1.xpose.msra.mxu0 0.0
    %493 = vmatprep.subr.mxu0 0.0
    %494 = vmatpush1.xpose.msra.mxu0 0.0
    %495 = vmatprep.subr.mxu0 0.0
    %496 = vmatpush1.xpose.msra.mxu0 0.0
    %497 = vmatprep.subr.mxu0 0.0
    %498 = vmatpush1.xpose.msra.mxu0 0.0
    %499 = vmatprep.subr.mxu0 0.0
    %500 = vmatpush1.xpose.msra.mxu0 0.0
    %501 = vmatprep.subr.mxu0 0.0
    %502 = vmatpush1.xpose.msra.mxu0 0.0
    %503 = vmatprep.subr.mxu0 0.0
    %504 = vmatpush1.xpose.msra.mxu0 0.0
    %505 = vmatprep.mubr.f32.mxu0 0.0
    %506 = vmatmul.mubr.f32.gmra.mrb[0].mxu0 %v436
    %v507 = vpop.f32.mrb[0].mxu0
    %v508 = vadd.f32 0.0, %v507
    %v509 = vpop.f32.mrb[0].mxu0
    %510 = vdwg.mxu0
    %v512 = vsel %vm358, %v301, 0
    %v515 = vsel %vm358, %v303, 0
    %517 = vmatprep.subr.mxu0 0.0
    %518 = vmatpush1.xpose.msra.mxu0 %v515
    %519 = vmatprep.subr.mxu0 0.0
    %520 = vmatpush1.xpose.msra.mxu0 0.0
    %521 = vmatprep.subr.mxu0 0.0
    %522 = vmatpush1.xpose.msra.mxu0 0.0
    %523 = vmatprep.subr.mxu0 0.0
    %524 = vmatpush1.xpose.msra.mxu0 0.0
    %525 = vmatprep.subr.mxu0 0.0
    %526 = vmatpush1.xpose.msra.mxu0 0.0
    %527 = vmatprep.subr.mxu0 0.0
    %528 = vmatpush1.xpose.msra.mxu0 0.0
    %529 = vmatprep.subr.mxu0 0.0
    %530 = vmatpush1.xpose.msra.mxu0 0.0
    %531 = vmatprep.subr.mxu0 0.0
    %532 = vmatpush1.xpose.msra.mxu0 0.0
    %533 = vmatprep.subr.mxu0 0.0
    %534 = vmatpush1.xpose.msra.mxu0 0.0
    %535 = vmatprep.subr.mxu0 0.0
    %536 = vmatpush1.xpose.msra.mxu0 0.0
    %537 = vmatprep.subr.mxu0 0.0
    %538 = vmatpush1.xpose.msra.mxu0 0.0
    %539 = vmatprep.subr.mxu0 0.0
    %540 = vmatpush1.xpose.msra.mxu0 0.0
    %541 = vmatprep.subr.mxu0 0.0
    %542 = vmatpush1.xpose.msra.mxu0 0.0
    %543 = vmatprep.subr.mxu0 0.0
    %544 = vmatpush1.xpose.msra.mxu0 0.0
    %545 = vmatprep.subr.mxu0 0.0
    %546 = vmatpush1.xpose.msra.mxu0 0.0
    %547 = vmatprep.subr.mxu0 0.0
    %548 = vmatpush1.xpose.msra.mxu0 0.0
    %549 = vmatprep.subr.mxu0 0.0
    %550 = vmatpush1.xpose.msra.mxu0 0.0
    %551 = vmatprep.subr.mxu0 0.0
    %552 = vmatpush1.xpose.msra.mxu0 0.0
    %553 = vmatprep.subr.mxu0 0.0
    %554 = vmatpush1.xpose.msra.mxu0 0.0
    %555 = vmatprep.subr.mxu0 0.0
    %556 = vmatpush1.xpose.msra.mxu0 0.0
    %557 = vmatprep.subr.mxu0 0.0
    %558 = vmatpush1.xpose.msra.mxu0 0.0
    %559 = vmatprep.subr.mxu0 0.0
    %560 = vmatpush1.xpose.msra.mxu0 0.0
    %561 = vmatprep.subr.mxu0 0.0
    %562 = vmatpush1.xpose.msra.mxu0 0.0
    %563 = vmatprep.subr.mxu0 0.0
    %564 = vmatpush1.xpose.msra.mxu0 0.0
    %565 = vmatprep.subr.mxu0 0.0
    %566 = vmatpush1.xpose.msra.mxu0 0.0
    %567 = vmatprep.subr.mxu0 0.0
    %568 = vmatpush1.xpose.msra.mxu0 0.0
    %569 = vmatprep.subr.mxu0 0.0
    %570 = vmatpush1.xpose.msra.mxu0 0.0
    %571 = vmatprep.subr.mxu0 0.0
    %572 = vmatpush1.xpose.msra.mxu0 0.0
    %573 = vmatprep.subr.mxu0 0.0
    %574 = vmatpush1.xpose.msra.mxu0 0.0
    %575 = vmatprep.subr.mxu0 0.0
    %576 = vmatpush1.xpose.msra.mxu0 0.0
    %577 = vmatprep.subr.mxu0 0.0
    %578 = vmatpush1.xpose.msra.mxu0 0.0
    %579 = vmatprep.subr.mxu0 0.0
    %580 = vmatpush1.xpose.msra.mxu0 0.0
    %581 = vmatprep.mubr.f32.mxu0 0.0
    %582 = vmatmul.mubr.f32.gmra.mrb[0].mxu0 %v512
    %v583 = vpop.f32.mrb[0].mxu0
    %v584 = vadd.f32 0.0, %v583
    %v585 = vpop.f32.mrb[0].mxu0
    %586 = vdwg.mxu0
    %v588 = vsel %vm358, %v305, 0
    %v591 = vsel %vm358, %v307, 0
    %593 = vmatprep.subr.mxu0 0.0
    %594 = vmatpush1.xpose.msra.mxu0 %v591
    %595 = vmatprep.subr.mxu0 0.0
    %596 = vmatpush1.xpose.msra.mxu0 0.0
    %597 = vmatprep.subr.mxu0 0.0
    %598 = vmatpush1.xpose.msra.mxu0 0.0
    %599 = vmatprep.subr.mxu0 0.0
    %600 = vmatpush1.xpose.msra.mxu0 0.0
    %601 = vmatprep.subr.mxu0 0.0
    %602 = vmatpush1.xpose.msra.mxu0 0.0
    %603 = vmatprep.subr.mxu0 0.0
    %604 = vmatpush1.xpose.msra.mxu0 0.0
    %605 = vmatprep.subr.mxu0 0.0
    %606 = vmatpush1.xpose.msra.mxu0 0.0
    %607 = vmatprep.subr.mxu0 0.0
    %608 = vmatpush1.xpose.msra.mxu0 0.0
    %609 = vmatprep.subr.mxu0 0.0
    %610 = vmatpush1.xpose.msra.mxu0 0.0
    %611 = vmatprep.subr.mxu0 0.0
    %612 = vmatpush1.xpose.msra.mxu0 0.0
    %613 = vmatprep.subr.mxu0 0.0
    %614 = vmatpush1.xpose.msra.mxu0 0.0
    %615 = vmatprep.subr.mxu0 0.0
    %616 = vmatpush1.xpose.msra.mxu0 0.0
    %617 = vmatprep.subr.mxu0 0.0
    %618 = vmatpush1.xpose.msra.mxu0 0.0
    %619 = vmatprep.subr.mxu0 0.0
    %620 = vmatpush1.xpose.msra.mxu0 0.0
    %621 = vmatprep.subr.mxu0 0.0
    %622 = vmatpush1.xpose.msra.mxu0 0.0
    %623 = vmatprep.subr.mxu0 0.0
    %624 = vmatpush1.xpose.msra.mxu0 0.0
    %625 = vmatprep.subr.mxu0 0.0
    %626 = vmatpush1.xpose.msra.mxu0 0.0
    %627 = vmatprep.subr.mxu0 0.0
    %628 = vmatpush1.xpose.msra.mxu0 0.0
    %629 = vmatprep.subr.mxu0 0.0
    %630 = vmatpush1.xpose.msra.mxu0 0.0
    %631 = vmatprep.subr.mxu0 0.0
    %632 = vmatpush1.xpose.msra.mxu0 0.0
    %633 = vmatprep.subr.mxu0 0.0
    %634 = vmatpush1.xpose.msra.mxu0 0.0
    %635 = vmatprep.subr.mxu0 0.0
    %636 = vmatpush1.xpose.msra.mxu0 0.0
    %637 = vmatprep.subr.mxu0 0.0
    %638 = vmatpush1.xpose.msra.mxu0 0.0
    %639 = vmatprep.subr.mxu0 0.0
    %640 = vmatpush1.xpose.msra.mxu0 0.0
    %641 = vmatprep.subr.mxu0 0.0
    %642 = vmatpush1.xpose.msra.mxu0 0.0
    %643 = vmatprep.subr.mxu0 0.0
    %644 = vmatpush1.xpose.msra.mxu0 0.0
    %645 = vmatprep.subr.mxu0 0.0
    %646 = vmatpush1.xpose.msra.mxu0 0.0
    %647 = vmatprep.subr.mxu0 0.0
    %648 = vmatpush1.xpose.msra.mxu0 0.0
    %649 = vmatprep.subr.mxu0 0.0
    %650 = vmatpush1.xpose.msra.mxu0 0.0
    %651 = vmatprep.subr.mxu0 0.0
    %652 = vmatpush1.xpose.msra.mxu0 0.0
    %653 = vmatprep.subr.mxu0 0.0
    %654 = vmatpush1.xpose.msra.mxu0 0.0
    %655 = vmatprep.subr.mxu0 0.0
    %656 = vmatpush1.xpose.msra.mxu0 0.0
    %657 = vmatprep.mubr.f32.mxu0 0.0
    %658 = vmatmul.mubr.f32.gmra.mrb[0].mxu0 %v588
    %v659 = vpop.f32.mrb[0].mxu0
    %v660 = vadd.f32 0.0, %v659
    %v661 = vpop.f32.mrb[0].mxu0
    %662 = vdwg.mxu0
    %vm663 = vcmask 64512
    %v664 = vsel %vm663, %v432, -inf
    %665 = vmax.xlane.f32.xlu0 %v664
    %v666 = vpop.xlane.xlu0 %665
    %v667 = vsel %vm663, %v508, -inf
    %668 = vmax.xlane.f32.xlu0 %v667
    %v669 = vpop.xlane.xlu0 %668
    %v670 = vsel %vm663, %v584, -inf
    %671 = vmax.xlane.f32.xlu0 %v670
    %v672 = vpop.xlane.xlu0 %671
    %v673 = vsel %vm663, %v660, -inf
    %674 = vmax.xlane.f32.xlu0 %v673
    %v675 = vpop.xlane.xlu0 %674
    %v676 = vsub.f32 %v432, %v666
    %v677 = vsub.f32 %v508, %v669
    %v678 = vsub.f32 %v584, %v672
    %v679 = vsub.f32 %v660, %v675
    %v680 = vmul.f32 %v676, 1.442695
    %v681 = vpow.pop %v680
    %v682 = vmul.f32 %v677, 1.442695
    %v683 = vpow.pop %v682
    %v684 = vmul.f32 %v678, 1.442695
    %v685 = vpow.pop %v684
    %v686 = vmul.f32 %v679, 1.442695
    %v687 = vpow.pop %v686
    %v688 = vsel %vm663, %v681, 0.0
    %689 = vadd.xlane.f32.xlu0 %v688
    %v690 = vpop.xlane.xlu0 %689
    %v691 = vsel %vm663, %v683, 0.0
    %692 = vadd.xlane.f32.xlu0 %v691
    %v693 = vpop.xlane.xlu0 %692
    %v694 = vsel %vm663, %v685, 0.0
    %695 = vadd.xlane.f32.xlu0 %v694
    %v696 = vpop.xlane.xlu0 %695
    %v697 = vsel %vm663, %v687, 0.0
    %698 = vadd.xlane.f32.xlu0 %v697
    %v699 = vpop.xlane.xlu0 %698
    %v700 = vrcp.pop %v690
    %v701 = vrcp.pop %v693
    %v702 = vrcp.pop %v696
    %v703 = vrcp.pop %v699
    %v704 = vmul.f32 %v681, %v700
    %v705 = vmul.f32 %v683, %v701
    %v706 = vmul.f32 %v685, %v702
    %v707 = vmul.f32 %v687, %v703
    %v709 = vsel %vm663, %v704, 0
    %711 = vmatprep.subr.mxu0 0.0
    %712 = vmatpush1.msra.mxu0 %v344
    %713 = vmatprep.subr.mxu0 0.0
    %714 = vmatpush1.msra.mxu0 0.0
    %715 = vmatprep.subr.mxu0 0.0
    %716 = vmatpush1.msra.mxu0 0.0
    %717 = vmatprep.subr.mxu0 0.0
    %718 = vmatpush1.msra.mxu0 0.0
    %719 = vmatprep.subr.mxu0 0.0
    %720 = vmatpush1.msra.mxu0 0.0
    %721 = vmatprep.subr.mxu0 0.0
    %722 = vmatpush1.msra.mxu0 0.0
    %723 = vmatprep.subr.mxu0 0.0
    %724 = vmatpush1.msra.mxu0 0.0
    %725 = vmatprep.subr.mxu0 0.0
    %726 = vmatpush1.msra.mxu0 0.0
    %727 = vmatprep.subr.mxu0 0.0
    %728 = vmatpush1.msra.mxu0 0.0
    %729 = vmatprep.subr.mxu0 0.0
    %730 = vmatpush1.msra.mxu0 0.0
    %731 = vmatprep.subr.mxu0 0.0
    %732 = vmatpush1.msra.mxu0 0.0
    %733 = vmatprep.subr.mxu0 0.0
    %734 = vmatpush1.msra.mxu0 0.0
    %735 = vmatprep.subr.mxu0 0.0
    %736 = vmatpush1.msra.mxu0 0.0
    %737 = vmatprep.subr.mxu0 0.0
    %738 = vmatpush1.msra.mxu0 0.0
    %739 = vmatprep.subr.mxu0 0.0
    %740 = vmatpush1.msra.mxu0 0.0
    %741 = vmatprep.subr.mxu0 0.0
    %742 = vmatpush1.msra.mxu0 0.0
    %743 = vmatprep.subr.mxu0 0.0
    %744 = vmatpush1.msra.mxu0 0.0
    %745 = vmatprep.subr.mxu0 0.0
    %746 = vmatpush1.msra.mxu0 0.0
    %747 = vmatprep.subr.mxu0 0.0
    %748 = vmatpush1.msra.mxu0 0.0
    %749 = vmatprep.subr.mxu0 0.0
    %750 = vmatpush1.msra.mxu0 0.0
    %751 = vmatprep.subr.mxu0 0.0
    %752 = vmatpush1.msra.mxu0 0.0
    %753 = vmatprep.subr.mxu0 0.0
    %754 = vmatpush1.msra.mxu0 0.0
    %755 = vmatprep.subr.mxu0 0.0
    %756 = vmatpush1.msra.mxu0 0.0
    %757 = vmatprep.subr.mxu0 0.0
    %758 = vmatpush1.msra.mxu0 0.0
    %759 = vmatprep.subr.mxu0 0.0
    %760 = vmatpush1.msra.mxu0 0.0
    %761 = vmatprep.subr.mxu0 0.0
    %762 = vmatpush1.msra.mxu0 0.0
    %763 = vmatprep.subr.mxu0 0.0
    %764 = vmatpush1.msra.mxu0 0.0
    %765 = vmatprep.subr.mxu0 0.0
    %766 = vmatpush1.msra.mxu0 0.0
    %767 = vmatprep.subr.mxu0 0.0
    %768 = vmatpush1.msra.mxu0 0.0
    %769 = vmatprep.subr.mxu0 0.0
    %770 = vmatpush1.msra.mxu0 0.0
    %771 = vmatprep.subr.mxu0 0.0
    %772 = vmatpush1.msra.mxu0 0.0
    %773 = vmatprep.subr.mxu0 0.0
    %774 = vmatpush1.msra.mxu0 0.0
    %775 = vmatprep.mubr.f32.mxu0 0.0
    %776 = vmatmul.mubr.f32.gmra.mrb[0].mxu0 %v709
    %v777 = vpop.f32.mrb[0].mxu0
    %v778 = vadd.f32 0.0, %v777
    %v779 = vpop.f32.mrb[0].mxu0
    %780 = vdwg.mxu0
    %v782 = vsel %vm663, %v705, 0
    %784 = vmatprep.subr.mxu0 0.0
    %785 = vmatpush1.msra.mxu0 %v347
    %786 = vmatprep.subr.mxu0 0.0
    %787 = vmatpush1.msra.mxu0 0.0
    %788 = vmatprep.subr.mxu0 0.0
    %789 = vmatpush1.msra.mxu0 0.0
    %790 = vmatprep.subr.mxu0 0.0
    %791 = vmatpush1.msra.mxu0 0.0
    %792 = vmatprep.subr.mxu0 0.0
    %793 = vmatpush1.msra.mxu0 0.0
    %794 = vmatprep.subr.mxu0 0.0
    %795 = vmatpush1.msra.mxu0 0.0
    %796 = vmatprep.subr.mxu0 0.0
    %797 = vmatpush1.msra.mxu0 0.0
    %798 = vmatprep.subr.mxu0 0.0
    %799 = vmatpush1.msra.mxu0 0.0
    %800 = vmatprep.subr.mxu0 0.0
    %801 = vmatpush1.msra.mxu0 0.0
    %802 = vmatprep.subr.mxu0 0.0
    %803 = vmatpush1.msra.mxu0 0.0
    %804 = vmatprep.subr.mxu0 0.0
    %805 = vmatpush1.msra.mxu0 0.0
    %806 = vmatprep.subr.mxu0 0.0
    %807 = vmatpush1.msra.mxu0 0.0
    %808 = vmatprep.subr.mxu0 0.0
    %809 = vmatpush1.msra.mxu0 0.0
    %810 = vmatprep.subr.mxu0 0.0
    %811 = vmatpush1.msra.mxu0 0.0
    %812 = vmatprep.subr.mxu0 0.0
    %813 = vmatpush1.msra.mxu0 0.0
    %814 = vmatprep.subr.mxu0 0.0
    %815 = vmatpush1.msra.mxu0 0.0
    %816 = vmatprep.subr.mxu0 0.0
    %817 = vmatpush1.msra.mxu0 0.0
    %818 = vmatprep.subr.mxu0 0.0
    %819 = vmatpush1.msra.mxu0 0.0
    %820 = vmatprep.subr.mxu0 0.0
    %821 = vmatpush1.msra.mxu0 0.0
    %822 = vmatprep.subr.mxu0 0.0
    %823 = vmatpush1.msra.mxu0 0.0
    %824 = vmatprep.subr.mxu0 0.0
    %825 = vmatpush1.msra.mxu0 0.0
    %826 = vmatprep.subr.mxu0 0.0
    %827 = vmatpush1.msra.mxu0 0.0
    %828 = vmatprep.subr.mxu0 0.0
    %829 = vmatpush1.msra.mxu0 0.0
    %830 = vmatprep.subr.mxu0 0.0
    %831 = vmatpush1.msra.mxu0 0.0
    %832 = vmatprep.subr.mxu0 0.0
    %833 = vmatpush1.msra.mxu0 0.0
    %834 = vmatprep.subr.mxu0 0.0
    %835 = vmatpush1.msra.mxu0 0.0
    %836 = vmatprep.subr.mxu0 0.0
    %837 = vmatpush1.msra.mxu0 0.0
    %838 = vmatprep.subr.mxu0 0.0
    %839 = vmatpush1.msra.mxu0 0.0
    %840 = vmatprep.subr.mxu0 0.0
    %841 = vmatpush1.msra.mxu0 0.0
    %842 = vmatprep.subr.mxu0 0.0
    %843 = vmatpush1.msra.mxu0 0.0
    %844 = vmatprep.subr.mxu0 0.0
    %845 = vmatpush1.msra.mxu0 0.0
    %846 = vmatprep.subr.mxu0 0.0
    %847 = vmatpush1.msra.mxu0 0.0
    %848 = vmatprep.mubr.f32.mxu0 0.0
    %849 = vmatmul.mubr.f32.gmra.mrb[0].mxu0 %v782
    %v850 = vpop.f32.mrb[0].mxu0
    %v851 = vadd.f32 0.0, %v850
    %v852 = vpop.f32.mrb[0].mxu0
    %853 = vdwg.mxu0
    %v855 = vsel %vm663, %v706, 0
    %857 = vmatprep.subr.mxu0 0.0
    %858 = vmatpush1.msra.mxu0 %v352
    %859 = vmatprep.subr.mxu0 0.0
    %860 = vmatpush1.msra.mxu0 0.0
    %861 = vmatprep.subr.mxu0 0.0
    %862 = vmatpush1.msra.mxu0 0.0
    %863 = vmatprep.subr.mxu0 0.0
    %864 = vmatpush1.msra.mxu0 0.0
    %865 = vmatprep.subr.mxu0 0.0
    %866 = vmatpush1.msra.mxu0 0.0
    %867 = vmatprep.subr.mxu0 0.0
    %868 = vmatpush1.msra.mxu0 0.0
    %869 = vmatprep.subr.mxu0 0.0
    %870 = vmatpush1.msra.mxu0 0.0
    %871 = vmatprep.subr.mxu0 0.0
    %872 = vmatpush1.msra.mxu0 0.0
    %873 = vmatprep.subr.mxu0 0.0
    %874 = vmatpush1.msra.mxu0 0.0
    %875 = vmatprep.subr.mxu0 0.0
    %876 = vmatpush1.msra.mxu0 0.0
    %877 = vmatprep.subr.mxu0 0.0
    %878 = vmatpush1.msra.mxu0 0.0
    %879 = vmatprep.subr.mxu0 0.0
    %880 = vmatpush1.msra.mxu0 0.0
    %881 = vmatprep.subr.mxu0 0.0
    %882 = vmatpush1.msra.mxu0 0.0
    %883 = vmatprep.subr.mxu0 0.0
    %884 = vmatpush1.msra.mxu0 0.0
    %885 = vmatprep.subr.mxu0 0.0
    %886 = vmatpush1.msra.mxu0 0.0
    %887 = vmatprep.subr.mxu0 0.0
    %888 = vmatpush1.msra.mxu0 0.0
    %889 = vmatprep.subr.mxu0 0.0
    %890 = vmatpush1.msra.mxu0 0.0
    %891 = vmatprep.subr.mxu0 0.0
    %892 = vmatpush1.msra.mxu0 0.0
    %893 = vmatprep.subr.mxu0 0.0
    %894 = vmatpush1.msra.mxu0 0.0
    %895 = vmatprep.subr.mxu0 0.0
    %896 = vmatpush1.msra.mxu0 0.0
    %897 = vmatprep.subr.mxu0 0.0
    %898 = vmatpush1.msra.mxu0 0.0
    %899 = vmatprep.subr.mxu0 0.0
    %900 = vmatpush1.msra.mxu0 0.0
    %901 = vmatprep.subr.mxu0 0.0
    %902 = vmatpush1.msra.mxu0 0.0
    %903 = vmatprep.subr.mxu0 0.0
    %904 = vmatpush1.msra.mxu0 0.0
    %905 = vmatprep.subr.mxu0 0.0
    %906 = vmatpush1.msra.mxu0 0.0
    %907 = vmatprep.subr.mxu0 0.0
    %908 = vmatpush1.msra.mxu0 0.0
    %909 = vmatprep.subr.mxu0 0.0
    %910 = vmatpush1.msra.mxu0 0.0
    %911 = vmatprep.subr.mxu0 0.0
    %912 = vmatpush1.msra.mxu0 0.0
    %913 = vmatprep.subr.mxu0 0.0
    %914 = vmatpush1.msra.mxu0 0.0
    %915 = vmatprep.subr.mxu0 0.0
    %916 = vmatpush1.msra.mxu0 0.0
    %917 = vmatprep.subr.mxu0 0.0
    %918 = vmatpush1.msra.mxu0 0.0
    %919 = vmatprep.subr.mxu0 0.0
    %920 = vmatpush1.msra.mxu0 0.0
    %921 = vmatprep.mubr.f32.mxu0 0.0
    %922 = vmatmul.mubr.f32.gmra.mrb[0].mxu0 %v855
    %v923 = vpop.f32.mrb[0].mxu0
    %v924 = vadd.f32 0.0, %v923
    %v925 = vpop.f32.mrb[0].mxu0
    %926 = vdwg.mxu0
    %v928 = vsel %vm663, %v707, 0
    %930 = vmatprep.subr.mxu0 0.0
    %931 = vmatpush1.msra.mxu0 %v355
    %932 = vmatprep.subr.mxu0 0.0
    %933 = vmatpush1.msra.mxu0 0.0
    %934 = vmatprep.subr.mxu0 0.0
    %935 = vmatpush1.msra.mxu0 0.0
    %936 = vmatprep.subr.mxu0 0.0
    %937 = vmatpush1.msra.mxu0 0.0
    %938 = vmatprep.subr.mxu0 0.0
    %939 = vmatpush1.msra.mxu0 0.0
    %940 = vmatprep.subr.mxu0 0.0
    %941 = vmatpush1.msra.mxu0 0.0
    %942 = vmatprep.subr.mxu0 0.0
    %943 = vmatpush1.msra.mxu0 0.0
    %944 = vmatprep.subr.mxu0 0.0
    %945 = vmatpush1.msra.mxu0 0.0
    %946 = vmatprep.subr.mxu0 0.0
    %947 = vmatpush1.msra.mxu0 0.0
    %948 = vmatprep.subr.mxu0 0.0
    %949 = vmatpush1.msra.mxu0 0.0
    %950 = vmatprep.subr.mxu0 0.0
    %951 = vmatpush1.msra.mxu0 0.0
    %952 = vmatprep.subr.mxu0 0.0
    %953 = vmatpush1.msra.mxu0 0.0
    %954 = vmatprep.subr.mxu0 0.0
    %955 = vmatpush1.msra.mxu0 0.0
    %956 = vmatprep.subr.mxu0 0.0
    %957 = vmatpush1.msra.mxu0 0.0
    %958 = vmatprep.subr.mxu0 0.0
    %959 = vmatpush1.msra.mxu0 0.0
    %960 = vmatprep.subr.mxu0 0.0
    %961 = vmatpush1.msra.mxu0 0.0
    %962 = vmatprep.subr.mxu0 0.0
    %963 = vmatpush1.msra.mxu0 0.0
    %964 = vmatprep.subr.mxu0 0.0
    %965 = vmatpush1.msra.mxu0 0.0
    %966 = vmatprep.subr.mxu0 0.0
    %967 = vmatpush1.msra.mxu0 0.0
    %968 = vmatprep.subr.mxu0 0.0
    %969 = vmatpush1.msra.mxu0 0.0
    %970 = vmatprep.subr.mxu0 0.0
    %971 = vmatpush1.msra.mxu0 0.0
    %972 = vmatprep.subr.mxu0 0.0
    %973 = vmatpush1.msra.mxu0 0.0
    %974 = vmatprep.subr.mxu0 0.0
    %975 = vmatpush1.msra.mxu0 0.0
    %976 = vmatprep.subr.mxu0 0.0
    %977 = vmatpush1.msra.mxu0 0.0
    %978 = vmatprep.subr.mxu0 0.0
    %979 = vmatpush1.msra.mxu0 0.0
    %980 = vmatprep.subr.mxu0 0.0
    %981 = vmatpush1.msra.mxu0 0.0
    %982 = vmatprep.subr.mxu0 0.0
    %983 = vmatpush1.msra.mxu0 0.0
    %984 = vmatprep.subr.mxu0 0.0
    %985 = vmatpush1.msra.mxu0 0.0
    %986 = vmatprep.subr.mxu0 0.0
    %987 = vmatpush1.msra.mxu0 0.0
    %988 = vmatprep.subr.mxu0 0.0
    %989 = vmatpush1.msra.mxu0 0.0
    %990 = vmatprep.subr.mxu0 0.0
    %991 = vmatpush1.msra.mxu0 0.0
    %992 = vmatprep.subr.mxu0 0.0
    %993 = vmatpush1.msra.mxu0 0.0
    %994 = vmatprep.mubr.f32.mxu0 0.0
    %995 = vmatmul.mubr.f32.gmra.mrb[0].mxu0 %v928
    %v996 = vpop.f32.mrb[0].mxu0
    %v997 = vadd.f32 0.0, %v996
    %v998 = vpop.f32.mrb[0].mxu0
    %999 = vdwg.mxu0
    %1000 = vrot.lane.b32.xlu0 %v291, 112
    %v1001 = vpop.permute.xlu0 %1000
    %1002 = vrot.lane.b32.xlu0 %v293, 112
    %v1003 = vpop.permute.xlu0 %1002
    %v1004 = vsel %vm358, %v1001, 0
    %v1006 = vsel %vm358, %v1003, 0
    %1008 = vmatprep.subr.mxu0 0.0
    %1009 = vmatpush1.xpose.msra.mxu0 %v1006
    %1010 = vmatprep.subr.mxu0 0.0
    %1011 = vmatpush1.xpose.msra.mxu0 0.0
    %1012 = vmatprep.subr.mxu0 0.0
    %1013 = vmatpush1.xpose.msra.mxu0 0.0
    %1014 = vmatprep.subr.mxu0 0.0
    %1015 = vmatpush1.xpose.msra.mxu0 0.0
    %1016 = vmatprep.subr.mxu0 0.0
    %1017 = vmatpush1.xpose.msra.mxu0 0.0
    %1018 = vmatprep.subr.mxu0 0.0
    %1019 = vmatpush1.xpose.msra.mxu0 0.0
    %1020 = vmatprep.subr.mxu0 0.0
    %1021 = vmatpush1.xpose.msra.mxu0 0.0
    %1022 = vmatprep.subr.mxu0 0.0
    %1023 = vmatpush1.xpose.msra.mxu0 0.0
    %1024 = vmatprep.subr.mxu0 0.0
    %1025 = vmatpush1.xpose.msra.mxu0 0.0
    %1026 = vmatprep.subr.mxu0 0.0
    %1027 = vmatpush1.xpose.msra.mxu0 0.0
    %1028 = vmatprep.subr.mxu0 0.0
    %1029 = vmatpush1.xpose.msra.mxu0 0.0
    %1030 = vmatprep.subr.mxu0 0.0
    %1031 = vmatpush1.xpose.msra.mxu0 0.0
    %1032 = vmatprep.subr.mxu0 0.0
    %1033 = vmatpush1.xpose.msra.mxu0 0.0
    %1034 = vmatprep.subr.mxu0 0.0
    %1035 = vmatpush1.xpose.msra.mxu0 0.0
    %1036 = vmatprep.subr.mxu0 0.0
    %1037 = vmatpush1.xpose.msra.mxu0 0.0
    %1038 = vmatprep.subr.mxu0 0.0
    %1039 = vmatpush1.xpose.msra.mxu0 0.0
    %1040 = vmatprep.subr.mxu0 0.0
    %1041 = vmatpush1.xpose.msra.mxu0 0.0
    %1042 = vmatprep.subr.mxu0 0.0
    %1043 = vmatpush1.xpose.msra.mxu0 0.0
    %1044 = vmatprep.subr.mxu0 0.0
    %1045 = vmatpush1.xpose.msra.mxu0 0.0
    %1046 = vmatprep.subr.mxu0 0.0
    %1047 = vmatpush1.xpose.msra.mxu0 0.0
    %1048 = vmatprep.subr.mxu0 0.0
    %1049 = vmatpush1.xpose.msra.mxu0 0.0
    %1050 = vmatprep.subr.mxu0 0.0
    %1051 = vmatpush1.xpose.msra.mxu0 0.0
    %1052 = vmatprep.subr.mxu0 0.0
    %1053 = vmatpush1.xpose.msra.mxu0 0.0
    %1054 = vmatprep.subr.mxu0 0.0
    %1055 = vmatpush1.xpose.msra.mxu0 0.0
    %1056 = vmatprep.subr.mxu0 0.0
    %1057 = vmatpush1.xpose.msra.mxu0 0.0
    %1058 = vmatprep.subr.mxu0 0.0
    %1059 = vmatpush1.xpose.msra.mxu0 0.0
    %1060 = vmatprep.subr.mxu0 0.0
    %1061 = vmatpush1.xpose.msra.mxu0 0.0
    %1062 = vmatprep.subr.mxu0 0.0
    %1063 = vmatpush1.xpose.msra.mxu0 0.0
    %1064 = vmatprep.subr.mxu0 0.0
    %1065 = vmatpush1.xpose.msra.mxu0 0.0
    %1066 = vmatprep.subr.mxu0 0.0
    %1067 = vmatpush1.xpose.msra.mxu0 0.0
    %1068 = vmatprep.subr.mxu0 0.0
    %1069 = vmatpush1.xpose.msra.mxu0 0.0
    %1070 = vmatprep.subr.mxu0 0.0
    %1071 = vmatpush1.xpose.msra.mxu0 0.0
    %1072 = vmatprep.mubr.f32.mxu0 0.0
    %1073 = vmatmul.mubr.f32.gmra.mrb[0].mxu0 %v1004
    %v1074 = vpop.f32.mrb[0].mxu0
    %v1075 = vadd.f32 0.0, %v1074
    %v1076 = vpop.f32.mrb[0].mxu0
    %1077 = vdwg.mxu0
    %1078 = vrot.lane.b32.xlu0 %v295, 112
    %v1079 = vpop.permute.xlu0 %1078
    %1080 = vrot.lane.b32.xlu0 %v297, 112
    %v1081 = vpop.permute.xlu0 %1080
    %v1082 = vsel %vm358, %v1079, 0
    %v1084 = vsel %vm358, %v1081, 0
    %1086 = vmatprep.subr.mxu0 0.0
    %1087 = vmatpush1.xpose.msra.mxu0 %v1084
    %1088 = vmatprep.subr.mxu0 0.0
    %1089 = vmatpush1.xpose.msra.mxu0 0.0
    %1090 = vmatprep.subr.mxu0 0.0
    %1091 = vmatpush1.xpose.msra.mxu0 0.0
    %1092 = vmatprep.subr.mxu0 0.0
    %1093 = vmatpush1.xpose.msra.mxu0 0.0
    %1094 = vmatprep.subr.mxu0 0.0
    %1095 = vmatpush1.xpose.msra.mxu0 0.0
    %1096 = vmatprep.subr.mxu0 0.0
    %1097 = vmatpush1.xpose.msra.mxu0 0.0
    %1098 = vmatprep.subr.mxu0 0.0
    %1099 = vmatpush1.xpose.msra.mxu0 0.0
    %1100 = vmatprep.subr.mxu0 0.0
    %1101 = vmatpush1.xpose.msra.mxu0 0.0
    %1102 = vmatprep.subr.mxu0 0.0
    %1103 = vmatpush1.xpose.msra.mxu0 0.0
    %1104 = vmatprep.subr.mxu0 0.0
    %1105 = vmatpush1.xpose.msra.mxu0 0.0
    %1106 = vmatprep.subr.mxu0 0.0
    %1107 = vmatpush1.xpose.msra.mxu0 0.0
    %1108 = vmatprep.subr.mxu0 0.0
    %1109 = vmatpush1.xpose.msra.mxu0 0.0
    %1110 = vmatprep.subr.mxu0 0.0
    %1111 = vmatpush1.xpose.msra.mxu0 0.0
    %1112 = vmatprep.subr.mxu0 0.0
    %1113 = vmatpush1.xpose.msra.mxu0 0.0
    %1114 = vmatprep.subr.mxu0 0.0
    %1115 = vmatpush1.xpose.msra.mxu0 0.0
    %1116 = vmatprep.subr.mxu0 0.0
    %1117 = vmatpush1.xpose.msra.mxu0 0.0
    %1118 = vmatprep.subr.mxu0 0.0
    %1119 = vmatpush1.xpose.msra.mxu0 0.0
    %1120 = vmatprep.subr.mxu0 0.0
    %1121 = vmatpush1.xpose.msra.mxu0 0.0
    %1122 = vmatprep.subr.mxu0 0.0
    %1123 = vmatpush1.xpose.msra.mxu0 0.0
    %1124 = vmatprep.subr.mxu0 0.0
    %1125 = vmatpush1.xpose.msra.mxu0 0.0
    %1126 = vmatprep.subr.mxu0 0.0
    %1127 = vmatpush1.xpose.msra.mxu0 0.0
    %1128 = vmatprep.subr.mxu0 0.0
    %1129 = vmatpush1.xpose.msra.mxu0 0.0
    %1130 = vmatprep.subr.mxu0 0.0
    %1131 = vmatpush1.xpose.msra.mxu0 0.0
    %1132 = vmatprep.subr.mxu0 0.0
    %1133 = vmatpush1.xpose.msra.mxu0 0.0
    %1134 = vmatprep.subr.mxu0 0.0
    %1135 = vmatpush1.xpose.msra.mxu0 0.0
    %1136 = vmatprep.subr.mxu0 0.0
    %1137 = vmatpush1.xpose.msra.mxu0 0.0
    %1138 = vmatprep.subr.mxu0 0.0
    %1139 = vmatpush1.xpose.msra.mxu0 0.0
    %1140 = vmatprep.subr.mxu0 0.0
    %1141 = vmatpush1.xpose.msra.mxu0 0.0
    %1142 = vmatprep.subr.mxu0 0.0
    %1143 = vmatpush1.xpose.msra.mxu0 0.0
    %1144 = vmatprep.subr.mxu0 0.0
    %1145 = vmatpush1.xpose.msra.mxu0 0.0
    %1146 = vmatprep.subr.mxu0 0.0
    %1147 = vmatpush1.xpose.msra.mxu0 0.0
    %1148 = vmatprep.subr.mxu0 0.0
    %1149 = vmatpush1.xpose.msra.mxu0 0.0
    %1150 = vmatprep.mubr.f32.mxu0 0.0
    %1151 = vmatmul.mubr.f32.gmra.mrb[0].mxu0 %v1082
    %v1152 = vpop.f32.mrb[0].mxu0
    %v1153 = vadd.f32 0.0, %v1152
    %v1154 = vpop.f32.mrb[0].mxu0
    %1155 = vdwg.mxu0
    %1156 = vrot.lane.b32.xlu0 %v301, 112
    %v1157 = vpop.permute.xlu0 %1156
    %1158 = vrot.lane.b32.xlu0 %v303, 112
    %v1159 = vpop.permute.xlu0 %1158
    %v1160 = vsel %vm358, %v1157, 0
    %v1162 = vsel %vm358, %v1159, 0
    %1164 = vmatprep.subr.mxu0 0.0
    %1165 = vmatpush1.xpose.msra.mxu0 %v1162
    %1166 = vmatprep.subr.mxu0 0.0
    %1167 = vmatpush1.xpose.msra.mxu0 0.0
    %1168 = vmatprep.subr.mxu0 0.0
    %1169 = vmatpush1.xpose.msra.mxu0 0.0
    %1170 = vmatprep.subr.mxu0 0.0
    %1171 = vmatpush1.xpose.msra.mxu0 0.0
    %1172 = vmatprep.subr.mxu0 0.0
    %1173 = vmatpush1.xpose.msra.mxu0 0.0
    %1174 = vmatprep.subr.mxu0 0.0
    %1175 = vmatpush1.xpose.msra.mxu0 0.0
    %1176 = vmatprep.subr.mxu0 0.0
    %1177 = vmatpush1.xpose.msra.mxu0 0.0
    %1178 = vmatprep.subr.mxu0 0.0
    %1179 = vmatpush1.xpose.msra.mxu0 0.0
    %1180 = vmatprep.subr.mxu0 0.0
    %1181 = vmatpush1.xpose.msra.mxu0 0.0
    %1182 = vmatprep.subr.mxu0 0.0
    %1183 = vmatpush1.xpose.msra.mxu0 0.0
    %1184 = vmatprep.subr.mxu0 0.0
    %1185 = vmatpush1.xpose.msra.mxu0 0.0
    %1186 = vmatprep.subr.mxu0 0.0
    %1187 = vmatpush1.xpose.msra.mxu0 0.0
    %1188 = vmatprep.subr.mxu0 0.0
    %1189 = vmatpush1.xpose.msra.mxu0 0.0
    %1190 = vmatprep.subr.mxu0 0.0
    %1191 = vmatpush1.xpose.msra.mxu0 0.0
    %1192 = vmatprep.subr.mxu0 0.0
    %1193 = vmatpush1.xpose.msra.mxu0 0.0
    %1194 = vmatprep.subr.mxu0 0.0
    %1195 = vmatpush1.xpose.msra.mxu0 0.0
    %1196 = vmatprep.subr.mxu0 0.0
    %1197 = vmatpush1.xpose.msra.mxu0 0.0
    %1198 = vmatprep.subr.mxu0 0.0
    %1199 = vmatpush1.xpose.msra.mxu0 0.0
    %1200 = vmatprep.subr.mxu0 0.0
    %1201 = vmatpush1.xpose.msra.mxu0 0.0
    %1202 = vmatprep.subr.mxu0 0.0
    %1203 = vmatpush1.xpose.msra.mxu0 0.0
    %1204 = vmatprep.subr.mxu0 0.0
    %1205 = vmatpush1.xpose.msra.mxu0 0.0
    %1206 = vmatprep.subr.mxu0 0.0
    %1207 = vmatpush1.xpose.msra.mxu0 0.0
    %1208 = vmatprep.subr.mxu0 0.0
    %1209 = vmatpush1.xpose.msra.mxu0 0.0
    %1210 = vmatprep.subr.mxu0 0.0
    %1211 = vmatpush1.xpose.msra.mxu0 0.0
    %1212 = vmatprep.subr.mxu0 0.0
    %1213 = vmatpush1.xpose.msra.mxu0 0.0
    %1214 = vmatprep.subr.mxu0 0.0
    %1215 = vmatpush1.xpose.msra.mxu0 0.0
    %1216 = vmatprep.subr.mxu0 0.0
    %1217 = vmatpush1.xpose.msra.mxu0 0.0
    %1218 = vmatprep.subr.mxu0 0.0
    %1219 = vmatpush1.xpose.msra.mxu0 0.0
    %1220 = vmatprep.subr.mxu0 0.0
    %1221 = vmatpush1.xpose.msra.mxu0 0.0
    %1222 = vmatprep.subr.mxu0 0.0
    %1223 = vmatpush1.xpose.msra.mxu0 0.0
    %1224 = vmatprep.subr.mxu0 0.0
    %1225 = vmatpush1.xpose.msra.mxu0 0.0
    %1226 = vmatprep.subr.mxu0 0.0
    %1227 = vmatpush1.xpose.msra.mxu0 0.0
    %1228 = vmatprep.mubr.f32.mxu0 0.0
    %1229 = vmatmul.mubr.f32.gmra.mrb[0].mxu0 %v1160
    %v1230 = vpop.f32.mrb[0].mxu0
    %v1231 = vadd.f32 0.0, %v1230
    %v1232 = vpop.f32.mrb[0].mxu0
    %1233 = vdwg.mxu0
    %1234 = vrot.lane.b32.xlu0 %v305, 112
    %v1235 = vpop.permute.xlu0 %1234
    %1236 = vrot.lane.b32.xlu0 %v307, 112
    %v1237 = vpop.permute.xlu0 %1236
    %v1238 = vsel %vm358, %v1235, 0
    %v1240 = vsel %vm358, %v1237, 0
    %1242 = vmatprep.subr.mxu0 0.0
    %1243 = vmatpush1.xpose.msra.mxu0 %v1240
    %1244 = vmatprep.subr.mxu0 0.0
    %1245 = vmatpush1.xpose.msra.mxu0 0.0
    %1246 = vmatprep.subr.mxu0 0.0
    %1247 = vmatpush1.xpose.msra.mxu0 0.0
    %1248 = vmatprep.subr.mxu0 0.0
    %1249 = vmatpush1.xpose.msra.mxu0 0.0
    %1250 = vmatprep.subr.mxu0 0.0
    %1251 = vmatpush1.xpose.msra.mxu0 0.0
    %1252 = vmatprep.subr.mxu0 0.0
    %1253 = vmatpush1.xpose.msra.mxu0 0.0
    %1254 = vmatprep.subr.mxu0 0.0
    %1255 = vmatpush1.xpose.msra.mxu0 0.0
    %1256 = vmatprep.subr.mxu0 0.0
    %1257 = vmatpush1.xpose.msra.mxu0 0.0
    %1258 = vmatprep.subr.mxu0 0.0
    %1259 = vmatpush1.xpose.msra.mxu0 0.0
    %1260 = vmatprep.subr.mxu0 0.0
    %1261 = vmatpush1.xpose.msra.mxu0 0.0
    %1262 = vmatprep.subr.mxu0 0.0
    %1263 = vmatpush1.xpose.msra.mxu0 0.0
    %1264 = vmatprep.subr.mxu0 0.0
    %1265 = vmatpush1.xpose.msra.mxu0 0.0
    %1266 = vmatprep.subr.mxu0 0.0
    %1267 = vmatpush1.xpose.msra.mxu0 0.0
    %1268 = vmatprep.subr.mxu0 0.0
    %1269 = vmatpush1.xpose.msra.mxu0 0.0
    %1270 = vmatprep.subr.mxu0 0.0
    %1271 = vmatpush1.xpose.msra.mxu0 0.0
    %1272 = vmatprep.subr.mxu0 0.0
    %1273 = vmatpush1.xpose.msra.mxu0 0.0
    %1274 = vmatprep.subr.mxu0 0.0
    %1275 = vmatpush1.xpose.msra.mxu0 0.0
    %1276 = vmatprep.subr.mxu0 0.0
    %1277 = vmatpush1.xpose.msra.mxu0 0.0
    %1278 = vmatprep.subr.mxu0 0.0
    %1279 = vmatpush1.xpose.msra.mxu0 0.0
    %1280 = vmatprep.subr.mxu0 0.0
    %1281 = vmatpush1.xpose.msra.mxu0 0.0
    %1282 = vmatprep.subr.mxu0 0.0
    %1283 = vmatpush1.xpose.msra.mxu0 0.0
    %1284 = vmatprep.subr.mxu0 0.0
    %1285 = vmatpush1.xpose.msra.mxu0 0.0
    %1286 = vmatprep.subr.mxu0 0.0
    %1287 = vmatpush1.xpose.msra.mxu0 0.0
    %1288 = vmatprep.subr.mxu0 0.0
    %1289 = vmatpush1.xpose.msra.mxu0 0.0
    %1290 = vmatprep.subr.mxu0 0.0
    %1291 = vmatpush1.xpose.msra.mxu0 0.0
    %1292 = vmatprep.subr.mxu0 0.0
    %1293 = vmatpush1.xpose.msra.mxu0 0.0
    %1294 = vmatprep.subr.mxu0 0.0
    %1295 = vmatpush1.xpose.msra.mxu0 0.0
    %1296 = vmatprep.subr.mxu0 0.0
    %1297 = vmatpush1.xpose.msra.mxu0 0.0
    %1298 = vmatprep.subr.mxu0 0.0
    %1299 = vmatpush1.xpose.msra.mxu0 0.0
    %1300 = vmatprep.subr.mxu0 0.0
    %1301 = vmatpush1.xpose.msra.mxu0 0.0
    %1302 = vmatprep.subr.mxu0 0.0
    %1303 = vmatpush1.xpose.msra.mxu0 0.0
    %1304 = vmatprep.subr.mxu0 0.0
    %1305 = vmatpush1.xpose.msra.mxu0 0.0
    %1306 = vmatprep.mubr.f32.mxu0 0.0
    %1307 = vmatmul.mubr.f32.gmra.mrb[0].mxu0 %v1238
    %v1308 = vpop.f32.mrb[0].mxu0
    %v1309 = vadd.f32 0.0, %v1308
    %v1310 = vpop.f32.mrb[0].mxu0
    %1311 = vdwg.mxu0
    %v1312 = vsel %vm663, %v1075, -inf
    %1313 = vmax.xlane.f32.xlu0 %v1312
    %v1314 = vpop.xlane.xlu0 %1313
    %v1315 = vsel %vm663, %v1153, -inf
    %1316 = vmax.xlane.f32.xlu0 %v1315
    %v1317 = vpop.xlane.xlu0 %1316
    %v1318 = vsel %vm663, %v1231, -inf
    %1319 = vmax.xlane.f32.xlu0 %v1318
    %v1320 = vpop.xlane.xlu0 %1319
    %v1321 = vsel %vm663, %v1309, -inf
    %1322 = vmax.xlane.f32.xlu0 %v1321
    %v1323 = vpop.xlane.xlu0 %1322
    %v1324 = vsub.f32 %v1075, %v1314
    %v1325 = vsub.f32 %v1153, %v1317
    %v1326 = vsub.f32 %v1231, %v1320
    %v1327 = vsub.f32 %v1309, %v1323
    %v1328 = vmul.f32 %v1324, 1.442695
    %v1329 = vpow.pop %v1328
    %v1330 = vmul.f32 %v1325, 1.442695
    %v1331 = vpow.pop %v1330
    %v1332 = vmul.f32 %v1326, 1.442695
    %v1333 = vpow.pop %v1332
    %v1334 = vmul.f32 %v1327, 1.442695
    %v1335 = vpow.pop %v1334
    %v1336 = vsel %vm663, %v1329, 0.0
    %1337 = vadd.xlane.f32.xlu0 %v1336
    %v1338 = vpop.xlane.xlu0 %1337
    %v1339 = vsel %vm663, %v1331, 0.0
    %1340 = vadd.xlane.f32.xlu0 %v1339
    %v1341 = vpop.xlane.xlu0 %1340
    %v1342 = vsel %vm663, %v1333, 0.0
    %1343 = vadd.xlane.f32.xlu0 %v1342
    %v1344 = vpop.xlane.xlu0 %1343
    %v1345 = vsel %vm663, %v1335, 0.0
    %1346 = vadd.xlane.f32.xlu0 %v1345
    %v1347 = vpop.xlane.xlu0 %1346
    %v1348 = vrcp.pop %v1338
    %v1349 = vrcp.pop %v1341
    %v1350 = vrcp.pop %v1344
    %v1351 = vrcp.pop %v1347
    %v1352 = vmul.f32 %v1329, %v1348
    %v1353 = vmul.f32 %v1331, %v1349
    %v1354 = vmul.f32 %v1333, %v1350
    %v1355 = vmul.f32 %v1335, %v1351
    %1357 = vrot.lane.b32.xlu0 %v344, 112
    %v1358 = vpop.permute.xlu0 %1357
    %v1361 = vsel %vm663, %v1352, 0
    %1363 = vmatprep.subr.mxu0 0.0
    %1364 = vmatpush1.msra.mxu0 %v1358
    %1365 = vmatprep.subr.mxu0 0.0
    %1366 = vmatpush1.msra.mxu0 0.0
    %1367 = vmatprep.subr.mxu0 0.0
    %1368 = vmatpush1.msra.mxu0 0.0
    %1369 = vmatprep.subr.mxu0 0.0
    %1370 = vmatpush1.msra.mxu0 0.0
    %1371 = vmatprep.subr.mxu0 0.0
    %1372 = vmatpush1.msra.mxu0 0.0
    %1373 = vmatprep.subr.mxu0 0.0
    %1374 = vmatpush1.msra.mxu0 0.0
    %1375 = vmatprep.subr.mxu0 0.0
    %1376 = vmatpush1.msra.mxu0 0.0
    %1377 = vmatprep.subr.mxu0 0.0
    %1378 = vmatpush1.msra.mxu0 0.0
    %1379 = vmatprep.subr.mxu0 0.0
    %1380 = vmatpush1.msra.mxu0 0.0
    %1381 = vmatprep.subr.mxu0 0.0
    %1382 = vmatpush1.msra.mxu0 0.0
    %1383 = vmatprep.subr.mxu0 0.0
    %1384 = vmatpush1.msra.mxu0 0.0
    %1385 = vmatprep.subr.mxu0 0.0
    %1386 = vmatpush1.msra.mxu0 0.0
    %1387 = vmatprep.subr.mxu0 0.0
    %1388 = vmatpush1.msra.mxu0 0.0
    %1389 = vmatprep.subr.mxu0 0.0
    %1390 = vmatpush1.msra.mxu0 0.0
    %1391 = vmatprep.subr.mxu0 0.0
    %1392 = vmatpush1.msra.mxu0 0.0
    %1393 = vmatprep.subr.mxu0 0.0
    %1394 = vmatpush1.msra.mxu0 0.0
    %1395 = vmatprep.subr.mxu0 0.0
    %1396 = vmatpush1.msra.mxu0 0.0
    %1397 = vmatprep.subr.mxu0 0.0
    %1398 = vmatpush1.msra.mxu0 0.0
    %1399 = vmatprep.subr.mxu0 0.0
    %1400 = vmatpush1.msra.mxu0 0.0
    %1401 = vmatprep.subr.mxu0 0.0
    %1402 = vmatpush1.msra.mxu0 0.0
    %1403 = vmatprep.subr.mxu0 0.0
    %1404 = vmatpush1.msra.mxu0 0.0
    %1405 = vmatprep.subr.mxu0 0.0
    %1406 = vmatpush1.msra.mxu0 0.0
    %1407 = vmatprep.subr.mxu0 0.0
    %1408 = vmatpush1.msra.mxu0 0.0
    %1409 = vmatprep.subr.mxu0 0.0
    %1410 = vmatpush1.msra.mxu0 0.0
    %1411 = vmatprep.subr.mxu0 0.0
    %1412 = vmatpush1.msra.mxu0 0.0
    %1413 = vmatprep.subr.mxu0 0.0
    %1414 = vmatpush1.msra.mxu0 0.0
    %1415 = vmatprep.subr.mxu0 0.0
    %1416 = vmatpush1.msra.mxu0 0.0
    %1417 = vmatprep.subr.mxu0 0.0
    %1418 = vmatpush1.msra.mxu0 0.0
    %1419 = vmatprep.subr.mxu0 0.0
    %1420 = vmatpush1.msra.mxu0 0.0
    %1421 = vmatprep.subr.mxu0 0.0
    %1422 = vmatpush1.msra.mxu0 0.0
    %1423 = vmatprep.subr.mxu0 0.0
    %1424 = vmatpush1.msra.mxu0 0.0
    %1425 = vmatprep.subr.mxu0 0.0
    %1426 = vmatpush1.msra.mxu0 0.0
    %1427 = vmatprep.mubr.f32.mxu0 0.0
    %1428 = vmatmul.mubr.f32.gmra.mrb[0].mxu0 %v1361
    %v1429 = vpop.f32.mrb[0].mxu0
    %v1430 = vadd.f32 0.0, %v1429
    %v1431 = vpop.f32.mrb[0].mxu0
    %1432 = vdwg.mxu0
    %1434 = vrot.lane.b32.xlu0 %v347, 112
    %v1435 = vpop.permute.xlu0 %1434
    %v1438 = vsel %vm663, %v1353, 0
    %1440 = vmatprep.subr.mxu0 0.0
    %1441 = vmatpush1.msra.mxu0 %v1435
    %1442 = vmatprep.subr.mxu0 0.0
    %1443 = vmatpush1.msra.mxu0 0.0
    %1444 = vmatprep.subr.mxu0 0.0
    %1445 = vmatpush1.msra.mxu0 0.0
    %1446 = vmatprep.subr.mxu0 0.0
    %1447 = vmatpush1.msra.mxu0 0.0
    %1448 = vmatprep.subr.mxu0 0.0
    %1449 = vmatpush1.msra.mxu0 0.0
    %1450 = vmatprep.subr.mxu0 0.0
    %1451 = vmatpush1.msra.mxu0 0.0
    %1452 = vmatprep.subr.mxu0 0.0
    %1453 = vmatpush1.msra.mxu0 0.0
    %1454 = vmatprep.subr.mxu0 0.0
    %1455 = vmatpush1.msra.mxu0 0.0
    %1456 = vmatprep.subr.mxu0 0.0
    %1457 = vmatpush1.msra.mxu0 0.0
    %1458 = vmatprep.subr.mxu0 0.0
    %1459 = vmatpush1.msra.mxu0 0.0
    %1460 = vmatprep.subr.mxu0 0.0
    %1461 = vmatpush1.msra.mxu0 0.0
    %1462 = vmatprep.subr.mxu0 0.0
    %1463 = vmatpush1.msra.mxu0 0.0
    %1464 = vmatprep.subr.mxu0 0.0
    %1465 = vmatpush1.msra.mxu0 0.0
    %1466 = vmatprep.subr.mxu0 0.0
    %1467 = vmatpush1.msra.mxu0 0.0
    %1468 = vmatprep.subr.mxu0 0.0
    %1469 = vmatpush1.msra.mxu0 0.0
    %1470 = vmatprep.subr.mxu0 0.0
    %1471 = vmatpush1.msra.mxu0 0.0
    %1472 = vmatprep.subr.mxu0 0.0
    %1473 = vmatpush1.msra.mxu0 0.0
    %1474 = vmatprep.subr.mxu0 0.0
    %1475 = vmatpush1.msra.mxu0 0.0
    %1476 = vmatprep.subr.mxu0 0.0
    %1477 = vmatpush1.msra.mxu0 0.0
    %1478 = vmatprep.subr.mxu0 0.0
    %1479 = vmatpush1.msra.mxu0 0.0
    %1480 = vmatprep.subr.mxu0 0.0
    %1481 = vmatpush1.msra.mxu0 0.0
    %1482 = vmatprep.subr.mxu0 0.0
    %1483 = vmatpush1.msra.mxu0 0.0
    %1484 = vmatprep.subr.mxu0 0.0
    %1485 = vmatpush1.msra.mxu0 0.0
    %1486 = vmatprep.subr.mxu0 0.0
    %1487 = vmatpush1.msra.mxu0 0.0
    %1488 = vmatprep.subr.mxu0 0.0
    %1489 = vmatpush1.msra.mxu0 0.0
    %1490 = vmatprep.subr.mxu0 0.0
    %1491 = vmatpush1.msra.mxu0 0.0
    %1492 = vmatprep.subr.mxu0 0.0
    %1493 = vmatpush1.msra.mxu0 0.0
    %1494 = vmatprep.subr.mxu0 0.0
    %1495 = vmatpush1.msra.mxu0 0.0
    %1496 = vmatprep.subr.mxu0 0.0
    %1497 = vmatpush1.msra.mxu0 0.0
    %1498 = vmatprep.subr.mxu0 0.0
    %1499 = vmatpush1.msra.mxu0 0.0
    %1500 = vmatprep.subr.mxu0 0.0
    %1501 = vmatpush1.msra.mxu0 0.0
    %1502 = vmatprep.subr.mxu0 0.0
    %1503 = vmatpush1.msra.mxu0 0.0
    %1504 = vmatprep.mubr.f32.mxu0 0.0
    %1505 = vmatmul.mubr.f32.gmra.mrb[0].mxu0 %v1438
    %v1506 = vpop.f32.mrb[0].mxu0
    %v1507 = vadd.f32 0.0, %v1506
    %v1508 = vpop.f32.mrb[0].mxu0
    %1509 = vdwg.mxu0
    %1511 = vrot.lane.b32.xlu0 %v352, 112
    %v1512 = vpop.permute.xlu0 %1511
    %v1515 = vsel %vm663, %v1354, 0
    %1517 = vmatprep.subr.mxu0 0.0
    %1518 = vmatpush1.msra.mxu0 %v1512
    %1519 = vmatprep.subr.mxu0 0.0
    %1520 = vmatpush1.msra.mxu0 0.0
    %1521 = vmatprep.subr.mxu0 0.0
    %1522 = vmatpush1.msra.mxu0 0.0
    %1523 = vmatprep.subr.mxu0 0.0
    %1524 = vmatpush1.msra.mxu0 0.0
    %1525 = vmatprep.subr.mxu0 0.0
    %1526 = vmatpush1.msra.mxu0 0.0
    %1527 = vmatprep.subr.mxu0 0.0
    %1528 = vmatpush1.msra.mxu0 0.0
    %1529 = vmatprep.subr.mxu0 0.0
    %1530 = vmatpush1.msra.mxu0 0.0
    %1531 = vmatprep.subr.mxu0 0.0
    %1532 = vmatpush1.msra.mxu0 0.0
    %1533 = vmatprep.subr.mxu0 0.0
    %1534 = vmatpush1.msra.mxu0 0.0
    %1535 = vmatprep.subr.mxu0 0.0
    %1536 = vmatpush1.msra.mxu0 0.0
    %1537 = vmatprep.subr.mxu0 0.0
    %1538 = vmatpush1.msra.mxu0 0.0
    %1539 = vmatprep.subr.mxu0 0.0
    %1540 = vmatpush1.msra.mxu0 0.0
    %1541 = vmatprep.subr.mxu0 0.0
    %1542 = vmatpush1.msra.mxu0 0.0
    %1543 = vmatprep.subr.mxu0 0.0
    %1544 = vmatpush1.msra.mxu0 0.0
    %1545 = vmatprep.subr.mxu0 0.0
    %1546 = vmatpush1.msra.mxu0 0.0
    %1547 = vmatprep.subr.mxu0 0.0
    %1548 = vmatpush1.msra.mxu0 0.0
    %1549 = vmatprep.subr.mxu0 0.0
    %1550 = vmatpush1.msra.mxu0 0.0
    %1551 = vmatprep.subr.mxu0 0.0
    %1552 = vmatpush1.msra.mxu0 0.0
    %1553 = vmatprep.subr.mxu0 0.0
    %1554 = vmatpush1.msra.mxu0 0.0
    %1555 = vmatprep.subr.mxu0 0.0
    %1556 = vmatpush1.msra.mxu0 0.0
    %1557 = vmatprep.subr.mxu0 0.0
    %1558 = vmatpush1.msra.mxu0 0.0
    %1559 = vmatprep.subr.mxu0 0.0
    %1560 = vmatpush1.msra.mxu0 0.0
    %1561 = vmatprep.subr.mxu0 0.0
    %1562 = vmatpush1.msra.mxu0 0.0
    %1563 = vmatprep.subr.mxu0 0.0
    %1564 = vmatpush1.msra.mxu0 0.0
    %1565 = vmatprep.subr.mxu0 0.0
    %1566 = vmatpush1.msra.mxu0 0.0
    %1567 = vmatprep.subr.mxu0 0.0
    %1568 = vmatpush1.msra.mxu0 0.0
    %1569 = vmatprep.subr.mxu0 0.0
    %1570 = vmatpush1.msra.mxu0 0.0
    %1571 = vmatprep.subr.mxu0 0.0
    %1572 = vmatpush1.msra.mxu0 0.0
    %1573 = vmatprep.subr.mxu0 0.0
    %1574 = vmatpush1.msra.mxu0 0.0
    %1575 = vmatprep.subr.mxu0 0.0
    %1576 = vmatpush1.msra.mxu0 0.0
    %1577 = vmatprep.subr.mxu0 0.0
    %1578 = vmatpush1.msra.mxu0 0.0
    %1579 = vmatprep.subr.mxu0 0.0
    %1580 = vmatpush1.msra.mxu0 0.0
    %1581 = vmatprep.mubr.f32.mxu0 0.0
    %1582 = vmatmul.mubr.f32.gmra.mrb[0].mxu0 %v1515
    %v1583 = vpop.f32.mrb[0].mxu0
    %v1584 = vadd.f32 0.0, %v1583
    %v1585 = vpop.f32.mrb[0].mxu0
    %1586 = vdwg.mxu0
    %1588 = vrot.lane.b32.xlu0 %v355, 112
    %v1589 = vpop.permute.xlu0 %1588
    %v1592 = vsel %vm663, %v1355, 0
    %1594 = vmatprep.subr.mxu0 0.0
    %1595 = vmatpush1.msra.mxu0 %v1589
    %1596 = vmatprep.subr.mxu0 0.0
    %1597 = vmatpush1.msra.mxu0 0.0
    %1598 = vmatprep.subr.mxu0 0.0
    %1599 = vmatpush1.msra.mxu0 0.0
    %1600 = vmatprep.subr.mxu0 0.0
    %1601 = vmatpush1.msra.mxu0 0.0
    %1602 = vmatprep.subr.mxu0 0.0
    %1603 = vmatpush1.msra.mxu0 0.0
    %1604 = vmatprep.subr.mxu0 0.0
    %1605 = vmatpush1.msra.mxu0 0.0
    %1606 = vmatprep.subr.mxu0 0.0
    %1607 = vmatpush1.msra.mxu0 0.0
    %1608 = vmatprep.subr.mxu0 0.0
    %1609 = vmatpush1.msra.mxu0 0.0
    %1610 = vmatprep.subr.mxu0 0.0
    %1611 = vmatpush1.msra.mxu0 0.0
    %1612 = vmatprep.subr.mxu0 0.0
    %1613 = vmatpush1.msra.mxu0 0.0
    %1614 = vmatprep.subr.mxu0 0.0
    %1615 = vmatpush1.msra.mxu0 0.0
    %1616 = vmatprep.subr.mxu0 0.0
    %1617 = vmatpush1.msra.mxu0 0.0
    %1618 = vmatprep.subr.mxu0 0.0
    %1619 = vmatpush1.msra.mxu0 0.0
    %1620 = vmatprep.subr.mxu0 0.0
    %1621 = vmatpush1.msra.mxu0 0.0
    %1622 = vmatprep.subr.mxu0 0.0
    %1623 = vmatpush1.msra.mxu0 0.0
    %1624 = vmatprep.subr.mxu0 0.0
    %1625 = vmatpush1.msra.mxu0 0.0
    %1626 = vmatprep.subr.mxu0 0.0
    %1627 = vmatpush1.msra.mxu0 0.0
    %1628 = vmatprep.subr.mxu0 0.0
    %1629 = vmatpush1.msra.mxu0 0.0
    %1630 = vmatprep.subr.mxu0 0.0
    %1631 = vmatpush1.msra.mxu0 0.0
    %1632 = vmatprep.subr.mxu0 0.0
    %1633 = vmatpush1.msra.mxu0 0.0
    %1634 = vmatprep.subr.mxu0 0.0
    %1635 = vmatpush1.msra.mxu0 0.0
    %1636 = vmatprep.subr.mxu0 0.0
    %1637 = vmatpush1.msra.mxu0 0.0
    %1638 = vmatprep.subr.mxu0 0.0
    %1639 = vmatpush1.msra.mxu0 0.0
    %1640 = vmatprep.subr.mxu0 0.0
    %1641 = vmatpush1.msra.mxu0 0.0
    %1642 = vmatprep.subr.mxu0 0.0
    %1643 = vmatpush1.msra.mxu0 0.0
    %1644 = vmatprep.subr.mxu0 0.0
    %1645 = vmatpush1.msra.mxu0 0.0
    %1646 = vmatprep.subr.mxu0 0.0
    %1647 = vmatpush1.msra.mxu0 0.0
    %1648 = vmatprep.subr.mxu0 0.0
    %1649 = vmatpush1.msra.mxu0 0.0
    %1650 = vmatprep.subr.mxu0 0.0
    %1651 = vmatpush1.msra.mxu0 0.0
    %1652 = vmatprep.subr.mxu0 0.0
    %1653 = vmatpush1.msra.mxu0 0.0
    %1654 = vmatprep.subr.mxu0 0.0
    %1655 = vmatpush1.msra.mxu0 0.0
    %1656 = vmatprep.subr.mxu0 0.0
    %1657 = vmatpush1.msra.mxu0 0.0
    %1658 = vmatprep.mubr.f32.mxu0 0.0
    %1659 = vmatmul.mubr.f32.gmra.mrb[0].mxu0 %v1592
    %v1660 = vpop.f32.mrb[0].mxu0
    %v1661 = vadd.f32 0.0, %v1660
    %v1662 = vpop.f32.mrb[0].mxu0
    %1663 = vdwg.mxu0
    %1664 = vrot.lane.b32.xlu0 %v291, 96
    %v1665 = vpop.permute.xlu0 %1664
    %1666 = vrot.lane.b32.xlu0 %v293, 96
    %v1667 = vpop.permute.xlu0 %1666
    %v1668 = vsel %vm358, %v1665, 0
    %v1670 = vsel %vm358, %v1667, 0
    %1672 = vmatprep.subr.mxu0 0.0
    %1673 = vmatpush1.xpose.msra.mxu0 %v1670
    %1674 = vmatprep.subr.mxu0 0.0
    %1675 = vmatpush1.xpose.msra.mxu0 0.0
    %1676 = vmatprep.subr.mxu0 0.0
    %1677 = vmatpush1.xpose.msra.mxu0 0.0
    %1678 = vmatprep.subr.mxu0 0.0
    %1679 = vmatpush1.xpose.msra.mxu0 0.0
    %1680 = vmatprep.subr.mxu0 0.0
    %1681 = vmatpush1.xpose.msra.mxu0 0.0
    %1682 = vmatprep.subr.mxu0 0.0
    %1683 = vmatpush1.xpose.msra.mxu0 0.0
    %1684 = vmatprep.subr.mxu0 0.0
    %1685 = vmatpush1.xpose.msra.mxu0 0.0
    %1686 = vmatprep.subr.mxu0 0.0
    %1687 = vmatpush1.xpose.msra.mxu0 0.0
    %1688 = vmatprep.subr.mxu0 0.0
    %1689 = vmatpush1.xpose.msra.mxu0 0.0
    %1690 = vmatprep.subr.mxu0 0.0
    %1691 = vmatpush1.xpose.msra.mxu0 0.0
    %1692 = vmatprep.subr.mxu0 0.0
    %1693 = vmatpush1.xpose.msra.mxu0 0.0
    %1694 = vmatprep.subr.mxu0 0.0
    %1695 = vmatpush1.xpose.msra.mxu0 0.0
    %1696 = vmatprep.subr.mxu0 0.0
    %1697 = vmatpush1.xpose.msra.mxu0 0.0
    %1698 = vmatprep.subr.mxu0 0.0
    %1699 = vmatpush1.xpose.msra.mxu0 0.0
    %1700 = vmatprep.subr.mxu0 0.0
    %1701 = vmatpush1.xpose.msra.mxu0 0.0
    %1702 = vmatprep.subr.mxu0 0.0
    %1703 = vmatpush1.xpose.msra.mxu0 0.0
    %1704 = vmatprep.subr.mxu0 0.0
    %1705 = vmatpush1.xpose.msra.mxu0 0.0
    %1706 = vmatprep.subr.mxu0 0.0
    %1707 = vmatpush1.xpose.msra.mxu0 0.0
    %1708 = vmatprep.subr.mxu0 0.0
    %1709 = vmatpush1.xpose.msra.mxu0 0.0
    %1710 = vmatprep.subr.mxu0 0.0
    %1711 = vmatpush1.xpose.msra.mxu0 0.0
    %1712 = vmatprep.subr.mxu0 0.0
    %1713 = vmatpush1.xpose.msra.mxu0 0.0
    %1714 = vmatprep.subr.mxu0 0.0
    %1715 = vmatpush1.xpose.msra.mxu0 0.0
    %1716 = vmatprep.subr.mxu0 0.0
    %1717 = vmatpush1.xpose.msra.mxu0 0.0
    %1718 = vmatprep.subr.mxu0 0.0
    %1719 = vmatpush1.xpose.msra.mxu0 0.0
    %1720 = vmatprep.subr.mxu0 0.0
    %1721 = vmatpush1.xpose.msra.mxu0 0.0
    %1722 = vmatprep.subr.mxu0 0.0
    %1723 = vmatpush1.xpose.msra.mxu0 0.0
    %1724 = vmatprep.subr.mxu0 0.0
    %1725 = vmatpush1.xpose.msra.mxu0 0.0
    %1726 = vmatprep.subr.mxu0 0.0
    %1727 = vmatpush1.xpose.msra.mxu0 0.0
    %1728 = vmatprep.subr.mxu0 0.0
    %1729 = vmatpush1.xpose.msra.mxu0 0.0
    %1730 = vmatprep.subr.mxu0 0.0
    %1731 = vmatpush1.xpose.msra.mxu0 0.0
    %1732 = vmatprep.subr.mxu0 0.0
    %1733 = vmatpush1.xpose.msra.mxu0 0.0
    %1734 = vmatprep.subr.mxu0 0.0
    %1735 = vmatpush1.xpose.msra.mxu0 0.0
    %1736 = vmatprep.mubr.f32.mxu0 0.0
    %1737 = vmatmul.mubr.f32.gmra.mrb[0].mxu0 %v1668
    %v1738 = vpop.f32.mrb[0].mxu0
    %v1739 = vadd.f32 0.0, %v1738
    %v1740 = vpop.f32.mrb[0].mxu0
    %1741 = vdwg.mxu0
    %1742 = vrot.lane.b32.xlu0 %v295, 96
    %v1743 = vpop.permute.xlu0 %1742
    %1744 = vrot.lane.b32.xlu0 %v297, 96
    %v1745 = vpop.permute.xlu0 %1744
    %v1746 = vsel %vm358, %v1743, 0
    %v1748 = vsel %vm358, %v1745, 0
    %1750 = vmatprep.subr.mxu0 0.0
    %1751 = vmatpush1.xpose.msra.mxu0 %v1748
    %1752 = vmatprep.subr.mxu0 0.0
    %1753 = vmatpush1.xpose.msra.mxu0 0.0
    %1754 = vmatprep.subr.mxu0 0.0
    %1755 = vmatpush1.xpose.msra.mxu0 0.0
    %1756 = vmatprep.subr.mxu0 0.0
    %1757 = vmatpush1.xpose.msra.mxu0 0.0
    %1758 = vmatprep.subr.mxu0 0.0
    %1759 = vmatpush1.xpose.msra.mxu0 0.0
    %1760 = vmatprep.subr.mxu0 0.0
    %1761 = vmatpush1.xpose.msra.mxu0 0.0
    %1762 = vmatprep.subr.mxu0 0.0
    %1763 = vmatpush1.xpose.msra.mxu0 0.0
    %1764 = vmatprep.subr.mxu0 0.0
    %1765 = vmatpush1.xpose.msra.mxu0 0.0
    %1766 = vmatprep.subr.mxu0 0.0
    %1767 = vmatpush1.xpose.msra.mxu0 0.0
    %1768 = vmatprep.subr.mxu0 0.0
    %1769 = vmatpush1.xpose.msra.mxu0 0.0
    %1770 = vmatprep.subr.mxu0 0.0
    %1771 = vmatpush1.xpose.msra.mxu0 0.0
    %1772 = vmatprep.subr.mxu0 0.0
    %1773 = vmatpush1.xpose.msra.mxu0 0.0
    %1774 = vmatprep.subr.mxu0 0.0
    %1775 = vmatpush1.xpose.msra.mxu0 0.0
    %1776 = vmatprep.subr.mxu0 0.0
    %1777 = vmatpush1.xpose.msra.mxu0 0.0
    %1778 = vmatprep.subr.mxu0 0.0
    %1779 = vmatpush1.xpose.msra.mxu0 0.0
    %1780 = vmatprep.subr.mxu0 0.0
    %1781 = vmatpush1.xpose.msra.mxu0 0.0
    %1782 = vmatprep.subr.mxu0 0.0
    %1783 = vmatpush1.xpose.msra.mxu0 0.0
    %1784 = vmatprep.subr.mxu0 0.0
    %1785 = vmatpush1.xpose.msra.mxu0 0.0
    %1786 = vmatprep.subr.mxu0 0.0
    %1787 = vmatpush1.xpose.msra.mxu0 0.0
    %1788 = vmatprep.subr.mxu0 0.0
    %1789 = vmatpush1.xpose.msra.mxu0 0.0
    %1790 = vmatprep.subr.mxu0 0.0
    %1791 = vmatpush1.xpose.msra.mxu0 0.0
    %1792 = vmatprep.subr.mxu0 0.0
    %1793 = vmatpush1.xpose.msra.mxu0 0.0
    %1794 = vmatprep.subr.mxu0 0.0
    %1795 = vmatpush1.xpose.msra.mxu0 0.0
    %1796 = vmatprep.subr.mxu0 0.0
    %1797 = vmatpush1.xpose.msra.mxu0 0.0
    %1798 = vmatprep.subr.mxu0 0.0
    %1799 = vmatpush1.xpose.msra.mxu0 0.0
    %1800 = vmatprep.subr.mxu0 0.0
    %1801 = vmatpush1.xpose.msra.mxu0 0.0
    %1802 = vmatprep.subr.mxu0 0.0
    %1803 = vmatpush1.xpose.msra.mxu0 0.0
    %1804 = vmatprep.subr.mxu0 0.0
    %1805 = vmatpush1.xpose.msra.mxu0 0.0
    %1806 = vmatprep.subr.mxu0 0.0
    %1807 = vmatpush1.xpose.msra.mxu0 0.0
    %1808 = vmatprep.subr.mxu0 0.0
    %1809 = vmatpush1.xpose.msra.mxu0 0.0
    %1810 = vmatprep.subr.mxu0 0.0
    %1811 = vmatpush1.xpose.msra.mxu0 0.0
    %1812 = vmatprep.subr.mxu0 0.0
    %1813 = vmatpush1.xpose.msra.mxu0 0.0
    %1814 = vmatprep.mubr.f32.mxu0 0.0
    %1815 = vmatmul.mubr.f32.gmra.mrb[0].mxu0 %v1746
    %v1816 = vpop.f32.mrb[0].mxu0
    %v1817 = vadd.f32 0.0, %v1816
    %v1818 = vpop.f32.mrb[0].mxu0
    %1819 = vdwg.mxu0
    %1820 = vrot.lane.b32.xlu0 %v301, 96
    %v1821 = vpop.permute.xlu0 %1820
    %1822 = vrot.lane.b32.xlu0 %v303, 96
    %v1823 = vpop.permute.xlu0 %1822
    %v1824 = vsel %vm358, %v1821, 0
    %v1826 = vsel %vm358, %v1823, 0
    %1828 = vmatprep.subr.mxu0 0.0
    %1829 = vmatpush1.xpose.msra.mxu0 %v1826
    %1830 = vmatprep.subr.mxu0 0.0
    %1831 = vmatpush1.xpose.msra.mxu0 0.0
    %1832 = vmatprep.subr.mxu0 0.0
    %1833 = vmatpush1.xpose.msra.mxu0 0.0
    %1834 = vmatprep.subr.mxu0 0.0
    %1835 = vmatpush1.xpose.msra.mxu0 0.0
    %1836 = vmatprep.subr.mxu0 0.0
    %1837 = vmatpush1.xpose.msra.mxu0 0.0
    %1838 = vmatprep.subr.mxu0 0.0
    %1839 = vmatpush1.xpose.msra.mxu0 0.0
    %1840 = vmatprep.subr.mxu0 0.0
    %1841 = vmatpush1.xpose.msra.mxu0 0.0
    %1842 = vmatprep.subr.mxu0 0.0
    %1843 = vmatpush1.xpose.msra.mxu0 0.0
    %1844 = vmatprep.subr.mxu0 0.0
    %1845 = vmatpush1.xpose.msra.mxu0 0.0
    %1846 = vmatprep.subr.mxu0 0.0
    %1847 = vmatpush1.xpose.msra.mxu0 0.0
    %1848 = vmatprep.subr.mxu0 0.0
    %1849 = vmatpush1.xpose.msra.mxu0 0.0
    %1850 = vmatprep.subr.mxu0 0.0
    %1851 = vmatpush1.xpose.msra.mxu0 0.0
    %1852 = vmatprep.subr.mxu0 0.0
    %1853 = vmatpush1.xpose.msra.mxu0 0.0
    %1854 = vmatprep.subr.mxu0 0.0
    %1855 = vmatpush1.xpose.msra.mxu0 0.0
    %1856 = vmatprep.subr.mxu0 0.0
    %1857 = vmatpush1.xpose.msra.mxu0 0.0
    %1858 = vmatprep.subr.mxu0 0.0
    %1859 = vmatpush1.xpose.msra.mxu0 0.0
    %1860 = vmatprep.subr.mxu0 0.0
    %1861 = vmatpush1.xpose.msra.mxu0 0.0
    %1862 = vmatprep.subr.mxu0 0.0
    %1863 = vmatpush1.xpose.msra.mxu0 0.0
    %1864 = vmatprep.subr.mxu0 0.0
    %1865 = vmatpush1.xpose.msra.mxu0 0.0
    %1866 = vmatprep.subr.mxu0 0.0
    %1867 = vmatpush1.xpose.msra.mxu0 0.0
    %1868 = vmatprep.subr.mxu0 0.0
    %1869 = vmatpush1.xpose.msra.mxu0 0.0
    %1870 = vmatprep.subr.mxu0 0.0
    %1871 = vmatpush1.xpose.msra.mxu0 0.0
    %1872 = vmatprep.subr.mxu0 0.0
    %1873 = vmatpush1.xpose.msra.mxu0 0.0
    %1874 = vmatprep.subr.mxu0 0.0
    %1875 = vmatpush1.xpose.msra.mxu0 0.0
    %1876 = vmatprep.subr.mxu0 0.0
    %1877 = vmatpush1.xpose.msra.mxu0 0.0
    %1878 = vmatprep.subr.mxu0 0.0
    %1879 = vmatpush1.xpose.msra.mxu0 0.0
    %1880 = vmatprep.subr.mxu0 0.0
    %1881 = vmatpush1.xpose.msra.mxu0 0.0
    %1882 = vmatprep.subr.mxu0 0.0
    %1883 = vmatpush1.xpose.msra.mxu0 0.0
    %1884 = vmatprep.subr.mxu0 0.0
    %1885 = vmatpush1.xpose.msra.mxu0 0.0
    %1886 = vmatprep.subr.mxu0 0.0
    %1887 = vmatpush1.xpose.msra.mxu0 0.0
    %1888 = vmatprep.subr.mxu0 0.0
    %1889 = vmatpush1.xpose.msra.mxu0 0.0
    %1890 = vmatprep.subr.mxu0 0.0
    %1891 = vmatpush1.xpose.msra.mxu0 0.0
    %1892 = vmatprep.mubr.f32.mxu0 0.0
    %1893 = vmatmul.mubr.f32.gmra.mrb[0].mxu0 %v1824
    %v1894 = vpop.f32.mrb[0].mxu0
    %v1895 = vadd.f32 0.0, %v1894
    %v1896 = vpop.f32.mrb[0].mxu0
    %1897 = vdwg.mxu0
    %1898 = vrot.lane.b32.xlu0 %v305, 96
    %v1899 = vpop.permute.xlu0 %1898
    %1900 = vrot.lane.b32.xlu0 %v307, 96
    %v1901 = vpop.permute.xlu0 %1900
    %v1902 = vsel %vm358, %v1899, 0
    %v1904 = vsel %vm358, %v1901, 0
    %1906 = vmatprep.subr.mxu0 0.0
    %1907 = vmatpush1.xpose.msra.mxu0 %v1904
    %1908 = vmatprep.subr.mxu0 0.0
    %1909 = vmatpush1.xpose.msra.mxu0 0.0
    %1910 = vmatprep.subr.mxu0 0.0
    %1911 = vmatpush1.xpose.msra.mxu0 0.0
    %1912 = vmatprep.subr.mxu0 0.0
    %1913 = vmatpush1.xpose.msra.mxu0 0.0
    %1914 = vmatprep.subr.mxu0 0.0
    %1915 = vmatpush1.xpose.msra.mxu0 0.0
    %1916 = vmatprep.subr.mxu0 0.0
    %1917 = vmatpush1.xpose.msra.mxu0 0.0
    %1918 = vmatprep.subr.mxu0 0.0
    %1919 = vmatpush1.xpose.msra.mxu0 0.0
    %1920 = vmatprep.subr.mxu0 0.0
    %1921 = vmatpush1.xpose.msra.mxu0 0.0
    %1922 = vmatprep.subr.mxu0 0.0
    %1923 = vmatpush1.xpose.msra.mxu0 0.0
    %1924 = vmatprep.subr.mxu0 0.0
    %1925 = vmatpush1.xpose.msra.mxu0 0.0
    %1926 = vmatprep.subr.mxu0 0.0
    %1927 = vmatpush1.xpose.msra.mxu0 0.0
    %1928 = vmatprep.subr.mxu0 0.0
    %1929 = vmatpush1.xpose.msra.mxu0 0.0
    %1930 = vmatprep.subr.mxu0 0.0
    %1931 = vmatpush1.xpose.msra.mxu0 0.0
    %1932 = vmatprep.subr.mxu0 0.0
    %1933 = vmatpush1.xpose.msra.mxu0 0.0
    %1934 = vmatprep.subr.mxu0 0.0
    %1935 = vmatpush1.xpose.msra.mxu0 0.0
    %1936 = vmatprep.subr.mxu0 0.0
    %1937 = vmatpush1.xpose.msra.mxu0 0.0
    %1938 = vmatprep.subr.mxu0 0.0
    %1939 = vmatpush1.xpose.msra.mxu0 0.0
    %1940 = vmatprep.subr.mxu0 0.0
    %1941 = vmatpush1.xpose.msra.mxu0 0.0
    %1942 = vmatprep.subr.mxu0 0.0
    %1943 = vmatpush1.xpose.msra.mxu0 0.0
    %1944 = vmatprep.subr.mxu0 0.0
    %1945 = vmatpush1.xpose.msra.mxu0 0.0
    %1946 = vmatprep.subr.mxu0 0.0
    %1947 = vmatpush1.xpose.msra.mxu0 0.0
    %1948 = vmatprep.subr.mxu0 0.0
    %1949 = vmatpush1.xpose.msra.mxu0 0.0
    %1950 = vmatprep.subr.mxu0 0.0
    %1951 = vmatpush1.xpose.msra.mxu0 0.0
    %1952 = vmatprep.subr.mxu0 0.0
    %1953 = vmatpush1.xpose.msra.mxu0 0.0
    %1954 = vmatprep.subr.mxu0 0.0
    %1955 = vmatpush1.xpose.msra.mxu0 0.0
    %1956 = vmatprep.subr.mxu0 0.0
    %1957 = vmatpush1.xpose.msra.mxu0 0.0
    %1958 = vmatprep.subr.mxu0 0.0
    %1959 = vmatpush1.xpose.msra.mxu0 0.0
    %1960 = vmatprep.subr.mxu0 0.0
    %1961 = vmatpush1.xpose.msra.mxu0 0.0
    %1962 = vmatprep.subr.mxu0 0.0
    %1963 = vmatpush1.xpose.msra.mxu0 0.0
    %1964 = vmatprep.subr.mxu0 0.0
    %1965 = vmatpush1.xpose.msra.mxu0 0.0
    %1966 = vmatprep.subr.mxu0 0.0
    %1967 = vmatpush1.xpose.msra.mxu0 0.0
    %1968 = vmatprep.subr.mxu0 0.0
    %1969 = vmatpush1.xpose.msra.mxu0 0.0
    %1970 = vmatprep.mubr.f32.mxu0 0.0
    %1971 = vmatmul.mubr.f32.gmra.mrb[0].mxu0 %v1902
    %v1972 = vpop.f32.mrb[0].mxu0
    %v1973 = vadd.f32 0.0, %v1972
    %v1974 = vpop.f32.mrb[0].mxu0
    %1975 = vdwg.mxu0
    %v1976 = vsel %vm663, %v1739, -inf
    %1977 = vmax.xlane.f32.xlu0 %v1976
    %v1978 = vpop.xlane.xlu0 %1977
    %v1979 = vsel %vm663, %v1817, -inf
    %1980 = vmax.xlane.f32.xlu0 %v1979
    %v1981 = vpop.xlane.xlu0 %1980
    %v1982 = vsel %vm663, %v1895, -inf
    %1983 = vmax.xlane.f32.xlu0 %v1982
    %v1984 = vpop.xlane.xlu0 %1983
    %v1985 = vsel %vm663, %v1973, -inf
    %1986 = vmax.xlane.f32.xlu0 %v1985
    %v1987 = vpop.xlane.xlu0 %1986
    %v1988 = vsub.f32 %v1739, %v1978
    %v1989 = vsub.f32 %v1817, %v1981
    %v1990 = vsub.f32 %v1895, %v1984
    %v1991 = vsub.f32 %v1973, %v1987
    %v1992 = vmul.f32 %v1988, 1.442695
    %v1993 = vpow.pop %v1992
    %v1994 = vmul.f32 %v1989, 1.442695
    %v1995 = vpow.pop %v1994
    %v1996 = vmul.f32 %v1990, 1.442695
    %v1997 = vpow.pop %v1996
    %v1998 = vmul.f32 %v1991, 1.442695
    %v1999 = vpow.pop %v1998
    %v2000 = vsel %vm663, %v1993, 0.0
    %2001 = vadd.xlane.f32.xlu0 %v2000
    %v2002 = vpop.xlane.xlu0 %2001
    %v2003 = vsel %vm663, %v1995, 0.0
    %2004 = vadd.xlane.f32.xlu0 %v2003
    %v2005 = vpop.xlane.xlu0 %2004
    %v2006 = vsel %vm663, %v1997, 0.0
    %2007 = vadd.xlane.f32.xlu0 %v2006
    %v2008 = vpop.xlane.xlu0 %2007
    %v2009 = vsel %vm663, %v1999, 0.0
    %2010 = vadd.xlane.f32.xlu0 %v2009
    %v2011 = vpop.xlane.xlu0 %2010
    %v2012 = vrcp.pop %v2002
    %v2013 = vrcp.pop %v2005
    %v2014 = vrcp.pop %v2008
    %v2015 = vrcp.pop %v2011
    %v2016 = vmul.f32 %v1993, %v2012
    %v2017 = vmul.f32 %v1995, %v2013
    %v2018 = vmul.f32 %v1997, %v2014
    %v2019 = vmul.f32 %v1999, %v2015
    %2020 = vrot.lane.b32.xlu0 %v344, 96
    %v2021 = vpop.permute.xlu0 %2020
    %v2024 = vsel %vm663, %v2016, 0
    %2026 = vmatprep.subr.mxu0 0.0
    %2027 = vmatpush1.msra.mxu0 %v2021
    %2028 = vmatprep.subr.mxu0 0.0
    %2029 = vmatpush1.msra.mxu0 0.0
    %2030 = vmatprep.subr.mxu0 0.0
    %2031 = vmatpush1.msra.mxu0 0.0
    %2032 = vmatprep.subr.mxu0 0.0
    %2033 = vmatpush1.msra.mxu0 0.0
    %2034 = vmatprep.subr.mxu0 0.0
    %2035 = vmatpush1.msra.mxu0 0.0
    %2036 = vmatprep.subr.mxu0 0.0
    %2037 = vmatpush1.msra.mxu0 0.0
    %2038 = vmatprep.subr.mxu0 0.0
    %2039 = vmatpush1.msra.mxu0 0.0
    %2040 = vmatprep.subr.mxu0 0.0
    %2041 = vmatpush1.msra.mxu0 0.0
    %2042 = vmatprep.subr.mxu0 0.0
    %2043 = vmatpush1.msra.mxu0 0.0
    %2044 = vmatprep.subr.mxu0 0.0
    %2045 = vmatpush1.msra.mxu0 0.0
    %2046 = vmatprep.subr.mxu0 0.0
    %2047 = vmatpush1.msra.mxu0 0.0
    %2048 = vmatprep.subr.mxu0 0.0
    %2049 = vmatpush1.msra.mxu0 0.0
    %2050 = vmatprep.subr.mxu0 0.0
    %2051 = vmatpush1.msra.mxu0 0.0
    %2052 = vmatprep.subr.mxu0 0.0
    %2053 = vmatpush1.msra.mxu0 0.0
    %2054 = vmatprep.subr.mxu0 0.0
    %2055 = vmatpush1.msra.mxu0 0.0
    %2056 = vmatprep.subr.mxu0 0.0
    %2057 = vmatpush1.msra.mxu0 0.0
    %2058 = vmatprep.subr.mxu0 0.0
    %2059 = vmatpush1.msra.mxu0 0.0
    %2060 = vmatprep.subr.mxu0 0.0
    %2061 = vmatpush1.msra.mxu0 0.0
    %2062 = vmatprep.subr.mxu0 0.0
    %2063 = vmatpush1.msra.mxu0 0.0
    %2064 = vmatprep.subr.mxu0 0.0
    %2065 = vmatpush1.msra.mxu0 0.0
    %2066 = vmatprep.subr.mxu0 0.0
    %2067 = vmatpush1.msra.mxu0 0.0
    %2068 = vmatprep.subr.mxu0 0.0
    %2069 = vmatpush1.msra.mxu0 0.0
    %2070 = vmatprep.subr.mxu0 0.0
    %2071 = vmatpush1.msra.mxu0 0.0
    %2072 = vmatprep.subr.mxu0 0.0
    %2073 = vmatpush1.msra.mxu0 0.0
    %2074 = vmatprep.subr.mxu0 0.0
    %2075 = vmatpush1.msra.mxu0 0.0
    %2076 = vmatprep.subr.mxu0 0.0
    %2077 = vmatpush1.msra.mxu0 0.0
    %2078 = vmatprep.subr.mxu0 0.0
    %2079 = vmatpush1.msra.mxu0 0.0
    %2080 = vmatprep.subr.mxu0 0.0
    %2081 = vmatpush1.msra.mxu0 0.0
    %2082 = vmatprep.subr.mxu0 0.0
    %2083 = vmatpush1.msra.mxu0 0.0
    %2084 = vmatprep.subr.mxu0 0.0
    %2085 = vmatpush1.msra.mxu0 0.0
    %2086 = vmatprep.subr.mxu0 0.0
    %2087 = vmatpush1.msra.mxu0 0.0
    %2088 = vmatprep.subr.mxu0 0.0
    %2089 = vmatpush1.msra.mxu0 0.0
    %2090 = vmatprep.mubr.f32.mxu0 0.0
    %2091 = vmatmul.mubr.f32.gmra.mrb[0].mxu0 %v2024
    %v2092 = vpop.f32.mrb[0].mxu0
    %v2093 = vadd.f32 0.0, %v2092
    %v2094 = vpop.f32.mrb[0].mxu0
    %2095 = vdwg.mxu0
    %2096 = vrot.lane.b32.xlu0 %v347, 96
    %v2097 = vpop.permute.xlu0 %2096
    %v2100 = vsel %vm663, %v2017, 0
    %2102 = vmatprep.subr.mxu0 0.0
    %2103 = vmatpush1.msra.mxu0 %v2097
    %2104 = vmatprep.subr.mxu0 0.0
    %2105 = vmatpush1.msra.mxu0 0.0
    %2106 = vmatprep.subr.mxu0 0.0
    %2107 = vmatpush1.msra.mxu0 0.0
    %2108 = vmatprep.subr.mxu0 0.0
    %2109 = vmatpush1.msra.mxu0 0.0
    %2110 = vmatprep.subr.mxu0 0.0
    %2111 = vmatpush1.msra.mxu0 0.0
    %2112 = vmatprep.subr.mxu0 0.0
    %2113 = vmatpush1.msra.mxu0 0.0
    %2114 = vmatprep.subr.mxu0 0.0
    %2115 = vmatpush1.msra.mxu0 0.0
    %2116 = vmatprep.subr.mxu0 0.0
    %2117 = vmatpush1.msra.mxu0 0.0
    %2118 = vmatprep.subr.mxu0 0.0
    %2119 = vmatpush1.msra.mxu0 0.0
    %2120 = vmatprep.subr.mxu0 0.0
    %2121 = vmatpush1.msra.mxu0 0.0
    %2122 = vmatprep.subr.mxu0 0.0
    %2123 = vmatpush1.msra.mxu0 0.0
    %2124 = vmatprep.subr.mxu0 0.0
    %2125 = vmatpush1.msra.mxu0 0.0
    %2126 = vmatprep.subr.mxu0 0.0
    %2127 = vmatpush1.msra.mxu0 0.0
    %2128 = vmatprep.subr.mxu0 0.0
    %2129 = vmatpush1.msra.mxu0 0.0
    %2130 = vmatprep.subr.mxu0 0.0
    %2131 = vmatpush1.msra.mxu0 0.0
    %2132 = vmatprep.subr.mxu0 0.0
    %2133 = vmatpush1.msra.mxu0 0.0
    %2134 = vmatprep.subr.mxu0 0.0
    %2135 = vmatpush1.msra.mxu0 0.0
    %2136 = vmatprep.subr.mxu0 0.0
    %2137 = vmatpush1.msra.mxu0 0.0
    %2138 = vmatprep.subr.mxu0 0.0
    %2139 = vmatpush1.msra.mxu0 0.0
    %2140 = vmatprep.subr.mxu0 0.0
    %2141 = vmatpush1.msra.mxu0 0.0
    %2142 = vmatprep.subr.mxu0 0.0
    %2143 = vmatpush1.msra.mxu0 0.0
    %2144 = vmatprep.subr.mxu0 0.0
    %2145 = vmatpush1.msra.mxu0 0.0
    %2146 = vmatprep.subr.mxu0 0.0
    %2147 = vmatpush1.msra.mxu0 0.0
    %2148 = vmatprep.subr.mxu0 0.0
    %2149 = vmatpush1.msra.mxu0 0.0
    %2150 = vmatprep.subr.mxu0 0.0
    %2151 = vmatpush1.msra.mxu0 0.0
    %2152 = vmatprep.subr.mxu0 0.0
    %2153 = vmatpush1.msra.mxu0 0.0
    %2154 = vmatprep.subr.mxu0 0.0
    %2155 = vmatpush1.msra.mxu0 0.0
    %2156 = vmatprep.subr.mxu0 0.0
    %2157 = vmatpush1.msra.mxu0 0.0
    %2158 = vmatprep.subr.mxu0 0.0
    %2159 = vmatpush1.msra.mxu0 0.0
    %2160 = vmatprep.subr.mxu0 0.0
    %2161 = vmatpush1.msra.mxu0 0.0
    %2162 = vmatprep.subr.mxu0 0.0
    %2163 = vmatpush1.msra.mxu0 0.0
    %2164 = vmatprep.subr.mxu0 0.0
    %2165 = vmatpush1.msra.mxu0 0.0
    %2166 = vmatprep.mubr.f32.mxu0 0.0
    %2167 = vmatmul.mubr.f32.gmra.mrb[0].mxu0 %v2100
    %v2168 = vpop.f32.mrb[0].mxu0
    %v2169 = vadd.f32 0.0, %v2168
    %v2170 = vpop.f32.mrb[0].mxu0
    %2171 = vdwg.mxu0
    %2172 = vrot.lane.b32.xlu0 %v352, 96
    %v2173 = vpop.permute.xlu0 %2172
    %v2176 = vsel %vm663, %v2018, 0
    %2178 = vmatprep.subr.mxu0 0.0
    %2179 = vmatpush1.msra.mxu0 %v2173
    %2180 = vmatprep.subr.mxu0 0.0
    %2181 = vmatpush1.msra.mxu0 0.0
    %2182 = vmatprep.subr.mxu0 0.0
    %2183 = vmatpush1.msra.mxu0 0.0
    %2184 = vmatprep.subr.mxu0 0.0
    %2185 = vmatpush1.msra.mxu0 0.0
    %2186 = vmatprep.subr.mxu0 0.0
    %2187 = vmatpush1.msra.mxu0 0.0
    %2188 = vmatprep.subr.mxu0 0.0
    %2189 = vmatpush1.msra.mxu0 0.0
    %2190 = vmatprep.subr.mxu0 0.0
    %2191 = vmatpush1.msra.mxu0 0.0
    %2192 = vmatprep.subr.mxu0 0.0
    %2193 = vmatpush1.msra.mxu0 0.0
    %2194 = vmatprep.subr.mxu0 0.0
    %2195 = vmatpush1.msra.mxu0 0.0
    %2196 = vmatprep.subr.mxu0 0.0
    %2197 = vmatpush1.msra.mxu0 0.0
    %2198 = vmatprep.subr.mxu0 0.0
    %2199 = vmatpush1.msra.mxu0 0.0
    %2200 = vmatprep.subr.mxu0 0.0
    %2201 = vmatpush1.msra.mxu0 0.0
    %2202 = vmatprep.subr.mxu0 0.0
    %2203 = vmatpush1.msra.mxu0 0.0
    %2204 = vmatprep.subr.mxu0 0.0
    %2205 = vmatpush1.msra.mxu0 0.0
    %2206 = vmatprep.subr.mxu0 0.0
    %2207 = vmatpush1.msra.mxu0 0.0
    %2208 = vmatprep.subr.mxu0 0.0
    %2209 = vmatpush1.msra.mxu0 0.0
    %2210 = vmatprep.subr.mxu0 0.0
    %2211 = vmatpush1.msra.mxu0 0.0
    %2212 = vmatprep.subr.mxu0 0.0
    %2213 = vmatpush1.msra.mxu0 0.0
    %2214 = vmatprep.subr.mxu0 0.0
    %2215 = vmatpush1.msra.mxu0 0.0
    %2216 = vmatprep.subr.mxu0 0.0
    %2217 = vmatpush1.msra.mxu0 0.0
    %2218 = vmatprep.subr.mxu0 0.0
    %2219 = vmatpush1.msra.mxu0 0.0
    %2220 = vmatprep.subr.mxu0 0.0
    %2221 = vmatpush1.msra.mxu0 0.0
    %2222 = vmatprep.subr.mxu0 0.0
    %2223 = vmatpush1.msra.mxu0 0.0
    %2224 = vmatprep.subr.mxu0 0.0
    %2225 = vmatpush1.msra.mxu0 0.0
    %2226 = vmatprep.subr.mxu0 0.0
    %2227 = vmatpush1.msra.mxu0 0.0
    %2228 = vmatprep.subr.mxu0 0.0
    %2229 = vmatpush1.msra.mxu0 0.0
    %2230 = vmatprep.subr.mxu0 0.0
    %2231 = vmatpush1.msra.mxu0 0.0
    %2232 = vmatprep.subr.mxu0 0.0
    %2233 = vmatpush1.msra.mxu0 0.0
    %2234 = vmatprep.subr.mxu0 0.0
    %2235 = vmatpush1.msra.mxu0 0.0
    %2236 = vmatprep.subr.mxu0 0.0
    %2237 = vmatpush1.msra.mxu0 0.0
    %2238 = vmatprep.subr.mxu0 0.0
    %2239 = vmatpush1.msra.mxu0 0.0
    %2240 = vmatprep.subr.mxu0 0.0
    %2241 = vmatpush1.msra.mxu0 0.0
    %2242 = vmatprep.mubr.f32.mxu0 0.0
    %2243 = vmatmul.mubr.f32.gmra.mrb[0].mxu0 %v2176
    %v2244 = vpop.f32.mrb[0].mxu0
    %v2245 = vadd.f32 0.0, %v2244
    %v2246 = vpop.f32.mrb[0].mxu0
    %2247 = vdwg.mxu0
    %2248 = vrot.lane.b32.xlu0 %v355, 96
    %v2249 = vpop.permute.xlu0 %2248
    %v2252 = vsel %vm663, %v2019, 0
    %2254 = vmatprep.subr.mxu0 0.0
    %2255 = vmatpush1.msra.mxu0 %v2249
    %2256 = vmatprep.subr.mxu0 0.0
    %2257 = vmatpush1.msra.mxu0 0.0
    %2258 = vmatprep.subr.mxu0 0.0
    %2259 = vmatpush1.msra.mxu0 0.0
    %2260 = vmatprep.subr.mxu0 0.0
    %2261 = vmatpush1.msra.mxu0 0.0
    %2262 = vmatprep.subr.mxu0 0.0
    %2263 = vmatpush1.msra.mxu0 0.0
    %2264 = vmatprep.subr.mxu0 0.0
    %2265 = vmatpush1.msra.mxu0 0.0
    %2266 = vmatprep.subr.mxu0 0.0
    %2267 = vmatpush1.msra.mxu0 0.0
    %2268 = vmatprep.subr.mxu0 0.0
    %2269 = vmatpush1.msra.mxu0 0.0
    %2270 = vmatprep.subr.mxu0 0.0
    %2271 = vmatpush1.msra.mxu0 0.0
    %2272 = vmatprep.subr.mxu0 0.0
    %2273 = vmatpush1.msra.mxu0 0.0
    %2274 = vmatprep.subr.mxu0 0.0
    %2275 = vmatpush1.msra.mxu0 0.0
    %2276 = vmatprep.subr.mxu0 0.0
    %2277 = vmatpush1.msra.mxu0 0.0
    %2278 = vmatprep.subr.mxu0 0.0
    %2279 = vmatpush1.msra.mxu0 0.0
    %2280 = vmatprep.subr.mxu0 0.0
    %2281 = vmatpush1.msra.mxu0 0.0
    %2282 = vmatprep.subr.mxu0 0.0
    %2283 = vmatpush1.msra.mxu0 0.0
    %2284 = vmatprep.subr.mxu0 0.0
    %2285 = vmatpush1.msra.mxu0 0.0
    %2286 = vmatprep.subr.mxu0 0.0
    %2287 = vmatpush1.msra.mxu0 0.0
    %2288 = vmatprep.subr.mxu0 0.0
    %2289 = vmatpush1.msra.mxu0 0.0
    %2290 = vmatprep.subr.mxu0 0.0
    %2291 = vmatpush1.msra.mxu0 0.0
    %2292 = vmatprep.subr.mxu0 0.0
    %2293 = vmatpush1.msra.mxu0 0.0
    %2294 = vmatprep.subr.mxu0 0.0
    %2295 = vmatpush1.msra.mxu0 0.0
    %2296 = vmatprep.subr.mxu0 0.0
    %2297 = vmatpush1.msra.mxu0 0.0
    %2298 = vmatprep.subr.mxu0 0.0
    %2299 = vmatpush1.msra.mxu0 0.0
    %2300 = vmatprep.subr.mxu0 0.0
    %2301 = vmatpush1.msra.mxu0 0.0
    %2302 = vmatprep.subr.mxu0 0.0
    %2303 = vmatpush1.msra.mxu0 0.0
    %2304 = vmatprep.subr.mxu0 0.0
    %2305 = vmatpush1.msra.mxu0 0.0
    %2306 = vmatprep.subr.mxu0 0.0
    %2307 = vmatpush1.msra.mxu0 0.0
    %2308 = vmatprep.subr.mxu0 0.0
    %2309 = vmatpush1.msra.mxu0 0.0
    %2310 = vmatprep.subr.mxu0 0.0
    %2311 = vmatpush1.msra.mxu0 0.0
    %2312 = vmatprep.subr.mxu0 0.0
    %2313 = vmatpush1.msra.mxu0 0.0
    %2314 = vmatprep.subr.mxu0 0.0
    %2315 = vmatpush1.msra.mxu0 0.0
    %2316 = vmatprep.subr.mxu0 0.0
    %2317 = vmatpush1.msra.mxu0 0.0
    %2318 = vmatprep.mubr.f32.mxu0 0.0
    %2319 = vmatmul.mubr.f32.gmra.mrb[0].mxu0 %v2252
    %v2320 = vpop.f32.mrb[0].mxu0
    %v2321 = vadd.f32 0.0, %v2320
    %v2322 = vpop.f32.mrb[0].mxu0
    %2323 = vdwg.mxu0
    %2324 = vrot.lane.b32.xlu0 %v291, 80
    %v2325 = vpop.permute.xlu0 %2324
    %2326 = vrot.lane.b32.xlu0 %v293, 80
    %v2327 = vpop.permute.xlu0 %2326
    %v2328 = vsel %vm358, %v2325, 0
    %v2330 = vsel %vm358, %v2327, 0
    %2332 = vmatprep.subr.mxu0 0.0
    %2333 = vmatpush1.xpose.msra.mxu0 %v2330
    %2334 = vmatprep.subr.mxu0 0.0
    %2335 = vmatpush1.xpose.msra.mxu0 0.0
    %2336 = vmatprep.subr.mxu0 0.0
    %2337 = vmatpush1.xpose.msra.mxu0 0.0
    %2338 = vmatprep.subr.mxu0 0.0
    %2339 = vmatpush1.xpose.msra.mxu0 0.0
    %2340 = vmatprep.subr.mxu0 0.0
    %2341 = vmatpush1.xpose.msra.mxu0 0.0
    %2342 = vmatprep.subr.mxu0 0.0
    %2343 = vmatpush1.xpose.msra.mxu0 0.0
    %2344 = vmatprep.subr.mxu0 0.0
    %2345 = vmatpush1.xpose.msra.mxu0 0.0
    %2346 = vmatprep.subr.mxu0 0.0
    %2347 = vmatpush1.xpose.msra.mxu0 0.0
    %2348 = vmatprep.subr.mxu0 0.0
    %2349 = vmatpush1.xpose.msra.mxu0 0.0
    %2350 = vmatprep.subr.mxu0 0.0
    %2351 = vmatpush1.xpose.msra.mxu0 0.0
    %2352 = vmatprep.subr.mxu0 0.0
    %2353 = vmatpush1.xpose.msra.mxu0 0.0
    %2354 = vmatprep.subr.mxu0 0.0
    %2355 = vmatpush1.xpose.msra.mxu0 0.0
    %2356 = vmatprep.subr.mxu0 0.0
    %2357 = vmatpush1.xpose.msra.mxu0 0.0
    %2358 = vmatprep.subr.mxu0 0.0
    %2359 = vmatpush1.xpose.msra.mxu0 0.0
    %2360 = vmatprep.subr.mxu0 0.0
    %2361 = vmatpush1.xpose.msra.mxu0 0.0
    %2362 = vmatprep.subr.mxu0 0.0
    %2363 = vmatpush1.xpose.msra.mxu0 0.0
    %2364 = vmatprep.subr.mxu0 0.0
    %2365 = vmatpush1.xpose.msra.mxu0 0.0
    %2366 = vmatprep.subr.mxu0 0.0
    %2367 = vmatpush1.xpose.msra.mxu0 0.0
    %2368 = vmatprep.subr.mxu0 0.0
    %2369 = vmatpush1.xpose.msra.mxu0 0.0
    %2370 = vmatprep.subr.mxu0 0.0
    %2371 = vmatpush1.xpose.msra.mxu0 0.0
    %2372 = vmatprep.subr.mxu0 0.0
    %2373 = vmatpush1.xpose.msra.mxu0 0.0
    %2374 = vmatprep.subr.mxu0 0.0
    %2375 = vmatpush1.xpose.msra.mxu0 0.0
    %2376 = vmatprep.subr.mxu0 0.0
    %2377 = vmatpush1.xpose.msra.mxu0 0.0
    %2378 = vmatprep.subr.mxu0 0.0
    %2379 = vmatpush1.xpose.msra.mxu0 0.0
    %2380 = vmatprep.subr.mxu0 0.0
    %2381 = vmatpush1.xpose.msra.mxu0 0.0
    %2382 = vmatprep.subr.mxu0 0.0
    %2383 = vmatpush1.xpose.msra.mxu0 0.0
    %2384 = vmatprep.subr.mxu0 0.0
    %2385 = vmatpush1.xpose.msra.mxu0 0.0
    %2386 = vmatprep.subr.mxu0 0.0
    %2387 = vmatpush1.xpose.msra.mxu0 0.0
    %2388 = vmatprep.subr.mxu0 0.0
    %2389 = vmatpush1.xpose.msra.mxu0 0.0
    %2390 = vmatprep.subr.mxu0 0.0
    %2391 = vmatpush1.xpose.msra.mxu0 0.0
    %2392 = vmatprep.subr.mxu0 0.0
    %2393 = vmatpush1.xpose.msra.mxu0 0.0
    %2394 = vmatprep.subr.mxu0 0.0
    %2395 = vmatpush1.xpose.msra.mxu0 0.0
    %2396 = vmatprep.mubr.f32.mxu0 0.0
    %2397 = vmatmul.mubr.f32.gmra.mrb[0].mxu0 %v2328
    %v2398 = vpop.f32.mrb[0].mxu0
    %v2399 = vadd.f32 0.0, %v2398
    %v2400 = vpop.f32.mrb[0].mxu0
    %2401 = vdwg.mxu0
    %2402 = vrot.lane.b32.xlu0 %v295, 80
    %v2403 = vpop.permute.xlu0 %2402
    %2404 = vrot.lane.b32.xlu0 %v297, 80
    %v2405 = vpop.permute.xlu0 %2404
    %v2406 = vsel %vm358, %v2403, 0
    %v2408 = vsel %vm358, %v2405, 0
    %2410 = vmatprep.subr.mxu0 0.0
    %2411 = vmatpush1.xpose.msra.mxu0 %v2408
    %2412 = vmatprep.subr.mxu0 0.0
    %2413 = vmatpush1.xpose.msra.mxu0 0.0
    %2414 = vmatprep.subr.mxu0 0.0
    %2415 = vmatpush1.xpose.msra.mxu0 0.0
    %2416 = vmatprep.subr.mxu0 0.0
    %2417 = vmatpush1.xpose.msra.mxu0 0.0
    %2418 = vmatprep.subr.mxu0 0.0
    %2419 = vmatpush1.xpose.msra.mxu0 0.0
    %2420 = vmatprep.subr.mxu0 0.0
    %2421 = vmatpush1.xpose.msra.mxu0 0.0
    %2422 = vmatprep.subr.mxu0 0.0
    %2423 = vmatpush1.xpose.msra.mxu0 0.0
    %2424 = vmatprep.subr.mxu0 0.0
    %2425 = vmatpush1.xpose.msra.mxu0 0.0
    %2426 = vmatprep.subr.mxu0 0.0
    %2427 = vmatpush1.xpose.msra.mxu0 0.0
    %2428 = vmatprep.subr.mxu0 0.0
    %2429 = vmatpush1.xpose.msra.mxu0 0.0
    %2430 = vmatprep.subr.mxu0 0.0
    %2431 = vmatpush1.xpose.msra.mxu0 0.0
    %2432 = vmatprep.subr.mxu0 0.0
    %2433 = vmatpush1.xpose.msra.mxu0 0.0
    %2434 = vmatprep.subr.mxu0 0.0
    %2435 = vmatpush1.xpose.msra.mxu0 0.0
    %2436 = vmatprep.subr.mxu0 0.0
    %2437 = vmatpush1.xpose.msra.mxu0 0.0
    %2438 = vmatprep.subr.mxu0 0.0
    %2439 = vmatpush1.xpose.msra.mxu0 0.0
    %2440 = vmatprep.subr.mxu0 0.0
    %2441 = vmatpush1.xpose.msra.mxu0 0.0
    %2442 = vmatprep.subr.mxu0 0.0
    %2443 = vmatpush1.xpose.msra.mxu0 0.0
    %2444 = vmatprep.subr.mxu0 0.0
    %2445 = vmatpush1.xpose.msra.mxu0 0.0
    %2446 = vmatprep.subr.mxu0 0.0
    %2447 = vmatpush1.xpose.msra.mxu0 0.0
    %2448 = vmatprep.subr.mxu0 0.0
    %2449 = vmatpush1.xpose.msra.mxu0 0.0
    %2450 = vmatprep.subr.mxu0 0.0
    %2451 = vmatpush1.xpose.msra.mxu0 0.0
    %2452 = vmatprep.subr.mxu0 0.0
    %2453 = vmatpush1.xpose.msra.mxu0 0.0
    %2454 = vmatprep.subr.mxu0 0.0
    %2455 = vmatpush1.xpose.msra.mxu0 0.0
    %2456 = vmatprep.subr.mxu0 0.0
    %2457 = vmatpush1.xpose.msra.mxu0 0.0
    %2458 = vmatprep.subr.mxu0 0.0
    %2459 = vmatpush1.xpose.msra.mxu0 0.0
    %2460 = vmatprep.subr.mxu0 0.0
    %2461 = vmatpush1.xpose.msra.mxu0 0.0
    %2462 = vmatprep.subr.mxu0 0.0
    %2463 = vmatpush1.xpose.msra.mxu0 0.0
    %2464 = vmatprep.subr.mxu0 0.0
    %2465 = vmatpush1.xpose.msra.mxu0 0.0
    %2466 = vmatprep.subr.mxu0 0.0
    %2467 = vmatpush1.xpose.msra.mxu0 0.0
    %2468 = vmatprep.subr.mxu0 0.0
    %2469 = vmatpush1.xpose.msra.mxu0 0.0
    %2470 = vmatprep.subr.mxu0 0.0
    %2471 = vmatpush1.xpose.msra.mxu0 0.0
    %2472 = vmatprep.subr.mxu0 0.0
    %2473 = vmatpush1.xpose.msra.mxu0 0.0
    %2474 = vmatprep.mubr.f32.mxu0 0.0
    %2475 = vmatmul.mubr.f32.gmra.mrb[0].mxu0 %v2406
    %v2476 = vpop.f32.mrb[0].mxu0
    %v2477 = vadd.f32 0.0, %v2476
    %v2478 = vpop.f32.mrb[0].mxu0
    %2479 = vdwg.mxu0
    %2480 = vrot.lane.b32.xlu0 %v301, 80
    %v2481 = vpop.permute.xlu0 %2480
    %2482 = vrot.lane.b32.xlu0 %v303, 80
    %v2483 = vpop.permute.xlu0 %2482
    %v2484 = vsel %vm358, %v2481, 0
    %v2486 = vsel %vm358, %v2483, 0
    %2488 = vmatprep.subr.mxu0 0.0
    %2489 = vmatpush1.xpose.msra.mxu0 %v2486
    %2490 = vmatprep.subr.mxu0 0.0
    %2491 = vmatpush1.xpose.msra.mxu0 0.0
    %2492 = vmatprep.subr.mxu0 0.0
    %2493 = vmatpush1.xpose.msra.mxu0 0.0
    %2494 = vmatprep.subr.mxu0 0.0
    %2495 = vmatpush1.xpose.msra.mxu0 0.0
    %2496 = vmatprep.subr.mxu0 0.0
    %2497 = vmatpush1.xpose.msra.mxu0 0.0
    %2498 = vmatprep.subr.mxu0 0.0
    %2499 = vmatpush1.xpose.msra.mxu0 0.0
    %2500 = vmatprep.subr.mxu0 0.0
    %2501 = vmatpush1.xpose.msra.mxu0 0.0
    %2502 = vmatprep.subr.mxu0 0.0
    %2503 = vmatpush1.xpose.msra.mxu0 0.0
    %2504 = vmatprep.subr.mxu0 0.0
    %2505 = vmatpush1.xpose.msra.mxu0 0.0
    %2506 = vmatprep.subr.mxu0 0.0
    %2507 = vmatpush1.xpose.msra.mxu0 0.0
    %2508 = vmatprep.subr.mxu0 0.0
    %2509 = vmatpush1.xpose.msra.mxu0 0.0
    %2510 = vmatprep.subr.mxu0 0.0
    %2511 = vmatpush1.xpose.msra.mxu0 0.0
    %2512 = vmatprep.subr.mxu0 0.0
    %2513 = vmatpush1.xpose.msra.mxu0 0.0
    %2514 = vmatprep.subr.mxu0 0.0
    %2515 = vmatpush1.xpose.msra.mxu0 0.0
    %2516 = vmatprep.subr.mxu0 0.0
    %2517 = vmatpush1.xpose.msra.mxu0 0.0
    %2518 = vmatprep.subr.mxu0 0.0
    %2519 = vmatpush1.xpose.msra.mxu0 0.0
    %2520 = vmatprep.subr.mxu0 0.0
    %2521 = vmatpush1.xpose.msra.mxu0 0.0
    %2522 = vmatprep.subr.mxu0 0.0
    %2523 = vmatpush1.xpose.msra.mxu0 0.0
    %2524 = vmatprep.subr.mxu0 0.0
    %2525 = vmatpush1.xpose.msra.mxu0 0.0
    %2526 = vmatprep.subr.mxu0 0.0
    %2527 = vmatpush1.xpose.msra.mxu0 0.0
    %2528 = vmatprep.subr.mxu0 0.0
    %2529 = vmatpush1.xpose.msra.mxu0 0.0
    %2530 = vmatprep.subr.mxu0 0.0
    %2531 = vmatpush1.xpose.msra.mxu0 0.0
    %2532 = vmatprep.subr.mxu0 0.0
    %2533 = vmatpush1.xpose.msra.mxu0 0.0
    %2534 = vmatprep.subr.mxu0 0.0
    %2535 = vmatpush1.xpose.msra.mxu0 0.0
    %2536 = vmatprep.subr.mxu0 0.0
    %2537 = vmatpush1.xpose.msra.mxu0 0.0
    %2538 = vmatprep.subr.mxu0 0.0
    %2539 = vmatpush1.xpose.msra.mxu0 0.0
    %2540 = vmatprep.subr.mxu0 0.0
    %2541 = vmatpush1.xpose.msra.mxu0 0.0
    %2542 = vmatprep.subr.mxu0 0.0
    %2543 = vmatpush1.xpose.msra.mxu0 0.0
    %2544 = vmatprep.subr.mxu0 0.0
    %2545 = vmatpush1.xpose.msra.mxu0 0.0
    %2546 = vmatprep.subr.mxu0 0.0
    %2547 = vmatpush1.xpose.msra.mxu0 0.0
    %2548 = vmatprep.subr.mxu0 0.0
    %2549 = vmatpush1.xpose.msra.mxu0 0.0
    %2550 = vmatprep.subr.mxu0 0.0
    %2551 = vmatpush1.xpose.msra.mxu0 0.0
    %2552 = vmatprep.mubr.f32.mxu0 0.0
    %2553 = vmatmul.mubr.f32.gmra.mrb[0].mxu0 %v2484
    %v2554 = vpop.f32.mrb[0].mxu0
    %v2555 = vadd.f32 0.0, %v2554
    %v2556 = vpop.f32.mrb[0].mxu0
    %2557 = vdwg.mxu0
    %2558 = vrot.lane.b32.xlu0 %v305, 80
    %v2559 = vpop.permute.xlu0 %2558
    %2560 = vrot.lane.b32.xlu0 %v307, 80
    %v2561 = vpop.permute.xlu0 %2560
    %v2562 = vsel %vm358, %v2559, 0
    %v2564 = vsel %vm358, %v2561, 0
    %2566 = vmatprep.subr.mxu0 0.0
    %2567 = vmatpush1.xpose.msra.mxu0 %v2564
    %2568 = vmatprep.subr.mxu0 0.0
    %2569 = vmatpush1.xpose.msra.mxu0 0.0
    %2570 = vmatprep.subr.mxu0 0.0
    %2571 = vmatpush1.xpose.msra.mxu0 0.0
    %2572 = vmatprep.subr.mxu0 0.0
    %2573 = vmatpush1.xpose.msra.mxu0 0.0
    %2574 = vmatprep.subr.mxu0 0.0
    %2575 = vmatpush1.xpose.msra.mxu0 0.0
    %2576 = vmatprep.subr.mxu0 0.0
    %2577 = vmatpush1.xpose.msra.mxu0 0.0
    %2578 = vmatprep.subr.mxu0 0.0
    %2579 = vmatpush1.xpose.msra.mxu0 0.0
    %2580 = vmatprep.subr.mxu0 0.0
    %2581 = vmatpush1.xpose.msra.mxu0 0.0
    %2582 = vmatprep.subr.mxu0 0.0
    %2583 = vmatpush1.xpose.msra.mxu0 0.0
    %2584 = vmatprep.subr.mxu0 0.0
    %2585 = vmatpush1.xpose.msra.mxu0 0.0
    %2586 = vmatprep.subr.mxu0 0.0
    %2587 = vmatpush1.xpose.msra.mxu0 0.0
    %2588 = vmatprep.subr.mxu0 0.0
    %2589 = vmatpush1.xpose.msra.mxu0 0.0
    %2590 = vmatprep.subr.mxu0 0.0
    %2591 = vmatpush1.xpose.msra.mxu0 0.0
    %2592 = vmatprep.subr.mxu0 0.0
    %2593 = vmatpush1.xpose.msra.mxu0 0.0
    %2594 = vmatprep.subr.mxu0 0.0
    %2595 = vmatpush1.xpose.msra.mxu0 0.0
    %2596 = vmatprep.subr.mxu0 0.0
    %2597 = vmatpush1.xpose.msra.mxu0 0.0
    %2598 = vmatprep.subr.mxu0 0.0
    %2599 = vmatpush1.xpose.msra.mxu0 0.0
    %2600 = vmatprep.subr.mxu0 0.0
    %2601 = vmatpush1.xpose.msra.mxu0 0.0
    %2602 = vmatprep.subr.mxu0 0.0
    %2603 = vmatpush1.xpose.msra.mxu0 0.0
    %2604 = vmatprep.subr.mxu0 0.0
    %2605 = vmatpush1.xpose.msra.mxu0 0.0
    %2606 = vmatprep.subr.mxu0 0.0
    %2607 = vmatpush1.xpose.msra.mxu0 0.0
    %2608 = vmatprep.subr.mxu0 0.0
    %2609 = vmatpush1.xpose.msra.mxu0 0.0
    %2610 = vmatprep.subr.mxu0 0.0
    %2611 = vmatpush1.xpose.msra.mxu0 0.0
    %2612 = vmatprep.subr.mxu0 0.0
    %2613 = vmatpush1.xpose.msra.mxu0 0.0
    %2614 = vmatprep.subr.mxu0 0.0
    %2615 = vmatpush1.xpose.msra.mxu0 0.0
    %2616 = vmatprep.subr.mxu0 0.0
    %2617 = vmatpush1.xpose.msra.mxu0 0.0
    %2618 = vmatprep.subr.mxu0 0.0
    %2619 = vmatpush1.xpose.msra.mxu0 0.0
    %2620 = vmatprep.subr.mxu0 0.0
    %2621 = vmatpush1.xpose.msra.mxu0 0.0
    %2622 = vmatprep.subr.mxu0 0.0
    %2623 = vmatpush1.xpose.msra.mxu0 0.0
    %2624 = vmatprep.subr.mxu0 0.0
    %2625 = vmatpush1.xpose.msra.mxu0 0.0
    %2626 = vmatprep.subr.mxu0 0.0
    %2627 = vmatpush1.xpose.msra.mxu0 0.0
    %2628 = vmatprep.subr.mxu0 0.0
    %2629 = vmatpush1.xpose.msra.mxu0 0.0
    %2630 = vmatprep.mubr.f32.mxu0 0.0
    %2631 = vmatmul.mubr.f32.gmra.mrb[0].mxu0 %v2562
    %v2632 = vpop.f32.mrb[0].mxu0
    %v2633 = vadd.f32 0.0, %v2632
    %v2634 = vpop.f32.mrb[0].mxu0
    %2635 = vdwg.mxu0
    %v2636 = vsel %vm663, %v2399, -inf
    %2637 = vmax.xlane.f32.xlu0 %v2636
    %v2638 = vpop.xlane.xlu0 %2637
    %v2639 = vsel %vm663, %v2477, -inf
    %2640 = vmax.xlane.f32.xlu0 %v2639
    %v2641 = vpop.xlane.xlu0 %2640
    %v2642 = vsel %vm663, %v2555, -inf
    %2643 = vmax.xlane.f32.xlu0 %v2642
    %v2644 = vpop.xlane.xlu0 %2643
    %v2645 = vsel %vm663, %v2633, -inf
    %2646 = vmax.xlane.f32.xlu0 %v2645
    %v2647 = vpop.xlane.xlu0 %2646
    %v2648 = vsub.f32 %v2399, %v2638
    %v2649 = vsub.f32 %v2477, %v2641
    %v2650 = vsub.f32 %v2555, %v2644
    %v2651 = vsub.f32 %v2633, %v2647
    %v2652 = vmul.f32 %v2648, 1.442695
    %v2653 = vpow.pop %v2652
    %v2654 = vmul.f32 %v2649, 1.442695
    %v2655 = vpow.pop %v2654
    %v2656 = vmul.f32 %v2650, 1.442695
    %v2657 = vpow.pop %v2656
    %v2658 = vmul.f32 %v2651, 1.442695
    %v2659 = vpow.pop %v2658
    %v2660 = vsel %vm663, %v2653, 0.0
    %2661 = vadd.xlane.f32.xlu0 %v2660
    %v2662 = vpop.xlane.xlu0 %2661
    %v2663 = vsel %vm663, %v2655, 0.0
    %2664 = vadd.xlane.f32.xlu0 %v2663
    %v2665 = vpop.xlane.xlu0 %2664
    %v2666 = vsel %vm663, %v2657, 0.0
    %2667 = vadd.xlane.f32.xlu0 %v2666
    %v2668 = vpop.xlane.xlu0 %2667
    %v2669 = vsel %vm663, %v2659, 0.0
    %2670 = vadd.xlane.f32.xlu0 %v2669
    %v2671 = vpop.xlane.xlu0 %2670
    %v2672 = vrcp.pop %v2662
    %v2673 = vrcp.pop %v2665
    %v2674 = vrcp.pop %v2668
    %v2675 = vrcp.pop %v2671
    %v2676 = vmul.f32 %v2653, %v2672
    %v2677 = vmul.f32 %v2655, %v2673
    %v2678 = vmul.f32 %v2657, %v2674
    %v2679 = vmul.f32 %v2659, %v2675
    %2680 = vrot.lane.b32.xlu0 %v344, 80
    %v2681 = vpop.permute.xlu0 %2680
    %v2684 = vsel %vm663, %v2676, 0
    %2686 = vmatprep.subr.mxu0 0.0
    %2687 = vmatpush1.msra.mxu0 %v2681
    %2688 = vmatprep.subr.mxu0 0.0
    %2689 = vmatpush1.msra.mxu0 0.0
    %2690 = vmatprep.subr.mxu0 0.0
    %2691 = vmatpush1.msra.mxu0 0.0
    %2692 = vmatprep.subr.mxu0 0.0
    %2693 = vmatpush1.msra.mxu0 0.0
    %2694 = vmatprep.subr.mxu0 0.0
    %2695 = vmatpush1.msra.mxu0 0.0
    %2696 = vmatprep.subr.mxu0 0.0
    %2697 = vmatpush1.msra.mxu0 0.0
    %2698 = vmatprep.subr.mxu0 0.0
    %2699 = vmatpush1.msra.mxu0 0.0
    %2700 = vmatprep.subr.mxu0 0.0
    %2701 = vmatpush1.msra.mxu0 0.0
    %2702 = vmatprep.subr.mxu0 0.0
    %2703 = vmatpush1.msra.mxu0 0.0
    %2704 = vmatprep.subr.mxu0 0.0
    %2705 = vmatpush1.msra.mxu0 0.0
    %2706 = vmatprep.subr.mxu0 0.0
    %2707 = vmatpush1.msra.mxu0 0.0
    %2708 = vmatprep.subr.mxu0 0.0
    %2709 = vmatpush1.msra.mxu0 0.0
    %2710 = vmatprep.subr.mxu0 0.0
    %2711 = vmatpush1.msra.mxu0 0.0
    %2712 = vmatprep.subr.mxu0 0.0
    %2713 = vmatpush1.msra.mxu0 0.0
    %2714 = vmatprep.subr.mxu0 0.0
    %2715 = vmatpush1.msra.mxu0 0.0
    %2716 = vmatprep.subr.mxu0 0.0
    %2717 = vmatpush1.msra.mxu0 0.0
    %2718 = vmatprep.subr.mxu0 0.0
    %2719 = vmatpush1.msra.mxu0 0.0
    %2720 = vmatprep.subr.mxu0 0.0
    %2721 = vmatpush1.msra.mxu0 0.0
    %2722 = vmatprep.subr.mxu0 0.0
    %2723 = vmatpush1.msra.mxu0 0.0
    %2724 = vmatprep.subr.mxu0 0.0
    %2725 = vmatpush1.msra.mxu0 0.0
    %2726 = vmatprep.subr.mxu0 0.0
    %2727 = vmatpush1.msra.mxu0 0.0
    %2728 = vmatprep.subr.mxu0 0.0
    %2729 = vmatpush1.msra.mxu0 0.0
    %2730 = vmatprep.subr.mxu0 0.0
    %2731 = vmatpush1.msra.mxu0 0.0
    %2732 = vmatprep.subr.mxu0 0.0
    %2733 = vmatpush1.msra.mxu0 0.0
    %2734 = vmatprep.subr.mxu0 0.0
    %2735 = vmatpush1.msra.mxu0 0.0
    %2736 = vmatprep.subr.mxu0 0.0
    %2737 = vmatpush1.msra.mxu0 0.0
    %2738 = vmatprep.subr.mxu0 0.0
    %2739 = vmatpush1.msra.mxu0 0.0
    %2740 = vmatprep.subr.mxu0 0.0
    %2741 = vmatpush1.msra.mxu0 0.0
    %2742 = vmatprep.subr.mxu0 0.0
    %2743 = vmatpush1.msra.mxu0 0.0
    %2744 = vmatprep.subr.mxu0 0.0
    %2745 = vmatpush1.msra.mxu0 0.0
    %2746 = vmatprep.subr.mxu0 0.0
    %2747 = vmatpush1.msra.mxu0 0.0
    %2748 = vmatprep.subr.mxu0 0.0
    %2749 = vmatpush1.msra.mxu0 0.0
    %2750 = vmatprep.mubr.f32.mxu0 0.0
    %2751 = vmatmul.mubr.f32.gmra.mrb[0].mxu0 %v2684
    %v2752 = vpop.f32.mrb[0].mxu0
    %v2753 = vadd.f32 0.0, %v2752
    %v2754 = vpop.f32.mrb[0].mxu0
    %2755 = vdwg.mxu0
    %2756 = vrot.lane.b32.xlu0 %v347, 80
    %v2757 = vpop.permute.xlu0 %2756
    %v2760 = vsel %vm663, %v2677, 0
    %2762 = vmatprep.subr.mxu0 0.0
    %2763 = vmatpush1.msra.mxu0 %v2757
    %2764 = vmatprep.subr.mxu0 0.0
    %2765 = vmatpush1.msra.mxu0 0.0
    %2766 = vmatprep.subr.mxu0 0.0
    %2767 = vmatpush1.msra.mxu0 0.0
    %2768 = vmatprep.subr.mxu0 0.0
    %2769 = vmatpush1.msra.mxu0 0.0
    %2770 = vmatprep.subr.mxu0 0.0
    %2771 = vmatpush1.msra.mxu0 0.0
    %2772 = vmatprep.subr.mxu0 0.0
    %2773 = vmatpush1.msra.mxu0 0.0
    %2774 = vmatprep.subr.mxu0 0.0
    %2775 = vmatpush1.msra.mxu0 0.0
    %2776 = vmatprep.subr.mxu0 0.0
    %2777 = vmatpush1.msra.mxu0 0.0
    %2778 = vmatprep.subr.mxu0 0.0
    %2779 = vmatpush1.msra.mxu0 0.0
    %2780 = vmatprep.subr.mxu0 0.0
    %2781 = vmatpush1.msra.mxu0 0.0
    %2782 = vmatprep.subr.mxu0 0.0
    %2783 = vmatpush1.msra.mxu0 0.0
    %2784 = vmatprep.subr.mxu0 0.0
    %2785 = vmatpush1.msra.mxu0 0.0
    %2786 = vmatprep.subr.mxu0 0.0
    %2787 = vmatpush1.msra.mxu0 0.0
    %2788 = vmatprep.subr.mxu0 0.0
    %2789 = vmatpush1.msra.mxu0 0.0
    %2790 = vmatprep.subr.mxu0 0.0
    %2791 = vmatpush1.msra.mxu0 0.0
    %2792 = vmatprep.subr.mxu0 0.0
    %2793 = vmatpush1.msra.mxu0 0.0
    %2794 = vmatprep.subr.mxu0 0.0
    %2795 = vmatpush1.msra.mxu0 0.0
    %2796 = vmatprep.subr.mxu0 0.0
    %2797 = vmatpush1.msra.mxu0 0.0
    %2798 = vmatprep.subr.mxu0 0.0
    %2799 = vmatpush1.msra.mxu0 0.0
    %2800 = vmatprep.subr.mxu0 0.0
    %2801 = vmatpush1.msra.mxu0 0.0
    %2802 = vmatprep.subr.mxu0 0.0
    %2803 = vmatpush1.msra.mxu0 0.0
    %2804 = vmatprep.subr.mxu0 0.0
    %2805 = vmatpush1.msra.mxu0 0.0
    %2806 = vmatprep.subr.mxu0 0.0
    %2807 = vmatpush1.msra.mxu0 0.0
    %2808 = vmatprep.subr.mxu0 0.0
    %2809 = vmatpush1.msra.mxu0 0.0
    %2810 = vmatprep.subr.mxu0 0.0
    %2811 = vmatpush1.msra.mxu0 0.0
    %2812 = vmatprep.subr.mxu0 0.0
    %2813 = vmatpush1.msra.mxu0 0.0
    %2814 = vmatprep.subr.mxu0 0.0
    %2815 = vmatpush1.msra.mxu0 0.0
    %2816 = vmatprep.subr.mxu0 0.0
    %2817 = vmatpush1.msra.mxu0 0.0
    %2818 = vmatprep.subr.mxu0 0.0
    %2819 = vmatpush1.msra.mxu0 0.0
    %2820 = vmatprep.subr.mxu0 0.0
    %2821 = vmatpush1.msra.mxu0 0.0
    %2822 = vmatprep.subr.mxu0 0.0
    %2823 = vmatpush1.msra.mxu0 0.0
    %2824 = vmatprep.subr.mxu0 0.0
    %2825 = vmatpush1.msra.mxu0 0.0
    %2826 = vmatprep.mubr.f32.mxu0 0.0
    %2827 = vmatmul.mubr.f32.gmra.mrb[0].mxu0 %v2760
    %v2828 = vpop.f32.mrb[0].mxu0
    %v2829 = vadd.f32 0.0, %v2828
    %v2830 = vpop.f32.mrb[0].mxu0
    %2831 = vdwg.mxu0
    %2832 = vrot.lane.b32.xlu0 %v352, 80
    %v2833 = vpop.permute.xlu0 %2832
    %v2836 = vsel %vm663, %v2678, 0
    %2838 = vmatprep.subr.mxu0 0.0
    %2839 = vmatpush1.msra.mxu0 %v2833
    %2840 = vmatprep.subr.mxu0 0.0
    %2841 = vmatpush1.msra.mxu0 0.0
    %2842 = vmatprep.subr.mxu0 0.0
    %2843 = vmatpush1.msra.mxu0 0.0
    %2844 = vmatprep.subr.mxu0 0.0
    %2845 = vmatpush1.msra.mxu0 0.0
    %2846 = vmatprep.subr.mxu0 0.0
    %2847 = vmatpush1.msra.mxu0 0.0
    %2848 = vmatprep.subr.mxu0 0.0
    %2849 = vmatpush1.msra.mxu0 0.0
    %2850 = vmatprep.subr.mxu0 0.0
    %2851 = vmatpush1.msra.mxu0 0.0
    %2852 = vmatprep.subr.mxu0 0.0
    %2853 = vmatpush1.msra.mxu0 0.0
    %2854 = vmatprep.subr.mxu0 0.0
    %2855 = vmatpush1.msra.mxu0 0.0
    %2856 = vmatprep.subr.mxu0 0.0
    %2857 = vmatpush1.msra.mxu0 0.0
    %2858 = vmatprep.subr.mxu0 0.0
    %2859 = vmatpush1.msra.mxu0 0.0
    %2860 = vmatprep.subr.mxu0 0.0
    %2861 = vmatpush1.msra.mxu0 0.0
    %2862 = vmatprep.subr.mxu0 0.0
    %2863 = vmatpush1.msra.mxu0 0.0
    %2864 = vmatprep.subr.mxu0 0.0
    %2865 = vmatpush1.msra.mxu0 0.0
    %2866 = vmatprep.subr.mxu0 0.0
    %2867 = vmatpush1.msra.mxu0 0.0
    %2868 = vmatprep.subr.mxu0 0.0
    %2869 = vmatpush1.msra.mxu0 0.0
    %2870 = vmatprep.subr.mxu0 0.0
    %2871 = vmatpush1.msra.mxu0 0.0
    %2872 = vmatprep.subr.mxu0 0.0
    %2873 = vmatpush1.msra.mxu0 0.0
    %2874 = vmatprep.subr.mxu0 0.0
    %2875 = vmatpush1.msra.mxu0 0.0
    %2876 = vmatprep.subr.mxu0 0.0
    %2877 = vmatpush1.msra.mxu0 0.0
    %2878 = vmatprep.subr.mxu0 0.0
    %2879 = vmatpush1.msra.mxu0 0.0
    %2880 = vmatprep.subr.mxu0 0.0
    %2881 = vmatpush1.msra.mxu0 0.0
    %2882 = vmatprep.subr.mxu0 0.0
    %2883 = vmatpush1.msra.mxu0 0.0
    %2884 = vmatprep.subr.mxu0 0.0
    %2885 = vmatpush1.msra.mxu0 0.0
    %2886 = vmatprep.subr.mxu0 0.0
    %2887 = vmatpush1.msra.mxu0 0.0
    %2888 = vmatprep.subr.mxu0 0.0
    %2889 = vmatpush1.msra.mxu0 0.0
    %2890 = vmatprep.subr.mxu0 0.0
    %2891 = vmatpush1.msra.mxu0 0.0
    %2892 = vmatprep.subr.mxu0 0.0
    %2893 = vmatpush1.msra.mxu0 0.0
    %2894 = vmatprep.subr.mxu0 0.0
    %2895 = vmatpush1.msra.mxu0 0.0
    %2896 = vmatprep.subr.mxu0 0.0
    %2897 = vmatpush1.msra.mxu0 0.0
    %2898 = vmatprep.subr.mxu0 0.0
    %2899 = vmatpush1.msra.mxu0 0.0
    %2900 = vmatprep.subr.mxu0 0.0
    %2901 = vmatpush1.msra.mxu0 0.0
    %2902 = vmatprep.mubr.f32.mxu0 0.0
    %2903 = vmatmul.mubr.f32.gmra.mrb[0].mxu0 %v2836
    %v2904 = vpop.f32.mrb[0].mxu0
    %v2905 = vadd.f32 0.0, %v2904
    %v2906 = vpop.f32.mrb[0].mxu0
    %2907 = vdwg.mxu0
    %2908 = vrot.lane.b32.xlu0 %v355, 80
    %v2909 = vpop.permute.xlu0 %2908
    %v2912 = vsel %vm663, %v2679, 0
    %2914 = vmatprep.subr.mxu0 0.0
    %2915 = vmatpush1.msra.mxu0 %v2909
    %2916 = vmatprep.subr.mxu0 0.0
    %2917 = vmatpush1.msra.mxu0 0.0
    %2918 = vmatprep.subr.mxu0 0.0
    %2919 = vmatpush1.msra.mxu0 0.0
    %2920 = vmatprep.subr.mxu0 0.0
    %2921 = vmatpush1.msra.mxu0 0.0
    %2922 = vmatprep.subr.mxu0 0.0
    %2923 = vmatpush1.msra.mxu0 0.0
    %2924 = vmatprep.subr.mxu0 0.0
    %2925 = vmatpush1.msra.mxu0 0.0
    %2926 = vmatprep.subr.mxu0 0.0
    %2927 = vmatpush1.msra.mxu0 0.0
    %2928 = vmatprep.subr.mxu0 0.0
    %2929 = vmatpush1.msra.mxu0 0.0
    %2930 = vmatprep.subr.mxu0 0.0
    %2931 = vmatpush1.msra.mxu0 0.0
    %2932 = vmatprep.subr.mxu0 0.0
    %2933 = vmatpush1.msra.mxu0 0.0
    %2934 = vmatprep.subr.mxu0 0.0
    %2935 = vmatpush1.msra.mxu0 0.0
    %2936 = vmatprep.subr.mxu0 0.0
    %2937 = vmatpush1.msra.mxu0 0.0
    %2938 = vmatprep.subr.mxu0 0.0
    %2939 = vmatpush1.msra.mxu0 0.0
    %2940 = vmatprep.subr.mxu0 0.0
    %2941 = vmatpush1.msra.mxu0 0.0
    %2942 = vmatprep.subr.mxu0 0.0
    %2943 = vmatpush1.msra.mxu0 0.0
    %2944 = vmatprep.subr.mxu0 0.0
    %2945 = vmatpush1.msra.mxu0 0.0
    %2946 = vmatprep.subr.mxu0 0.0
    %2947 = vmatpush1.msra.mxu0 0.0
    %2948 = vmatprep.subr.mxu0 0.0
    %2949 = vmatpush1.msra.mxu0 0.0
    %2950 = vmatprep.subr.mxu0 0.0
    %2951 = vmatpush1.msra.mxu0 0.0
    %2952 = vmatprep.subr.mxu0 0.0
    %2953 = vmatpush1.msra.mxu0 0.0
    %2954 = vmatprep.subr.mxu0 0.0
    %2955 = vmatpush1.msra.mxu0 0.0
    %2956 = vmatprep.subr.mxu0 0.0
    %2957 = vmatpush1.msra.mxu0 0.0
    %2958 = vmatprep.subr.mxu0 0.0
    %2959 = vmatpush1.msra.mxu0 0.0
    %2960 = vmatprep.subr.mxu0 0.0
    %2961 = vmatpush1.msra.mxu0 0.0
    %2962 = vmatprep.subr.mxu0 0.0
    %2963 = vmatpush1.msra.mxu0 0.0
    %2964 = vmatprep.subr.mxu0 0.0
    %2965 = vmatpush1.msra.mxu0 0.0
    %2966 = vmatprep.subr.mxu0 0.0
    %2967 = vmatpush1.msra.mxu0 0.0
    %2968 = vmatprep.subr.mxu0 0.0
    %2969 = vmatpush1.msra.mxu0 0.0
    %2970 = vmatprep.subr.mxu0 0.0
    %2971 = vmatpush1.msra.mxu0 0.0
    %2972 = vmatprep.subr.mxu0 0.0
    %2973 = vmatpush1.msra.mxu0 0.0
    %2974 = vmatprep.subr.mxu0 0.0
    %2975 = vmatpush1.msra.mxu0 0.0
    %2976 = vmatprep.subr.mxu0 0.0
    %2977 = vmatpush1.msra.mxu0 0.0
    %2978 = vmatprep.mubr.f32.mxu0 0.0
    %2979 = vmatmul.mubr.f32.gmra.mrb[0].mxu0 %v2912
    %v2980 = vpop.f32.mrb[0].mxu0
    %v2981 = vadd.f32 0.0, %v2980
    %v2982 = vpop.f32.mrb[0].mxu0
    %2983 = vdwg.mxu0
    %2984 = vrot.lane.b32.xlu0 %v291, 64
    %v2985 = vpop.permute.xlu0 %2984
    %2986 = vrot.lane.b32.xlu0 %v293, 64
    %v2987 = vpop.permute.xlu0 %2986
    %v2988 = vsel %vm358, %v2985, 0
    %v2990 = vsel %vm358, %v2987, 0
    %2992 = vmatprep.subr.mxu0 0.0
    %2993 = vmatpush1.xpose.msra.mxu0 %v2990
    %2994 = vmatprep.subr.mxu0 0.0
    %2995 = vmatpush1.xpose.msra.mxu0 0.0
    %2996 = vmatprep.subr.mxu0 0.0
    %2997 = vmatpush1.xpose.msra.mxu0 0.0
    %2998 = vmatprep.subr.mxu0 0.0
    %2999 = vmatpush1.xpose.msra.mxu0 0.0
    %3000 = vmatprep.subr.mxu0 0.0
    %3001 = vmatpush1.xpose.msra.mxu0 0.0
    %3002 = vmatprep.subr.mxu0 0.0
    %3003 = vmatpush1.xpose.msra.mxu0 0.0
    %3004 = vmatprep.subr.mxu0 0.0
    %3005 = vmatpush1.xpose.msra.mxu0 0.0
    %3006 = vmatprep.subr.mxu0 0.0
    %3007 = vmatpush1.xpose.msra.mxu0 0.0
    %3008 = vmatprep.subr.mxu0 0.0
    %3009 = vmatpush1.xpose.msra.mxu0 0.0
    %3010 = vmatprep.subr.mxu0 0.0
    %3011 = vmatpush1.xpose.msra.mxu0 0.0
    %3012 = vmatprep.subr.mxu0 0.0
    %3013 = vmatpush1.xpose.msra.mxu0 0.0
    %3014 = vmatprep.subr.mxu0 0.0
    %3015 = vmatpush1.xpose.msra.mxu0 0.0
    %3016 = vmatprep.subr.mxu0 0.0
    %3017 = vmatpush1.xpose.msra.mxu0 0.0
    %3018 = vmatprep.subr.mxu0 0.0
    %3019 = vmatpush1.xpose.msra.mxu0 0.0
    %3020 = vmatprep.subr.mxu0 0.0
    %3021 = vmatpush1.xpose.msra.mxu0 0.0
    %3022 = vmatprep.subr.mxu0 0.0
    %3023 = vmatpush1.xpose.msra.mxu0 0.0
    %3024 = vmatprep.subr.mxu0 0.0
    %3025 = vmatpush1.xpose.msra.mxu0 0.0
    %3026 = vmatprep.subr.mxu0 0.0
    %3027 = vmatpush1.xpose.msra.mxu0 0.0
    %3028 = vmatprep.subr.mxu0 0.0
    %3029 = vmatpush1.xpose.msra.mxu0 0.0
    %3030 = vmatprep.subr.mxu0 0.0
    %3031 = vmatpush1.xpose.msra.mxu0 0.0
    %3032 = vmatprep.subr.mxu0 0.0
    %3033 = vmatpush1.xpose.msra.mxu0 0.0
    %3034 = vmatprep.subr.mxu0 0.0
    %3035 = vmatpush1.xpose.msra.mxu0 0.0
    %3036 = vmatprep.subr.mxu0 0.0
    %3037 = vmatpush1.xpose.msra.mxu0 0.0
    %3038 = vmatprep.subr.mxu0 0.0
    %3039 = vmatpush1.xpose.msra.mxu0 0.0
    %3040 = vmatprep.subr.mxu0 0.0
    %3041 = vmatpush1.xpose.msra.mxu0 0.0
    %3042 = vmatprep.subr.mxu0 0.0
    %3043 = vmatpush1.xpose.msra.mxu0 0.0
    %3044 = vmatprep.subr.mxu0 0.0
    %3045 = vmatpush1.xpose.msra.mxu0 0.0
    %3046 = vmatprep.subr.mxu0 0.0
    %3047 = vmatpush1.xpose.msra.mxu0 0.0
    %3048 = vmatprep.subr.mxu0 0.0
    %3049 = vmatpush1.xpose.msra.mxu0 0.0
    %3050 = vmatprep.subr.mxu0 0.0
    %3051 = vmatpush1.xpose.msra.mxu0 0.0
    %3052 = vmatprep.subr.mxu0 0.0
    %3053 = vmatpush1.xpose.msra.mxu0 0.0
    %3054 = vmatprep.subr.mxu0 0.0
    %3055 = vmatpush1.xpose.msra.mxu0 0.0
    %3056 = vmatprep.mubr.f32.mxu0 0.0
    %3057 = vmatmul.mubr.f32.gmra.mrb[0].mxu0 %v2988
    %v3058 = vpop.f32.mrb[0].mxu0
    %v3059 = vadd.f32 0.0, %v3058
    %v3060 = vpop.f32.mrb[0].mxu0
    %3061 = vdwg.mxu0
    %3062 = vrot.lane.b32.xlu0 %v295, 64
    %v3063 = vpop.permute.xlu0 %3062
    %3064 = vrot.lane.b32.xlu0 %v297, 64
    %v3065 = vpop.permute.xlu0 %3064
    %v3066 = vsel %vm358, %v3063, 0
    %v3068 = vsel %vm358, %v3065, 0
    %3070 = vmatprep.subr.mxu0 0.0
    %3071 = vmatpush1.xpose.msra.mxu0 %v3068
    %3072 = vmatprep.subr.mxu0 0.0
    %3073 = vmatpush1.xpose.msra.mxu0 0.0
    %3074 = vmatprep.subr.mxu0 0.0
    %3075 = vmatpush1.xpose.msra.mxu0 0.0
    %3076 = vmatprep.subr.mxu0 0.0
    %3077 = vmatpush1.xpose.msra.mxu0 0.0
    %3078 = vmatprep.subr.mxu0 0.0
    %3079 = vmatpush1.xpose.msra.mxu0 0.0
    %3080 = vmatprep.subr.mxu0 0.0
    %3081 = vmatpush1.xpose.msra.mxu0 0.0
    %3082 = vmatprep.subr.mxu0 0.0
    %3083 = vmatpush1.xpose.msra.mxu0 0.0
    %3084 = vmatprep.subr.mxu0 0.0
    %3085 = vmatpush1.xpose.msra.mxu0 0.0
    %3086 = vmatprep.subr.mxu0 0.0
    %3087 = vmatpush1.xpose.msra.mxu0 0.0
    %3088 = vmatprep.subr.mxu0 0.0
    %3089 = vmatpush1.xpose.msra.mxu0 0.0
    %3090 = vmatprep.subr.mxu0 0.0
    %3091 = vmatpush1.xpose.msra.mxu0 0.0
    %3092 = vmatprep.subr.mxu0 0.0
    %3093 = vmatpush1.xpose.msra.mxu0 0.0
    %3094 = vmatprep.subr.mxu0 0.0
    %3095 = vmatpush1.xpose.msra.mxu0 0.0
    %3096 = vmatprep.subr.mxu0 0.0
    %3097 = vmatpush1.xpose.msra.mxu0 0.0
    %3098 = vmatprep.subr.mxu0 0.0
    %3099 = vmatpush1.xpose.msra.mxu0 0.0
    %3100 = vmatprep.subr.mxu0 0.0
    %3101 = vmatpush1.xpose.msra.mxu0 0.0
    %3102 = vmatprep.subr.mxu0 0.0
    %3103 = vmatpush1.xpose.msra.mxu0 0.0
    %3104 = vmatprep.subr.mxu0 0.0
    %3105 = vmatpush1.xpose.msra.mxu0 0.0
    %3106 = vmatprep.subr.mxu0 0.0
    %3107 = vmatpush1.xpose.msra.mxu0 0.0
    %3108 = vmatprep.subr.mxu0 0.0
    %3109 = vmatpush1.xpose.msra.mxu0 0.0
    %3110 = vmatprep.subr.mxu0 0.0
    %3111 = vmatpush1.xpose.msra.mxu0 0.0
    %3112 = vmatprep.subr.mxu0 0.0
    %3113 = vmatpush1.xpose.msra.mxu0 0.0
    %3114 = vmatprep.subr.mxu0 0.0
    %3115 = vmatpush1.xpose.msra.mxu0 0.0
    %3116 = vmatprep.subr.mxu0 0.0
    %3117 = vmatpush1.xpose.msra.mxu0 0.0
    %3118 = vmatprep.subr.mxu0 0.0
    %3119 = vmatpush1.xpose.msra.mxu0 0.0
    %3120 = vmatprep.subr.mxu0 0.0
    %3121 = vmatpush1.xpose.msra.mxu0 0.0
    %3122 = vmatprep.subr.mxu0 0.0
    %3123 = vmatpush1.xpose.msra.mxu0 0.0
    %3124 = vmatprep.subr.mxu0 0.0
    %3125 = vmatpush1.xpose.msra.mxu0 0.0
    %3126 = vmatprep.subr.mxu0 0.0
    %3127 = vmatpush1.xpose.msra.mxu0 0.0
    %3128 = vmatprep.subr.mxu0 0.0
    %3129 = vmatpush1.xpose.msra.mxu0 0.0
    %3130 = vmatprep.subr.mxu0 0.0
    %3131 = vmatpush1.xpose.msra.mxu0 0.0
    %3132 = vmatprep.subr.mxu0 0.0
    %3133 = vmatpush1.xpose.msra.mxu0 0.0
    %3134 = vmatprep.mubr.f32.mxu0 0.0
    %3135 = vmatmul.mubr.f32.gmra.mrb[0].mxu0 %v3066
    %v3136 = vpop.f32.mrb[0].mxu0
    %v3137 = vadd.f32 0.0, %v3136
    %v3138 = vpop.f32.mrb[0].mxu0
    %3139 = vdwg.mxu0
    %3140 = vrot.lane.b32.xlu0 %v301, 64
    %v3141 = vpop.permute.xlu0 %3140
    %3142 = vrot.lane.b32.xlu0 %v303, 64
    %v3143 = vpop.permute.xlu0 %3142
    %v3144 = vsel %vm358, %v3141, 0
    %v3146 = vsel %vm358, %v3143, 0
    %3148 = vmatprep.subr.mxu0 0.0
    %3149 = vmatpush1.xpose.msra.mxu0 %v3146
    %3150 = vmatprep.subr.mxu0 0.0
    %3151 = vmatpush1.xpose.msra.mxu0 0.0
    %3152 = vmatprep.subr.mxu0 0.0
    %3153 = vmatpush1.xpose.msra.mxu0 0.0
    %3154 = vmatprep.subr.mxu0 0.0
    %3155 = vmatpush1.xpose.msra.mxu0 0.0
    %3156 = vmatprep.subr.mxu0 0.0
    %3157 = vmatpush1.xpose.msra.mxu0 0.0
    %3158 = vmatprep.subr.mxu0 0.0
    %3159 = vmatpush1.xpose.msra.mxu0 0.0
    %3160 = vmatprep.subr.mxu0 0.0
    %3161 = vmatpush1.xpose.msra.mxu0 0.0
    %3162 = vmatprep.subr.mxu0 0.0
    %3163 = vmatpush1.xpose.msra.mxu0 0.0
    %3164 = vmatprep.subr.mxu0 0.0
    %3165 = vmatpush1.xpose.msra.mxu0 0.0
    %3166 = vmatprep.subr.mxu0 0.0
    %3167 = vmatpush1.xpose.msra.mxu0 0.0
    %3168 = vmatprep.subr.mxu0 0.0
    %3169 = vmatpush1.xpose.msra.mxu0 0.0
    %3170 = vmatprep.subr.mxu0 0.0
    %3171 = vmatpush1.xpose.msra.mxu0 0.0
    %3172 = vmatprep.subr.mxu0 0.0
    %3173 = vmatpush1.xpose.msra.mxu0 0.0
    %3174 = vmatprep.subr.mxu0 0.0
    %3175 = vmatpush1.xpose.msra.mxu0 0.0
    %3176 = vmatprep.subr.mxu0 0.0
    %3177 = vmatpush1.xpose.msra.mxu0 0.0
    %3178 = vmatprep.subr.mxu0 0.0
    %3179 = vmatpush1.xpose.msra.mxu0 0.0
    %3180 = vmatprep.subr.mxu0 0.0
    %3181 = vmatpush1.xpose.msra.mxu0 0.0
    %3182 = vmatprep.subr.mxu0 0.0
    %3183 = vmatpush1.xpose.msra.mxu0 0.0
    %3184 = vmatprep.subr.mxu0 0.0
    %3185 = vmatpush1.xpose.msra.mxu0 0.0
    %3186 = vmatprep.subr.mxu0 0.0
    %3187 = vmatpush1.xpose.msra.mxu0 0.0
    %3188 = vmatprep.subr.mxu0 0.0
    %3189 = vmatpush1.xpose.msra.mxu0 0.0
    %3190 = vmatprep.subr.mxu0 0.0
    %3191 = vmatpush1.xpose.msra.mxu0 0.0
    %3192 = vmatprep.subr.mxu0 0.0
    %3193 = vmatpush1.xpose.msra.mxu0 0.0
    %3194 = vmatprep.subr.mxu0 0.0
    %3195 = vmatpush1.xpose.msra.mxu0 0.0
    %3196 = vmatprep.subr.mxu0 0.0
    %3197 = vmatpush1.xpose.msra.mxu0 0.0
    %3198 = vmatprep.subr.mxu0 0.0
    %3199 = vmatpush1.xpose.msra.mxu0 0.0
    %3200 = vmatprep.subr.mxu0 0.0
    %3201 = vmatpush1.xpose.msra.mxu0 0.0
    %3202 = vmatprep.subr.mxu0 0.0
    %3203 = vmatpush1.xpose.msra.mxu0 0.0
    %3204 = vmatprep.subr.mxu0 0.0
    %3205 = vmatpush1.xpose.msra.mxu0 0.0
    %3206 = vmatprep.subr.mxu0 0.0
    %3207 = vmatpush1.xpose.msra.mxu0 0.0
    %3208 = vmatprep.subr.mxu0 0.0
    %3209 = vmatpush1.xpose.msra.mxu0 0.0
    %3210 = vmatprep.subr.mxu0 0.0
    %3211 = vmatpush1.xpose.msra.mxu0 0.0
    %3212 = vmatprep.mubr.f32.mxu0 0.0
    %3213 = vmatmul.mubr.f32.gmra.mrb[0].mxu0 %v3144
    %v3214 = vpop.f32.mrb[0].mxu0
    %v3215 = vadd.f32 0.0, %v3214
    %v3216 = vpop.f32.mrb[0].mxu0
    %3217 = vdwg.mxu0
    %3218 = vrot.lane.b32.xlu0 %v305, 64
    %v3219 = vpop.permute.xlu0 %3218
    %3220 = vrot.lane.b32.xlu0 %v307, 64
    %v3221 = vpop.permute.xlu0 %3220
    %v3222 = vsel %vm358, %v3219, 0
    %v3224 = vsel %vm358, %v3221, 0
    %3226 = vmatprep.subr.mxu0 0.0
    %3227 = vmatpush1.xpose.msra.mxu0 %v3224
    %3228 = vmatprep.subr.mxu0 0.0
    %3229 = vmatpush1.xpose.msra.mxu0 0.0
    %3230 = vmatprep.subr.mxu0 0.0
    %3231 = vmatpush1.xpose.msra.mxu0 0.0
    %3232 = vmatprep.subr.mxu0 0.0
    %3233 = vmatpush1.xpose.msra.mxu0 0.0
    %3234 = vmatprep.subr.mxu0 0.0
    %3235 = vmatpush1.xpose.msra.mxu0 0.0
    %3236 = vmatprep.subr.mxu0 0.0
    %3237 = vmatpush1.xpose.msra.mxu0 0.0
    %3238 = vmatprep.subr.mxu0 0.0
    %3239 = vmatpush1.xpose.msra.mxu0 0.0
    %3240 = vmatprep.subr.mxu0 0.0
    %3241 = vmatpush1.xpose.msra.mxu0 0.0
    %3242 = vmatprep.subr.mxu0 0.0
    %3243 = vmatpush1.xpose.msra.mxu0 0.0
    %3244 = vmatprep.subr.mxu0 0.0
    %3245 = vmatpush1.xpose.msra.mxu0 0.0
    %3246 = vmatprep.subr.mxu0 0.0
    %3247 = vmatpush1.xpose.msra.mxu0 0.0
    %3248 = vmatprep.subr.mxu0 0.0
    %3249 = vmatpush1.xpose.msra.mxu0 0.0
    %3250 = vmatprep.subr.mxu0 0.0
    %3251 = vmatpush1.xpose.msra.mxu0 0.0
    %3252 = vmatprep.subr.mxu0 0.0
    %3253 = vmatpush1.xpose.msra.mxu0 0.0
    %3254 = vmatprep.subr.mxu0 0.0
    %3255 = vmatpush1.xpose.msra.mxu0 0.0
    %3256 = vmatprep.subr.mxu0 0.0
    %3257 = vmatpush1.xpose.msra.mxu0 0.0
    %3258 = vmatprep.subr.mxu0 0.0
    %3259 = vmatpush1.xpose.msra.mxu0 0.0
    %3260 = vmatprep.subr.mxu0 0.0
    %3261 = vmatpush1.xpose.msra.mxu0 0.0
    %3262 = vmatprep.subr.mxu0 0.0
    %3263 = vmatpush1.xpose.msra.mxu0 0.0
    %3264 = vmatprep.subr.mxu0 0.0
    %3265 = vmatpush1.xpose.msra.mxu0 0.0
    %3266 = vmatprep.subr.mxu0 0.0
    %3267 = vmatpush1.xpose.msra.mxu0 0.0
    %3268 = vmatprep.subr.mxu0 0.0
    %3269 = vmatpush1.xpose.msra.mxu0 0.0
    %3270 = vmatprep.subr.mxu0 0.0
    %3271 = vmatpush1.xpose.msra.mxu0 0.0
    %3272 = vmatprep.subr.mxu0 0.0
    %3273 = vmatpush1.xpose.msra.mxu0 0.0
    %3274 = vmatprep.subr.mxu0 0.0
    %3275 = vmatpush1.xpose.msra.mxu0 0.0
    %3276 = vmatprep.subr.mxu0 0.0
    %3277 = vmatpush1.xpose.msra.mxu0 0.0
    %3278 = vmatprep.subr.mxu0 0.0
    %3279 = vmatpush1.xpose.msra.mxu0 0.0
    %3280 = vmatprep.subr.mxu0 0.0
    %3281 = vmatpush1.xpose.msra.mxu0 0.0
    %3282 = vmatprep.subr.mxu0 0.0
    %3283 = vmatpush1.xpose.msra.mxu0 0.0
    %3284 = vmatprep.subr.mxu0 0.0
    %3285 = vmatpush1.xpose.msra.mxu0 0.0
    %3286 = vmatprep.subr.mxu0 0.0
    %3287 = vmatpush1.xpose.msra.mxu0 0.0
    %3288 = vmatprep.subr.mxu0 0.0
    %3289 = vmatpush1.xpose.msra.mxu0 0.0
    %3290 = vmatprep.mubr.f32.mxu0 0.0
    %3291 = vmatmul.mubr.f32.gmra.mrb[0].mxu0 %v3222
    %v3292 = vpop.f32.mrb[0].mxu0
    %v3293 = vadd.f32 0.0, %v3292
    %v3294 = vpop.f32.mrb[0].mxu0
    %3295 = vdwg.mxu0
    %v3296 = vsel %vm663, %v3059, -inf
    %3297 = vmax.xlane.f32.xlu0 %v3296
    %v3298 = vpop.xlane.xlu0 %3297
    %v3299 = vsel %vm663, %v3137, -inf
    %3300 = vmax.xlane.f32.xlu0 %v3299
    %v3301 = vpop.xlane.xlu0 %3300
    %v3302 = vsel %vm663, %v3215, -inf
    %3303 = vmax.xlane.f32.xlu0 %v3302
    %v3304 = vpop.xlane.xlu0 %3303
    %v3305 = vsel %vm663, %v3293, -inf
    %3306 = vmax.xlane.f32.xlu0 %v3305
    %v3307 = vpop.xlane.xlu0 %3306
    %v3308 = vsub.f32 %v3059, %v3298
    %v3309 = vsub.f32 %v3137, %v3301
    %v3310 = vsub.f32 %v3215, %v3304
    %v3311 = vsub.f32 %v3293, %v3307
    %v3312 = vmul.f32 %v3308, 1.442695
    %v3313 = vpow.pop %v3312
    %v3314 = vmul.f32 %v3309, 1.442695
    %v3315 = vpow.pop %v3314
    %v3316 = vmul.f32 %v3310, 1.442695
    %v3317 = vpow.pop %v3316
    %v3318 = vmul.f32 %v3311, 1.442695
    %v3319 = vpow.pop %v3318
    %v3320 = vsel %vm663, %v3313, 0.0
    %3321 = vadd.xlane.f32.xlu0 %v3320
    %v3322 = vpop.xlane.xlu0 %3321
    %v3323 = vsel %vm663, %v3315, 0.0
    %3324 = vadd.xlane.f32.xlu0 %v3323
    %v3325 = vpop.xlane.xlu0 %3324
    %v3326 = vsel %vm663, %v3317, 0.0
    %3327 = vadd.xlane.f32.xlu0 %v3326
    %v3328 = vpop.xlane.xlu0 %3327
    %v3329 = vsel %vm663, %v3319, 0.0
    %3330 = vadd.xlane.f32.xlu0 %v3329
    %v3331 = vpop.xlane.xlu0 %3330
    %v3332 = vrcp.pop %v3322
    %v3333 = vrcp.pop %v3325
    %v3334 = vrcp.pop %v3328
    %v3335 = vrcp.pop %v3331
    %v3336 = vmul.f32 %v3313, %v3332
    %v3337 = vmul.f32 %v3315, %v3333
    %v3338 = vmul.f32 %v3317, %v3334
    %v3339 = vmul.f32 %v3319, %v3335
    %3340 = vrot.lane.b32.xlu0 %v344, 64
    %v3341 = vpop.permute.xlu0 %3340
    %v3344 = vsel %vm663, %v3336, 0
    %3346 = vmatprep.subr.mxu0 0.0
    %3347 = vmatpush1.msra.mxu0 %v3341
    %3348 = vmatprep.subr.mxu0 0.0
    %3349 = vmatpush1.msra.mxu0 0.0
    %3350 = vmatprep.subr.mxu0 0.0
    %3351 = vmatpush1.msra.mxu0 0.0
    %3352 = vmatprep.subr.mxu0 0.0
    %3353 = vmatpush1.msra.mxu0 0.0
    %3354 = vmatprep.subr.mxu0 0.0
    %3355 = vmatpush1.msra.mxu0 0.0
    %3356 = vmatprep.subr.mxu0 0.0
    %3357 = vmatpush1.msra.mxu0 0.0
    %3358 = vmatprep.subr.mxu0 0.0
    %3359 = vmatpush1.msra.mxu0 0.0
    %3360 = vmatprep.subr.mxu0 0.0
    %3361 = vmatpush1.msra.mxu0 0.0
    %3362 = vmatprep.subr.mxu0 0.0
    %3363 = vmatpush1.msra.mxu0 0.0
    %3364 = vmatprep.subr.mxu0 0.0
    %3365 = vmatpush1.msra.mxu0 0.0
    %3366 = vmatprep.subr.mxu0 0.0
    %3367 = vmatpush1.msra.mxu0 0.0
    %3368 = vmatprep.subr.mxu0 0.0
    %3369 = vmatpush1.msra.mxu0 0.0
    %3370 = vmatprep.subr.mxu0 0.0
    %3371 = vmatpush1.msra.mxu0 0.0
    %3372 = vmatprep.subr.mxu0 0.0
    %3373 = vmatpush1.msra.mxu0 0.0
    %3374 = vmatprep.subr.mxu0 0.0
    %3375 = vmatpush1.msra.mxu0 0.0
    %3376 = vmatprep.subr.mxu0 0.0
    %3377 = vmatpush1.msra.mxu0 0.0
    %3378 = vmatprep.subr.mxu0 0.0
    %3379 = vmatpush1.msra.mxu0 0.0
    %3380 = vmatprep.subr.mxu0 0.0
    %3381 = vmatpush1.msra.mxu0 0.0
    %3382 = vmatprep.subr.mxu0 0.0
    %3383 = vmatpush1.msra.mxu0 0.0
    %3384 = vmatprep.subr.mxu0 0.0
    %3385 = vmatpush1.msra.mxu0 0.0
    %3386 = vmatprep.subr.mxu0 0.0
    %3387 = vmatpush1.msra.mxu0 0.0
    %3388 = vmatprep.subr.mxu0 0.0
    %3389 = vmatpush1.msra.mxu0 0.0
    %3390 = vmatprep.subr.mxu0 0.0
    %3391 = vmatpush1.msra.mxu0 0.0
    %3392 = vmatprep.subr.mxu0 0.0
    %3393 = vmatpush1.msra.mxu0 0.0
    %3394 = vmatprep.subr.mxu0 0.0
    %3395 = vmatpush1.msra.mxu0 0.0
    %3396 = vmatprep.subr.mxu0 0.0
    %3397 = vmatpush1.msra.mxu0 0.0
    %3398 = vmatprep.subr.mxu0 0.0
    %3399 = vmatpush1.msra.mxu0 0.0
    %3400 = vmatprep.subr.mxu0 0.0
    %3401 = vmatpush1.msra.mxu0 0.0
    %3402 = vmatprep.subr.mxu0 0.0
    %3403 = vmatpush1.msra.mxu0 0.0
    %3404 = vmatprep.subr.mxu0 0.0
    %3405 = vmatpush1.msra.mxu0 0.0
    %3406 = vmatprep.subr.mxu0 0.0
    %3407 = vmatpush1.msra.mxu0 0.0
    %3408 = vmatprep.subr.mxu0 0.0
    %3409 = vmatpush1.msra.mxu0 0.0
    %3410 = vmatprep.mubr.f32.mxu0 0.0
    %3411 = vmatmul.mubr.f32.gmra.mrb[0].mxu0 %v3344
    %v3412 = vpop.f32.mrb[0].mxu0
    %v3413 = vadd.f32 0.0, %v3412
    %v3414 = vpop.f32.mrb[0].mxu0
    %3415 = vdwg.mxu0
    %3416 = vrot.lane.b32.xlu0 %v347, 64
    %v3417 = vpop.permute.xlu0 %3416
    %v3420 = vsel %vm663, %v3337, 0
    %3422 = vmatprep.subr.mxu0 0.0
    %3423 = vmatpush1.msra.mxu0 %v3417
    %3424 = vmatprep.subr.mxu0 0.0
    %3425 = vmatpush1.msra.mxu0 0.0
    %3426 = vmatprep.subr.mxu0 0.0
    %3427 = vmatpush1.msra.mxu0 0.0
    %3428 = vmatprep.subr.mxu0 0.0
    %3429 = vmatpush1.msra.mxu0 0.0
    %3430 = vmatprep.subr.mxu0 0.0
    %3431 = vmatpush1.msra.mxu0 0.0
    %3432 = vmatprep.subr.mxu0 0.0
    %3433 = vmatpush1.msra.mxu0 0.0
    %3434 = vmatprep.subr.mxu0 0.0
    %3435 = vmatpush1.msra.mxu0 0.0
    %3436 = vmatprep.subr.mxu0 0.0
    %3437 = vmatpush1.msra.mxu0 0.0
    %3438 = vmatprep.subr.mxu0 0.0
    %3439 = vmatpush1.msra.mxu0 0.0
    %3440 = vmatprep.subr.mxu0 0.0
    %3441 = vmatpush1.msra.mxu0 0.0
    %3442 = vmatprep.subr.mxu0 0.0
    %3443 = vmatpush1.msra.mxu0 0.0
    %3444 = vmatprep.subr.mxu0 0.0
    %3445 = vmatpush1.msra.mxu0 0.0
    %3446 = vmatprep.subr.mxu0 0.0
    %3447 = vmatpush1.msra.mxu0 0.0
    %3448 = vmatprep.subr.mxu0 0.0
    %3449 = vmatpush1.msra.mxu0 0.0
    %3450 = vmatprep.subr.mxu0 0.0
    %3451 = vmatpush1.msra.mxu0 0.0
    %3452 = vmatprep.subr.mxu0 0.0
    %3453 = vmatpush1.msra.mxu0 0.0
    %3454 = vmatprep.subr.mxu0 0.0
    %3455 = vmatpush1.msra.mxu0 0.0
    %3456 = vmatprep.subr.mxu0 0.0
    %3457 = vmatpush1.msra.mxu0 0.0
    %3458 = vmatprep.subr.mxu0 0.0
    %3459 = vmatpush1.msra.mxu0 0.0
    %3460 = vmatprep.subr.mxu0 0.0
    %3461 = vmatpush1.msra.mxu0 0.0
    %3462 = vmatprep.subr.mxu0 0.0
    %3463 = vmatpush1.msra.mxu0 0.0
    %3464 = vmatprep.subr.mxu0 0.0
    %3465 = vmatpush1.msra.mxu0 0.0
    %3466 = vmatprep.subr.mxu0 0.0
    %3467 = vmatpush1.msra.mxu0 0.0
    %3468 = vmatprep.subr.mxu0 0.0
    %3469 = vmatpush1.msra.mxu0 0.0
    %3470 = vmatprep.subr.mxu0 0.0
    %3471 = vmatpush1.msra.mxu0 0.0
    %3472 = vmatprep.subr.mxu0 0.0
    %3473 = vmatpush1.msra.mxu0 0.0
    %3474 = vmatprep.subr.mxu0 0.0
    %3475 = vmatpush1.msra.mxu0 0.0
    %3476 = vmatprep.subr.mxu0 0.0
    %3477 = vmatpush1.msra.mxu0 0.0
    %3478 = vmatprep.subr.mxu0 0.0
    %3479 = vmatpush1.msra.mxu0 0.0
    %3480 = vmatprep.subr.mxu0 0.0
    %3481 = vmatpush1.msra.mxu0 0.0
    %3482 = vmatprep.subr.mxu0 0.0
    %3483 = vmatpush1.msra.mxu0 0.0
    %3484 = vmatprep.subr.mxu0 0.0
    %3485 = vmatpush1.msra.mxu0 0.0
    %3486 = vmatprep.mubr.f32.mxu0 0.0
    %3487 = vmatmul.mubr.f32.gmra.mrb[0].mxu0 %v3420
    %v3488 = vpop.f32.mrb[0].mxu0
    %v3489 = vadd.f32 0.0, %v3488
    %v3490 = vpop.f32.mrb[0].mxu0
    %3491 = vdwg.mxu0
    %3492 = vrot.lane.b32.xlu0 %v352, 64
    %v3493 = vpop.permute.xlu0 %3492
    %v3496 = vsel %vm663, %v3338, 0
    %3498 = vmatprep.subr.mxu0 0.0
    %3499 = vmatpush1.msra.mxu0 %v3493
    %3500 = vmatprep.subr.mxu0 0.0
    %3501 = vmatpush1.msra.mxu0 0.0
    %3502 = vmatprep.subr.mxu0 0.0
    %3503 = vmatpush1.msra.mxu0 0.0
    %3504 = vmatprep.subr.mxu0 0.0
    %3505 = vmatpush1.msra.mxu0 0.0
    %3506 = vmatprep.subr.mxu0 0.0
    %3507 = vmatpush1.msra.mxu0 0.0
    %3508 = vmatprep.subr.mxu0 0.0
    %3509 = vmatpush1.msra.mxu0 0.0
    %3510 = vmatprep.subr.mxu0 0.0
    %3511 = vmatpush1.msra.mxu0 0.0
    %3512 = vmatprep.subr.mxu0 0.0
    %3513 = vmatpush1.msra.mxu0 0.0
    %3514 = vmatprep.subr.mxu0 0.0
    %3515 = vmatpush1.msra.mxu0 0.0
    %3516 = vmatprep.subr.mxu0 0.0
    %3517 = vmatpush1.msra.mxu0 0.0
    %3518 = vmatprep.subr.mxu0 0.0
    %3519 = vmatpush1.msra.mxu0 0.0
    %3520 = vmatprep.subr.mxu0 0.0
    %3521 = vmatpush1.msra.mxu0 0.0
    %3522 = vmatprep.subr.mxu0 0.0
    %3523 = vmatpush1.msra.mxu0 0.0
    %3524 = vmatprep.subr.mxu0 0.0
    %3525 = vmatpush1.msra.mxu0 0.0
    %3526 = vmatprep.subr.mxu0 0.0
    %3527 = vmatpush1.msra.mxu0 0.0
    %3528 = vmatprep.subr.mxu0 0.0
    %3529 = vmatpush1.msra.mxu0 0.0
    %3530 = vmatprep.subr.mxu0 0.0
    %3531 = vmatpush1.msra.mxu0 0.0
    %3532 = vmatprep.subr.mxu0 0.0
    %3533 = vmatpush1.msra.mxu0 0.0
    %3534 = vmatprep.subr.mxu0 0.0
    %3535 = vmatpush1.msra.mxu0 0.0
    %3536 = vmatprep.subr.mxu0 0.0
    %3537 = vmatpush1.msra.mxu0 0.0
    %3538 = vmatprep.subr.mxu0 0.0
    %3539 = vmatpush1.msra.mxu0 0.0
    %3540 = vmatprep.subr.mxu0 0.0
    %3541 = vmatpush1.msra.mxu0 0.0
    %3542 = vmatprep.subr.mxu0 0.0
    %3543 = vmatpush1.msra.mxu0 0.0
    %3544 = vmatprep.subr.mxu0 0.0
    %3545 = vmatpush1.msra.mxu0 0.0
    %3546 = vmatprep.subr.mxu0 0.0
    %3547 = vmatpush1.msra.mxu0 0.0
    %3548 = vmatprep.subr.mxu0 0.0
    %3549 = vmatpush1.msra.mxu0 0.0
    %3550 = vmatprep.subr.mxu0 0.0
    %3551 = vmatpush1.msra.mxu0 0.0
    %3552 = vmatprep.subr.mxu0 0.0
    %3553 = vmatpush1.msra.mxu0 0.0
    %3554 = vmatprep.subr.mxu0 0.0
    %3555 = vmatpush1.msra.mxu0 0.0
    %3556 = vmatprep.subr.mxu0 0.0
    %3557 = vmatpush1.msra.mxu0 0.0
    %3558 = vmatprep.subr.mxu0 0.0
    %3559 = vmatpush1.msra.mxu0 0.0
    %3560 = vmatprep.subr.mxu0 0.0
    %3561 = vmatpush1.msra.mxu0 0.0
    %3562 = vmatprep.mubr.f32.mxu0 0.0
    %3563 = vmatmul.mubr.f32.gmra.mrb[0].mxu0 %v3496
    %v3564 = vpop.f32.mrb[0].mxu0
    %v3565 = vadd.f32 0.0, %v3564
    %v3566 = vpop.f32.mrb[0].mxu0
    %3567 = vdwg.mxu0
    %3568 = vrot.lane.b32.xlu0 %v355, 64
    %v3569 = vpop.permute.xlu0 %3568
    %v3572 = vsel %vm663, %v3339, 0
    %3574 = vmatprep.subr.mxu0 0.0
    %3575 = vmatpush1.msra.mxu0 %v3569
    %3576 = vmatprep.subr.mxu0 0.0
    %3577 = vmatpush1.msra.mxu0 0.0
    %3578 = vmatprep.subr.mxu0 0.0
    %3579 = vmatpush1.msra.mxu0 0.0
    %3580 = vmatprep.subr.mxu0 0.0
    %3581 = vmatpush1.msra.mxu0 0.0
    %3582 = vmatprep.subr.mxu0 0.0
    %3583 = vmatpush1.msra.mxu0 0.0
    %3584 = vmatprep.subr.mxu0 0.0
    %3585 = vmatpush1.msra.mxu0 0.0
    %3586 = vmatprep.subr.mxu0 0.0
    %3587 = vmatpush1.msra.mxu0 0.0
    %3588 = vmatprep.subr.mxu0 0.0
    %3589 = vmatpush1.msra.mxu0 0.0
    %3590 = vmatprep.subr.mxu0 0.0
    %3591 = vmatpush1.msra.mxu0 0.0
    %3592 = vmatprep.subr.mxu0 0.0
    %3593 = vmatpush1.msra.mxu0 0.0
    %3594 = vmatprep.subr.mxu0 0.0
    %3595 = vmatpush1.msra.mxu0 0.0
    %3596 = vmatprep.subr.mxu0 0.0
    %3597 = vmatpush1.msra.mxu0 0.0
    %3598 = vmatprep.subr.mxu0 0.0
    %3599 = vmatpush1.msra.mxu0 0.0
    %3600 = vmatprep.subr.mxu0 0.0
    %3601 = vmatpush1.msra.mxu0 0.0
    %3602 = vmatprep.subr.mxu0 0.0
    %3603 = vmatpush1.msra.mxu0 0.0
    %3604 = vmatprep.subr.mxu0 0.0
    %3605 = vmatpush1.msra.mxu0 0.0
    %3606 = vmatprep.subr.mxu0 0.0
    %3607 = vmatpush1.msra.mxu0 0.0
    %3608 = vmatprep.subr.mxu0 0.0
    %3609 = vmatpush1.msra.mxu0 0.0
    %3610 = vmatprep.subr.mxu0 0.0
    %3611 = vmatpush1.msra.mxu0 0.0
    %3612 = vmatprep.subr.mxu0 0.0
    %3613 = vmatpush1.msra.mxu0 0.0
    %3614 = vmatprep.subr.mxu0 0.0
    %3615 = vmatpush1.msra.mxu0 0.0
    %3616 = vmatprep.subr.mxu0 0.0
    %3617 = vmatpush1.msra.mxu0 0.0
    %3618 = vmatprep.subr.mxu0 0.0
    %3619 = vmatpush1.msra.mxu0 0.0
    %3620 = vmatprep.subr.mxu0 0.0
    %3621 = vmatpush1.msra.mxu0 0.0
    %3622 = vmatprep.subr.mxu0 0.0
    %3623 = vmatpush1.msra.mxu0 0.0
    %3624 = vmatprep.subr.mxu0 0.0
    %3625 = vmatpush1.msra.mxu0 0.0
    %3626 = vmatprep.subr.mxu0 0.0
    %3627 = vmatpush1.msra.mxu0 0.0
    %3628 = vmatprep.subr.mxu0 0.0
    %3629 = vmatpush1.msra.mxu0 0.0
    %3630 = vmatprep.subr.mxu0 0.0
    %3631 = vmatpush1.msra.mxu0 0.0
    %3632 = vmatprep.subr.mxu0 0.0
    %3633 = vmatpush1.msra.mxu0 0.0
    %3634 = vmatprep.subr.mxu0 0.0
    %3635 = vmatpush1.msra.mxu0 0.0
    %3636 = vmatprep.subr.mxu0 0.0
    %3637 = vmatpush1.msra.mxu0 0.0
    %3638 = vmatprep.mubr.f32.mxu0 0.0
    %3639 = vmatmul.mubr.f32.gmra.mrb[0].mxu0 %v3572
    %v3640 = vpop.f32.mrb[0].mxu0
    %v3641 = vadd.f32 0.0, %v3640
    %v3642 = vpop.f32.mrb[0].mxu0
    %3643 = vdwg.mxu0
    %3644 = vrot.lane.b32.xlu0 %v291, 48
    %v3645 = vpop.permute.xlu0 %3644
    %3646 = vrot.lane.b32.xlu0 %v293, 48
    %v3647 = vpop.permute.xlu0 %3646
    %v3648 = vsel %vm358, %v3645, 0
    %v3650 = vsel %vm358, %v3647, 0
    %3652 = vmatprep.subr.mxu0 0.0
    %3653 = vmatpush1.xpose.msra.mxu0 %v3650
    %3654 = vmatprep.subr.mxu0 0.0
    %3655 = vmatpush1.xpose.msra.mxu0 0.0
    %3656 = vmatprep.subr.mxu0 0.0
    %3657 = vmatpush1.xpose.msra.mxu0 0.0
    %3658 = vmatprep.subr.mxu0 0.0
    %3659 = vmatpush1.xpose.msra.mxu0 0.0
    %3660 = vmatprep.subr.mxu0 0.0
    %3661 = vmatpush1.xpose.msra.mxu0 0.0
    %3662 = vmatprep.subr.mxu0 0.0
    %3663 = vmatpush1.xpose.msra.mxu0 0.0
    %3664 = vmatprep.subr.mxu0 0.0
    %3665 = vmatpush1.xpose.msra.mxu0 0.0
    %3666 = vmatprep.subr.mxu0 0.0
    %3667 = vmatpush1.xpose.msra.mxu0 0.0
    %3668 = vmatprep.subr.mxu0 0.0
    %3669 = vmatpush1.xpose.msra.mxu0 0.0
    %3670 = vmatprep.subr.mxu0 0.0
    %3671 = vmatpush1.xpose.msra.mxu0 0.0
    %3672 = vmatprep.subr.mxu0 0.0
    %3673 = vmatpush1.xpose.msra.mxu0 0.0
    %3674 = vmatprep.subr.mxu0 0.0
    %3675 = vmatpush1.xpose.msra.mxu0 0.0
    %3676 = vmatprep.subr.mxu0 0.0
    %3677 = vmatpush1.xpose.msra.mxu0 0.0
    %3678 = vmatprep.subr.mxu0 0.0
    %3679 = vmatpush1.xpose.msra.mxu0 0.0
    %3680 = vmatprep.subr.mxu0 0.0
    %3681 = vmatpush1.xpose.msra.mxu0 0.0
    %3682 = vmatprep.subr.mxu0 0.0
    %3683 = vmatpush1.xpose.msra.mxu0 0.0
    %3684 = vmatprep.subr.mxu0 0.0
    %3685 = vmatpush1.xpose.msra.mxu0 0.0
    %3686 = vmatprep.subr.mxu0 0.0
    %3687 = vmatpush1.xpose.msra.mxu0 0.0
    %3688 = vmatprep.subr.mxu0 0.0
    %3689 = vmatpush1.xpose.msra.mxu0 0.0
    %3690 = vmatprep.subr.mxu0 0.0
    %3691 = vmatpush1.xpose.msra.mxu0 0.0
    %3692 = vmatprep.subr.mxu0 0.0
    %3693 = vmatpush1.xpose.msra.mxu0 0.0
    %3694 = vmatprep.subr.mxu0 0.0
    %3695 = vmatpush1.xpose.msra.mxu0 0.0
    %3696 = vmatprep.subr.mxu0 0.0
    %3697 = vmatpush1.xpose.msra.mxu0 0.0
    %3698 = vmatprep.subr.mxu0 0.0
    %3699 = vmatpush1.xpose.msra.mxu0 0.0
    %3700 = vmatprep.subr.mxu0 0.0
    %3701 = vmatpush1.xpose.msra.mxu0 0.0
    %3702 = vmatprep.subr.mxu0 0.0
    %3703 = vmatpush1.xpose.msra.mxu0 0.0
    %3704 = vmatprep.subr.mxu0 0.0
    %3705 = vmatpush1.xpose.msra.mxu0 0.0
    %3706 = vmatprep.subr.mxu0 0.0
    %3707 = vmatpush1.xpose.msra.mxu0 0.0
    %3708 = vmatprep.subr.mxu0 0.0
    %3709 = vmatpush1.xpose.msra.mxu0 0.0
    %3710 = vmatprep.subr.mxu0 0.0
    %3711 = vmatpush1.xpose.msra.mxu0 0.0
    %3712 = vmatprep.subr.mxu0 0.0
    %3713 = vmatpush1.xpose.msra.mxu0 0.0
    %3714 = vmatprep.subr.mxu0 0.0
    %3715 = vmatpush1.xpose.msra.mxu0 0.0
    %3716 = vmatprep.mubr.f32.mxu0 0.0
    %3717 = vmatmul.mubr.f32.gmra.mrb[0].mxu0 %v3648
    %v3718 = vpop.f32.mrb[0].mxu0
    %v3719 = vadd.f32 0.0, %v3718
    %v3720 = vpop.f32.mrb[0].mxu0
    %3721 = vdwg.mxu0
    %3722 = vrot.lane.b32.xlu0 %v295, 48
    %v3723 = vpop.permute.xlu0 %3722
    %3724 = vrot.lane.b32.xlu0 %v297, 48
    %v3725 = vpop.permute.xlu0 %3724
    %v3726 = vsel %vm358, %v3723, 0
    %v3728 = vsel %vm358, %v3725, 0
    %3730 = vmatprep.subr.mxu0 0.0
    %3731 = vmatpush1.xpose.msra.mxu0 %v3728
    %3732 = vmatprep.subr.mxu0 0.0
    %3733 = vmatpush1.xpose.msra.mxu0 0.0
    %3734 = vmatprep.subr.mxu0 0.0
    %3735 = vmatpush1.xpose.msra.mxu0 0.0
    %3736 = vmatprep.subr.mxu0 0.0
    %3737 = vmatpush1.xpose.msra.mxu0 0.0
    %3738 = vmatprep.subr.mxu0 0.0
    %3739 = vmatpush1.xpose.msra.mxu0 0.0
    %3740 = vmatprep.subr.mxu0 0.0
    %3741 = vmatpush1.xpose.msra.mxu0 0.0
    %3742 = vmatprep.subr.mxu0 0.0
    %3743 = vmatpush1.xpose.msra.mxu0 0.0
    %3744 = vmatprep.subr.mxu0 0.0
    %3745 = vmatpush1.xpose.msra.mxu0 0.0
    %3746 = vmatprep.subr.mxu0 0.0
    %3747 = vmatpush1.xpose.msra.mxu0 0.0
    %3748 = vmatprep.subr.mxu0 0.0
    %3749 = vmatpush1.xpose.msra.mxu0 0.0
    %3750 = vmatprep.subr.mxu0 0.0
    %3751 = vmatpush1.xpose.msra.mxu0 0.0
    %3752 = vmatprep.subr.mxu0 0.0
    %3753 = vmatpush1.xpose.msra.mxu0 0.0
    %3754 = vmatprep.subr.mxu0 0.0
    %3755 = vmatpush1.xpose.msra.mxu0 0.0
    %3756 = vmatprep.subr.mxu0 0.0
    %3757 = vmatpush1.xpose.msra.mxu0 0.0
    %3758 = vmatprep.subr.mxu0 0.0
    %3759 = vmatpush1.xpose.msra.mxu0 0.0
    %3760 = vmatprep.subr.mxu0 0.0
    %3761 = vmatpush1.xpose.msra.mxu0 0.0
    %3762 = vmatprep.subr.mxu0 0.0
    %3763 = vmatpush1.xpose.msra.mxu0 0.0
    %3764 = vmatprep.subr.mxu0 0.0
    %3765 = vmatpush1.xpose.msra.mxu0 0.0
    %3766 = vmatprep.subr.mxu0 0.0
    %3767 = vmatpush1.xpose.msra.mxu0 0.0
    %3768 = vmatprep.subr.mxu0 0.0
    %3769 = vmatpush1.xpose.msra.mxu0 0.0
    %3770 = vmatprep.subr.mxu0 0.0
    %3771 = vmatpush1.xpose.msra.mxu0 0.0
    %3772 = vmatprep.subr.mxu0 0.0
    %3773 = vmatpush1.xpose.msra.mxu0 0.0
    %3774 = vmatprep.subr.mxu0 0.0
    %3775 = vmatpush1.xpose.msra.mxu0 0.0
    %3776 = vmatprep.subr.mxu0 0.0
    %3777 = vmatpush1.xpose.msra.mxu0 0.0
    %3778 = vmatprep.subr.mxu0 0.0
    %3779 = vmatpush1.xpose.msra.mxu0 0.0
    %3780 = vmatprep.subr.mxu0 0.0
    %3781 = vmatpush1.xpose.msra.mxu0 0.0
    %3782 = vmatprep.subr.mxu0 0.0
    %3783 = vmatpush1.xpose.msra.mxu0 0.0
    %3784 = vmatprep.subr.mxu0 0.0
    %3785 = vmatpush1.xpose.msra.mxu0 0.0
    %3786 = vmatprep.subr.mxu0 0.0
    %3787 = vmatpush1.xpose.msra.mxu0 0.0
    %3788 = vmatprep.subr.mxu0 0.0
    %3789 = vmatpush1.xpose.msra.mxu0 0.0
    %3790 = vmatprep.subr.mxu0 0.0
    %3791 = vmatpush1.xpose.msra.mxu0 0.0
    %3792 = vmatprep.subr.mxu0 0.0
    %3793 = vmatpush1.xpose.msra.mxu0 0.0
    %3794 = vmatprep.mubr.f32.mxu0 0.0
    %3795 = vmatmul.mubr.f32.gmra.mrb[0].mxu0 %v3726
    %v3796 = vpop.f32.mrb[0].mxu0
    %v3797 = vadd.f32 0.0, %v3796
    %v3798 = vpop.f32.mrb[0].mxu0
    %3799 = vdwg.mxu0
    %3800 = vrot.lane.b32.xlu0 %v301, 48
    %v3801 = vpop.permute.xlu0 %3800
    %3802 = vrot.lane.b32.xlu0 %v303, 48
    %v3803 = vpop.permute.xlu0 %3802
    %v3804 = vsel %vm358, %v3801, 0
    %v3806 = vsel %vm358, %v3803, 0
    %3808 = vmatprep.subr.mxu0 0.0
    %3809 = vmatpush1.xpose.msra.mxu0 %v3806
    %3810 = vmatprep.subr.mxu0 0.0
    %3811 = vmatpush1.xpose.msra.mxu0 0.0
    %3812 = vmatprep.subr.mxu0 0.0
    %3813 = vmatpush1.xpose.msra.mxu0 0.0
    %3814 = vmatprep.subr.mxu0 0.0
    %3815 = vmatpush1.xpose.msra.mxu0 0.0
    %3816 = vmatprep.subr.mxu0 0.0
    %3817 = vmatpush1.xpose.msra.mxu0 0.0
    %3818 = vmatprep.subr.mxu0 0.0
    %3819 = vmatpush1.xpose.msra.mxu0 0.0
    %3820 = vmatprep.subr.mxu0 0.0
    %3821 = vmatpush1.xpose.msra.mxu0 0.0
    %3822 = vmatprep.subr.mxu0 0.0
    %3823 = vmatpush1.xpose.msra.mxu0 0.0
    %3824 = vmatprep.subr.mxu0 0.0
    %3825 = vmatpush1.xpose.msra.mxu0 0.0
    %3826 = vmatprep.subr.mxu0 0.0
    %3827 = vmatpush1.xpose.msra.mxu0 0.0
    %3828 = vmatprep.subr.mxu0 0.0
    %3829 = vmatpush1.xpose.msra.mxu0 0.0
    %3830 = vmatprep.subr.mxu0 0.0
    %3831 = vmatpush1.xpose.msra.mxu0 0.0
    %3832 = vmatprep.subr.mxu0 0.0
    %3833 = vmatpush1.xpose.msra.mxu0 0.0
    %3834 = vmatprep.subr.mxu0 0.0
    %3835 = vmatpush1.xpose.msra.mxu0 0.0
    %3836 = vmatprep.subr.mxu0 0.0
    %3837 = vmatpush1.xpose.msra.mxu0 0.0
    %3838 = vmatprep.subr.mxu0 0.0
    %3839 = vmatpush1.xpose.msra.mxu0 0.0
    %3840 = vmatprep.subr.mxu0 0.0
    %3841 = vmatpush1.xpose.msra.mxu0 0.0
    %3842 = vmatprep.subr.mxu0 0.0
    %3843 = vmatpush1.xpose.msra.mxu0 0.0
    %3844 = vmatprep.subr.mxu0 0.0
    %3845 = vmatpush1.xpose.msra.mxu0 0.0
    %3846 = vmatprep.subr.mxu0 0.0
    %3847 = vmatpush1.xpose.msra.mxu0 0.0
    %3848 = vmatprep.subr.mxu0 0.0
    %3849 = vmatpush1.xpose.msra.mxu0 0.0
    %3850 = vmatprep.subr.mxu0 0.0
    %3851 = vmatpush1.xpose.msra.mxu0 0.0
    %3852 = vmatprep.subr.mxu0 0.0
    %3853 = vmatpush1.xpose.msra.mxu0 0.0
    %3854 = vmatprep.subr.mxu0 0.0
    %3855 = vmatpush1.xpose.msra.mxu0 0.0
    %3856 = vmatprep.subr.mxu0 0.0
    %3857 = vmatpush1.xpose.msra.mxu0 0.0
    %3858 = vmatprep.subr.mxu0 0.0
    %3859 = vmatpush1.xpose.msra.mxu0 0.0
    %3860 = vmatprep.subr.mxu0 0.0
    %3861 = vmatpush1.xpose.msra.mxu0 0.0
    %3862 = vmatprep.subr.mxu0 0.0
    %3863 = vmatpush1.xpose.msra.mxu0 0.0
    %3864 = vmatprep.subr.mxu0 0.0
    %3865 = vmatpush1.xpose.msra.mxu0 0.0
    %3866 = vmatprep.subr.mxu0 0.0
    %3867 = vmatpush1.xpose.msra.mxu0 0.0
    %3868 = vmatprep.subr.mxu0 0.0
    %3869 = vmatpush1.xpose.msra.mxu0 0.0
    %3870 = vmatprep.subr.mxu0 0.0
    %3871 = vmatpush1.xpose.msra.mxu0 0.0
    %3872 = vmatprep.mubr.f32.mxu0 0.0
    %3873 = vmatmul.mubr.f32.gmra.mrb[0].mxu0 %v3804
    %v3874 = vpop.f32.mrb[0].mxu0
    %v3875 = vadd.f32 0.0, %v3874
    %v3876 = vpop.f32.mrb[0].mxu0
    %3877 = vdwg.mxu0
    %3878 = vrot.lane.b32.xlu0 %v305, 48
    %v3879 = vpop.permute.xlu0 %3878
    %3880 = vrot.lane.b32.xlu0 %v307, 48
    %v3881 = vpop.permute.xlu0 %3880
    %v3882 = vsel %vm358, %v3879, 0
    %v3884 = vsel %vm358, %v3881, 0
    %3886 = vmatprep.subr.mxu0 0.0
    %3887 = vmatpush1.xpose.msra.mxu0 %v3884
    %3888 = vmatprep.subr.mxu0 0.0
    %3889 = vmatpush1.xpose.msra.mxu0 0.0
    %3890 = vmatprep.subr.mxu0 0.0
    %3891 = vmatpush1.xpose.msra.mxu0 0.0
    %3892 = vmatprep.subr.mxu0 0.0
    %3893 = vmatpush1.xpose.msra.mxu0 0.0
    %3894 = vmatprep.subr.mxu0 0.0
    %3895 = vmatpush1.xpose.msra.mxu0 0.0
    %3896 = vmatprep.subr.mxu0 0.0
    %3897 = vmatpush1.xpose.msra.mxu0 0.0
    %3898 = vmatprep.subr.mxu0 0.0
    %3899 = vmatpush1.xpose.msra.mxu0 0.0
    %3900 = vmatprep.subr.mxu0 0.0
    %3901 = vmatpush1.xpose.msra.mxu0 0.0
    %3902 = vmatprep.subr.mxu0 0.0
    %3903 = vmatpush1.xpose.msra.mxu0 0.0
    %3904 = vmatprep.subr.mxu0 0.0
    %3905 = vmatpush1.xpose.msra.mxu0 0.0
    %3906 = vmatprep.subr.mxu0 0.0
    %3907 = vmatpush1.xpose.msra.mxu0 0.0
    %3908 = vmatprep.subr.mxu0 0.0
    %3909 = vmatpush1.xpose.msra.mxu0 0.0
    %3910 = vmatprep.subr.mxu0 0.0
    %3911 = vmatpush1.xpose.msra.mxu0 0.0
    %3912 = vmatprep.subr.mxu0 0.0
    %3913 = vmatpush1.xpose.msra.mxu0 0.0
    %3914 = vmatprep.subr.mxu0 0.0
    %3915 = vmatpush1.xpose.msra.mxu0 0.0
    %3916 = vmatprep.subr.mxu0 0.0
    %3917 = vmatpush1.xpose.msra.mxu0 0.0
    %3918 = vmatprep.subr.mxu0 0.0
    %3919 = vmatpush1.xpose.msra.mxu0 0.0
    %3920 = vmatprep.subr.mxu0 0.0
    %3921 = vmatpush1.xpose.msra.mxu0 0.0
    %3922 = vmatprep.subr.mxu0 0.0
    %3923 = vmatpush1.xpose.msra.mxu0 0.0
    %3924 = vmatprep.subr.mxu0 0.0
    %3925 = vmatpush1.xpose.msra.mxu0 0.0
    %3926 = vmatprep.subr.mxu0 0.0
    %3927 = vmatpush1.xpose.msra.mxu0 0.0
    %3928 = vmatprep.subr.mxu0 0.0
    %3929 = vmatpush1.xpose.msra.mxu0 0.0
    %3930 = vmatprep.subr.mxu0 0.0
    %3931 = vmatpush1.xpose.msra.mxu0 0.0
    %3932 = vmatprep.subr.mxu0 0.0
    %3933 = vmatpush1.xpose.msra.mxu0 0.0
    %3934 = vmatprep.subr.mxu0 0.0
    %3935 = vmatpush1.xpose.msra.mxu0 0.0
    %3936 = vmatprep.subr.mxu0 0.0
    %3937 = vmatpush1.xpose.msra.mxu0 0.0
    %3938 = vmatprep.subr.mxu0 0.0
    %3939 = vmatpush1.xpose.msra.mxu0 0.0
    %3940 = vmatprep.subr.mxu0 0.0
    %3941 = vmatpush1.xpose.msra.mxu0 0.0
    %3942 = vmatprep.subr.mxu0 0.0
    %3943 = vmatpush1.xpose.msra.mxu0 0.0
    %3944 = vmatprep.subr.mxu0 0.0
    %3945 = vmatpush1.xpose.msra.mxu0 0.0
    %3946 = vmatprep.subr.mxu0 0.0
    %3947 = vmatpush1.xpose.msra.mxu0 0.0
    %3948 = vmatprep.subr.mxu0 0.0
    %3949 = vmatpush1.xpose.msra.mxu0 0.0
    %3950 = vmatprep.mubr.f32.mxu0 0.0
    %3951 = vmatmul.mubr.f32.gmra.mrb[0].mxu0 %v3882
    %v3952 = vpop.f32.mrb[0].mxu0
    %v3953 = vadd.f32 0.0, %v3952
    %v3954 = vpop.f32.mrb[0].mxu0
    %3955 = vdwg.mxu0
    %v3956 = vsel %vm663, %v3719, -inf
    %3957 = vmax.xlane.f32.xlu0 %v3956
    %v3958 = vpop.xlane.xlu0 %3957
    %v3959 = vsel %vm663, %v3797, -inf
    %3960 = vmax.xlane.f32.xlu0 %v3959
    %v3961 = vpop.xlane.xlu0 %3960
    %v3962 = vsel %vm663, %v3875, -inf
    %3963 = vmax.xlane.f32.xlu0 %v3962
    %v3964 = vpop.xlane.xlu0 %3963
    %v3965 = vsel %vm663, %v3953, -inf
    %3966 = vmax.xlane.f32.xlu0 %v3965
    %v3967 = vpop.xlane.xlu0 %3966
    %v3968 = vsub.f32 %v3719, %v3958
    %v3969 = vsub.f32 %v3797, %v3961
    %v3970 = vsub.f32 %v3875, %v3964
    %v3971 = vsub.f32 %v3953, %v3967
    %v3972 = vmul.f32 %v3968, 1.442695
    %v3973 = vpow.pop %v3972
    %v3974 = vmul.f32 %v3969, 1.442695
    %v3975 = vpow.pop %v3974
    %v3976 = vmul.f32 %v3970, 1.442695
    %v3977 = vpow.pop %v3976
    %v3978 = vmul.f32 %v3971, 1.442695
    %v3979 = vpow.pop %v3978
    %v3980 = vsel %vm663, %v3973, 0.0
    %3981 = vadd.xlane.f32.xlu0 %v3980
    %v3982 = vpop.xlane.xlu0 %3981
    %v3983 = vsel %vm663, %v3975, 0.0
    %3984 = vadd.xlane.f32.xlu0 %v3983
    %v3985 = vpop.xlane.xlu0 %3984
    %v3986 = vsel %vm663, %v3977, 0.0
    %3987 = vadd.xlane.f32.xlu0 %v3986
    %v3988 = vpop.xlane.xlu0 %3987
    %v3989 = vsel %vm663, %v3979, 0.0
    %3990 = vadd.xlane.f32.xlu0 %v3989
    %v3991 = vpop.xlane.xlu0 %3990
    %v3992 = vrcp.pop %v3982
    %v3993 = vrcp.pop %v3985
    %v3994 = vrcp.pop %v3988
    %v3995 = vrcp.pop %v3991
    %v3996 = vmul.f32 %v3973, %v3992
    %v3997 = vmul.f32 %v3975, %v3993
    %v3998 = vmul.f32 %v3977, %v3994
    %v3999 = vmul.f32 %v3979, %v3995
    %4000 = vrot.lane.b32.xlu0 %v344, 48
    %v4001 = vpop.permute.xlu0 %4000
    %v4004 = vsel %vm663, %v3996, 0
    %4006 = vmatprep.subr.mxu0 0.0
    %4007 = vmatpush1.msra.mxu0 %v4001
    %4008 = vmatprep.subr.mxu0 0.0
    %4009 = vmatpush1.msra.mxu0 0.0
    %4010 = vmatprep.subr.mxu0 0.0
    %4011 = vmatpush1.msra.mxu0 0.0
    %4012 = vmatprep.subr.mxu0 0.0
    %4013 = vmatpush1.msra.mxu0 0.0
    %4014 = vmatprep.subr.mxu0 0.0
    %4015 = vmatpush1.msra.mxu0 0.0
    %4016 = vmatprep.subr.mxu0 0.0
    %4017 = vmatpush1.msra.mxu0 0.0
    %4018 = vmatprep.subr.mxu0 0.0
    %4019 = vmatpush1.msra.mxu0 0.0
    %4020 = vmatprep.subr.mxu0 0.0
    %4021 = vmatpush1.msra.mxu0 0.0
    %4022 = vmatprep.subr.mxu0 0.0
    %4023 = vmatpush1.msra.mxu0 0.0
    %4024 = vmatprep.subr.mxu0 0.0
    %4025 = vmatpush1.msra.mxu0 0.0
    %4026 = vmatprep.subr.mxu0 0.0
    %4027 = vmatpush1.msra.mxu0 0.0
    %4028 = vmatprep.subr.mxu0 0.0
    %4029 = vmatpush1.msra.mxu0 0.0
    %4030 = vmatprep.subr.mxu0 0.0
    %4031 = vmatpush1.msra.mxu0 0.0
    %4032 = vmatprep.subr.mxu0 0.0
    %4033 = vmatpush1.msra.mxu0 0.0
    %4034 = vmatprep.subr.mxu0 0.0
    %4035 = vmatpush1.msra.mxu0 0.0
    %4036 = vmatprep.subr.mxu0 0.0
    %4037 = vmatpush1.msra.mxu0 0.0
    %4038 = vmatprep.subr.mxu0 0.0
    %4039 = vmatpush1.msra.mxu0 0.0
    %4040 = vmatprep.subr.mxu0 0.0
    %4041 = vmatpush1.msra.mxu0 0.0
    %4042 = vmatprep.subr.mxu0 0.0
    %4043 = vmatpush1.msra.mxu0 0.0
    %4044 = vmatprep.subr.mxu0 0.0
    %4045 = vmatpush1.msra.mxu0 0.0
    %4046 = vmatprep.subr.mxu0 0.0
    %4047 = vmatpush1.msra.mxu0 0.0
    %4048 = vmatprep.subr.mxu0 0.0
    %4049 = vmatpush1.msra.mxu0 0.0
    %4050 = vmatprep.subr.mxu0 0.0
    %4051 = vmatpush1.msra.mxu0 0.0
    %4052 = vmatprep.subr.mxu0 0.0
    %4053 = vmatpush1.msra.mxu0 0.0
    %4054 = vmatprep.subr.mxu0 0.0
    %4055 = vmatpush1.msra.mxu0 0.0
    %4056 = vmatprep.subr.mxu0 0.0
    %4057 = vmatpush1.msra.mxu0 0.0
    %4058 = vmatprep.subr.mxu0 0.0
    %4059 = vmatpush1.msra.mxu0 0.0
    %4060 = vmatprep.subr.mxu0 0.0
    %4061 = vmatpush1.msra.mxu0 0.0
    %4062 = vmatprep.subr.mxu0 0.0
    %4063 = vmatpush1.msra.mxu0 0.0
    %4064 = vmatprep.subr.mxu0 0.0
    %4065 = vmatpush1.msra.mxu0 0.0
    %4066 = vmatprep.subr.mxu0 0.0
    %4067 = vmatpush1.msra.mxu0 0.0
    %4068 = vmatprep.subr.mxu0 0.0
    %4069 = vmatpush1.msra.mxu0 0.0
    %4070 = vmatprep.mubr.f32.mxu0 0.0
    %4071 = vmatmul.mubr.f32.gmra.mrb[0].mxu0 %v4004
    %v4072 = vpop.f32.mrb[0].mxu0
    %v4073 = vadd.f32 0.0, %v4072
    %v4074 = vpop.f32.mrb[0].mxu0
    %4075 = vdwg.mxu0
    %4076 = vrot.lane.b32.xlu0 %v347, 48
    %v4077 = vpop.permute.xlu0 %4076
    %v4080 = vsel %vm663, %v3997, 0
    %4082 = vmatprep.subr.mxu0 0.0
    %4083 = vmatpush1.msra.mxu0 %v4077
    %4084 = vmatprep.subr.mxu0 0.0
    %4085 = vmatpush1.msra.mxu0 0.0
    %4086 = vmatprep.subr.mxu0 0.0
    %4087 = vmatpush1.msra.mxu0 0.0
    %4088 = vmatprep.subr.mxu0 0.0
    %4089 = vmatpush1.msra.mxu0 0.0
    %4090 = vmatprep.subr.mxu0 0.0
    %4091 = vmatpush1.msra.mxu0 0.0
    %4092 = vmatprep.subr.mxu0 0.0
    %4093 = vmatpush1.msra.mxu0 0.0
    %4094 = vmatprep.subr.mxu0 0.0
    %4095 = vmatpush1.msra.mxu0 0.0
    %4096 = vmatprep.subr.mxu0 0.0
    %4097 = vmatpush1.msra.mxu0 0.0
    %4098 = vmatprep.subr.mxu0 0.0
    %4099 = vmatpush1.msra.mxu0 0.0
    %4100 = vmatprep.subr.mxu0 0.0
    %4101 = vmatpush1.msra.mxu0 0.0
    %4102 = vmatprep.subr.mxu0 0.0
    %4103 = vmatpush1.msra.mxu0 0.0
    %4104 = vmatprep.subr.mxu0 0.0
    %4105 = vmatpush1.msra.mxu0 0.0
    %4106 = vmatprep.subr.mxu0 0.0
    %4107 = vmatpush1.msra.mxu0 0.0
    %4108 = vmatprep.subr.mxu0 0.0
    %4109 = vmatpush1.msra.mxu0 0.0
    %4110 = vmatprep.subr.mxu0 0.0
    %4111 = vmatpush1.msra.mxu0 0.0
    %4112 = vmatprep.subr.mxu0 0.0
    %4113 = vmatpush1.msra.mxu0 0.0
    %4114 = vmatprep.subr.mxu0 0.0
    %4115 = vmatpush1.msra.mxu0 0.0
    %4116 = vmatprep.subr.mxu0 0.0
    %4117 = vmatpush1.msra.mxu0 0.0
    %4118 = vmatprep.subr.mxu0 0.0
    %4119 = vmatpush1.msra.mxu0 0.0
    %4120 = vmatprep.subr.mxu0 0.0
    %4121 = vmatpush1.msra.mxu0 0.0
    %4122 = vmatprep.subr.mxu0 0.0
    %4123 = vmatpush1.msra.mxu0 0.0
    %4124 = vmatprep.subr.mxu0 0.0
    %4125 = vmatpush1.msra.mxu0 0.0
    %4126 = vmatprep.subr.mxu0 0.0
    %4127 = vmatpush1.msra.mxu0 0.0
    %4128 = vmatprep.subr.mxu0 0.0
    %4129 = vmatpush1.msra.mxu0 0.0
    %4130 = vmatprep.subr.mxu0 0.0
    %4131 = vmatpush1.msra.mxu0 0.0
    %4132 = vmatprep.subr.mxu0 0.0
    %4133 = vmatpush1.msra.mxu0 0.0
    %4134 = vmatprep.subr.mxu0 0.0
    %4135 = vmatpush1.msra.mxu0 0.0
    %4136 = vmatprep.subr.mxu0 0.0
    %4137 = vmatpush1.msra.mxu0 0.0
    %4138 = vmatprep.subr.mxu0 0.0
    %4139 = vmatpush1.msra.mxu0 0.0
    %4140 = vmatprep.subr.mxu0 0.0
    %4141 = vmatpush1.msra.mxu0 0.0
    %4142 = vmatprep.subr.mxu0 0.0
    %4143 = vmatpush1.msra.mxu0 0.0
    %4144 = vmatprep.subr.mxu0 0.0
    %4145 = vmatpush1.msra.mxu0 0.0
    %4146 = vmatprep.mubr.f32.mxu0 0.0
    %4147 = vmatmul.mubr.f32.gmra.mrb[0].mxu0 %v4080
    %v4148 = vpop.f32.mrb[0].mxu0
    %v4149 = vadd.f32 0.0, %v4148
    %v4150 = vpop.f32.mrb[0].mxu0
    %4151 = vdwg.mxu0
    %4152 = vrot.lane.b32.xlu0 %v352, 48
    %v4153 = vpop.permute.xlu0 %4152
    %v4156 = vsel %vm663, %v3998, 0
    %4158 = vmatprep.subr.mxu0 0.0
    %4159 = vmatpush1.msra.mxu0 %v4153
    %4160 = vmatprep.subr.mxu0 0.0
    %4161 = vmatpush1.msra.mxu0 0.0
    %4162 = vmatprep.subr.mxu0 0.0
    %4163 = vmatpush1.msra.mxu0 0.0
    %4164 = vmatprep.subr.mxu0 0.0
    %4165 = vmatpush1.msra.mxu0 0.0
    %4166 = vmatprep.subr.mxu0 0.0
    %4167 = vmatpush1.msra.mxu0 0.0
    %4168 = vmatprep.subr.mxu0 0.0
    %4169 = vmatpush1.msra.mxu0 0.0
    %4170 = vmatprep.subr.mxu0 0.0
    %4171 = vmatpush1.msra.mxu0 0.0
    %4172 = vmatprep.subr.mxu0 0.0
    %4173 = vmatpush1.msra.mxu0 0.0
    %4174 = vmatprep.subr.mxu0 0.0
    %4175 = vmatpush1.msra.mxu0 0.0
    %4176 = vmatprep.subr.mxu0 0.0
    %4177 = vmatpush1.msra.mxu0 0.0
    %4178 = vmatprep.subr.mxu0 0.0
    %4179 = vmatpush1.msra.mxu0 0.0
    %4180 = vmatprep.subr.mxu0 0.0
    %4181 = vmatpush1.msra.mxu0 0.0
    %4182 = vmatprep.subr.mxu0 0.0
    %4183 = vmatpush1.msra.mxu0 0.0
    %4184 = vmatprep.subr.mxu0 0.0
    %4185 = vmatpush1.msra.mxu0 0.0
    %4186 = vmatprep.subr.mxu0 0.0
    %4187 = vmatpush1.msra.mxu0 0.0
    %4188 = vmatprep.subr.mxu0 0.0
    %4189 = vmatpush1.msra.mxu0 0.0
    %4190 = vmatprep.subr.mxu0 0.0
    %4191 = vmatpush1.msra.mxu0 0.0
    %4192 = vmatprep.subr.mxu0 0.0
    %4193 = vmatpush1.msra.mxu0 0.0
    %4194 = vmatprep.subr.mxu0 0.0
    %4195 = vmatpush1.msra.mxu0 0.0
    %4196 = vmatprep.subr.mxu0 0.0
    %4197 = vmatpush1.msra.mxu0 0.0
    %4198 = vmatprep.subr.mxu0 0.0
    %4199 = vmatpush1.msra.mxu0 0.0
    %4200 = vmatprep.subr.mxu0 0.0
    %4201 = vmatpush1.msra.mxu0 0.0
    %4202 = vmatprep.subr.mxu0 0.0
    %4203 = vmatpush1.msra.mxu0 0.0
    %4204 = vmatprep.subr.mxu0 0.0
    %4205 = vmatpush1.msra.mxu0 0.0
    %4206 = vmatprep.subr.mxu0 0.0
    %4207 = vmatpush1.msra.mxu0 0.0
    %4208 = vmatprep.subr.mxu0 0.0
    %4209 = vmatpush1.msra.mxu0 0.0
    %4210 = vmatprep.subr.mxu0 0.0
    %4211 = vmatpush1.msra.mxu0 0.0
    %4212 = vmatprep.subr.mxu0 0.0
    %4213 = vmatpush1.msra.mxu0 0.0
    %4214 = vmatprep.subr.mxu0 0.0
    %4215 = vmatpush1.msra.mxu0 0.0
    %4216 = vmatprep.subr.mxu0 0.0
    %4217 = vmatpush1.msra.mxu0 0.0
    %4218 = vmatprep.subr.mxu0 0.0
    %4219 = vmatpush1.msra.mxu0 0.0
    %4220 = vmatprep.subr.mxu0 0.0
    %4221 = vmatpush1.msra.mxu0 0.0
    %4222 = vmatprep.mubr.f32.mxu0 0.0
    %4223 = vmatmul.mubr.f32.gmra.mrb[0].mxu0 %v4156
    %v4224 = vpop.f32.mrb[0].mxu0
    %v4225 = vadd.f32 0.0, %v4224
    %v4226 = vpop.f32.mrb[0].mxu0
    %4227 = vdwg.mxu0
    %4228 = vrot.lane.b32.xlu0 %v355, 48
    %v4229 = vpop.permute.xlu0 %4228
    %v4232 = vsel %vm663, %v3999, 0
    %4234 = vmatprep.subr.mxu0 0.0
    %4235 = vmatpush1.msra.mxu0 %v4229
    %4236 = vmatprep.subr.mxu0 0.0
    %4237 = vmatpush1.msra.mxu0 0.0
    %4238 = vmatprep.subr.mxu0 0.0
    %4239 = vmatpush1.msra.mxu0 0.0
    %4240 = vmatprep.subr.mxu0 0.0
    %4241 = vmatpush1.msra.mxu0 0.0
    %4242 = vmatprep.subr.mxu0 0.0
    %4243 = vmatpush1.msra.mxu0 0.0
    %4244 = vmatprep.subr.mxu0 0.0
    %4245 = vmatpush1.msra.mxu0 0.0
    %4246 = vmatprep.subr.mxu0 0.0
    %4247 = vmatpush1.msra.mxu0 0.0
    %4248 = vmatprep.subr.mxu0 0.0
    %4249 = vmatpush1.msra.mxu0 0.0
    %4250 = vmatprep.subr.mxu0 0.0
    %4251 = vmatpush1.msra.mxu0 0.0
    %4252 = vmatprep.subr.mxu0 0.0
    %4253 = vmatpush1.msra.mxu0 0.0
    %4254 = vmatprep.subr.mxu0 0.0
    %4255 = vmatpush1.msra.mxu0 0.0
    %4256 = vmatprep.subr.mxu0 0.0
    %4257 = vmatpush1.msra.mxu0 0.0
    %4258 = vmatprep.subr.mxu0 0.0
    %4259 = vmatpush1.msra.mxu0 0.0
    %4260 = vmatprep.subr.mxu0 0.0
    %4261 = vmatpush1.msra.mxu0 0.0
    %4262 = vmatprep.subr.mxu0 0.0
    %4263 = vmatpush1.msra.mxu0 0.0
    %4264 = vmatprep.subr.mxu0 0.0
    %4265 = vmatpush1.msra.mxu0 0.0
    %4266 = vmatprep.subr.mxu0 0.0
    %4267 = vmatpush1.msra.mxu0 0.0
    %4268 = vmatprep.subr.mxu0 0.0
    %4269 = vmatpush1.msra.mxu0 0.0
    %4270 = vmatprep.subr.mxu0 0.0
    %4271 = vmatpush1.msra.mxu0 0.0
    %4272 = vmatprep.subr.mxu0 0.0
    %4273 = vmatpush1.msra.mxu0 0.0
    %4274 = vmatprep.subr.mxu0 0.0
    %4275 = vmatpush1.msra.mxu0 0.0
    %4276 = vmatprep.subr.mxu0 0.0
    %4277 = vmatpush1.msra.mxu0 0.0
    %4278 = vmatprep.subr.mxu0 0.0
    %4279 = vmatpush1.msra.mxu0 0.0
    %4280 = vmatprep.subr.mxu0 0.0
    %4281 = vmatpush1.msra.mxu0 0.0
    %4282 = vmatprep.subr.mxu0 0.0
    %4283 = vmatpush1.msra.mxu0 0.0
    %4284 = vmatprep.subr.mxu0 0.0
    %4285 = vmatpush1.msra.mxu0 0.0
    %4286 = vmatprep.subr.mxu0 0.0
    %4287 = vmatpush1.msra.mxu0 0.0
    %4288 = vmatprep.subr.mxu0 0.0
    %4289 = vmatpush1.msra.mxu0 0.0
    %4290 = vmatprep.subr.mxu0 0.0
    %4291 = vmatpush1.msra.mxu0 0.0
    %4292 = vmatprep.subr.mxu0 0.0
    %4293 = vmatpush1.msra.mxu0 0.0
    %4294 = vmatprep.subr.mxu0 0.0
    %4295 = vmatpush1.msra.mxu0 0.0
    %4296 = vmatprep.subr.mxu0 0.0
    %4297 = vmatpush1.msra.mxu0 0.0
    %4298 = vmatprep.mubr.f32.mxu0 0.0
    %4299 = vmatmul.mubr.f32.gmra.mrb[0].mxu0 %v4232
    %v4300 = vpop.f32.mrb[0].mxu0
    %v4301 = vadd.f32 0.0, %v4300
    %v4302 = vpop.f32.mrb[0].mxu0
    %4303 = vdwg.mxu0
    %4304 = vrot.lane.b32.xlu0 %v291, 32
    %v4305 = vpop.permute.xlu0 %4304
    %4306 = vrot.lane.b32.xlu0 %v293, 32
    %v4307 = vpop.permute.xlu0 %4306
    %v4308 = vsel %vm358, %v4305, 0
    %v4310 = vsel %vm358, %v4307, 0
    %4312 = vmatprep.subr.mxu0 0.0
    %4313 = vmatpush1.xpose.msra.mxu0 %v4310
    %4314 = vmatprep.subr.mxu0 0.0
    %4315 = vmatpush1.xpose.msra.mxu0 0.0
    %4316 = vmatprep.subr.mxu0 0.0
    %4317 = vmatpush1.xpose.msra.mxu0 0.0
    %4318 = vmatprep.subr.mxu0 0.0
    %4319 = vmatpush1.xpose.msra.mxu0 0.0
    %4320 = vmatprep.subr.mxu0 0.0
    %4321 = vmatpush1.xpose.msra.mxu0 0.0
    %4322 = vmatprep.subr.mxu0 0.0
    %4323 = vmatpush1.xpose.msra.mxu0 0.0
    %4324 = vmatprep.subr.mxu0 0.0
    %4325 = vmatpush1.xpose.msra.mxu0 0.0
    %4326 = vmatprep.subr.mxu0 0.0
    %4327 = vmatpush1.xpose.msra.mxu0 0.0
    %4328 = vmatprep.subr.mxu0 0.0
    %4329 = vmatpush1.xpose.msra.mxu0 0.0
    %4330 = vmatprep.subr.mxu0 0.0
    %4331 = vmatpush1.xpose.msra.mxu0 0.0
    %4332 = vmatprep.subr.mxu0 0.0
    %4333 = vmatpush1.xpose.msra.mxu0 0.0
    %4334 = vmatprep.subr.mxu0 0.0
    %4335 = vmatpush1.xpose.msra.mxu0 0.0
    %4336 = vmatprep.subr.mxu0 0.0
    %4337 = vmatpush1.xpose.msra.mxu0 0.0
    %4338 = vmatprep.subr.mxu0 0.0
    %4339 = vmatpush1.xpose.msra.mxu0 0.0
    %4340 = vmatprep.subr.mxu0 0.0
    %4341 = vmatpush1.xpose.msra.mxu0 0.0
    %4342 = vmatprep.subr.mxu0 0.0
    %4343 = vmatpush1.xpose.msra.mxu0 0.0
    %4344 = vmatprep.subr.mxu0 0.0
    %4345 = vmatpush1.xpose.msra.mxu0 0.0
    %4346 = vmatprep.subr.mxu0 0.0
    %4347 = vmatpush1.xpose.msra.mxu0 0.0
    %4348 = vmatprep.subr.mxu0 0.0
    %4349 = vmatpush1.xpose.msra.mxu0 0.0
    %4350 = vmatprep.subr.mxu0 0.0
    %4351 = vmatpush1.xpose.msra.mxu0 0.0
    %4352 = vmatprep.subr.mxu0 0.0
    %4353 = vmatpush1.xpose.msra.mxu0 0.0
    %4354 = vmatprep.subr.mxu0 0.0
    %4355 = vmatpush1.xpose.msra.mxu0 0.0
    %4356 = vmatprep.subr.mxu0 0.0
    %4357 = vmatpush1.xpose.msra.mxu0 0.0
    %4358 = vmatprep.subr.mxu0 0.0
    %4359 = vmatpush1.xpose.msra.mxu0 0.0
    %4360 = vmatprep.subr.mxu0 0.0
    %4361 = vmatpush1.xpose.msra.mxu0 0.0
    %4362 = vmatprep.subr.mxu0 0.0
    %4363 = vmatpush1.xpose.msra.mxu0 0.0
    %4364 = vmatprep.subr.mxu0 0.0
    %4365 = vmatpush1.xpose.msra.mxu0 0.0
    %4366 = vmatprep.subr.mxu0 0.0
    %4367 = vmatpush1.xpose.msra.mxu0 0.0
    %4368 = vmatprep.subr.mxu0 0.0
    %4369 = vmatpush1.xpose.msra.mxu0 0.0
    %4370 = vmatprep.subr.mxu0 0.0
    %4371 = vmatpush1.xpose.msra.mxu0 0.0
    %4372 = vmatprep.subr.mxu0 0.0
    %4373 = vmatpush1.xpose.msra.mxu0 0.0
    %4374 = vmatprep.subr.mxu0 0.0
    %4375 = vmatpush1.xpose.msra.mxu0 0.0
    %4376 = vmatprep.mubr.f32.mxu0 0.0
    %4377 = vmatmul.mubr.f32.gmra.mrb[0].mxu0 %v4308
    %v4378 = vpop.f32.mrb[0].mxu0
    %v4379 = vadd.f32 0.0, %v4378
    %v4380 = vpop.f32.mrb[0].mxu0
    %4381 = vdwg.mxu0
    %4382 = vrot.lane.b32.xlu0 %v295, 32
    %v4383 = vpop.permute.xlu0 %4382
    %4384 = vrot.lane.b32.xlu0 %v297, 32
    %v4385 = vpop.permute.xlu0 %4384
    %v4386 = vsel %vm358, %v4383, 0
    %v4388 = vsel %vm358, %v4385, 0
    %4390 = vmatprep.subr.mxu0 0.0
    %4391 = vmatpush1.xpose.msra.mxu0 %v4388
    %4392 = vmatprep.subr.mxu0 0.0
    %4393 = vmatpush1.xpose.msra.mxu0 0.0
    %4394 = vmatprep.subr.mxu0 0.0
    %4395 = vmatpush1.xpose.msra.mxu0 0.0
    %4396 = vmatprep.subr.mxu0 0.0
    %4397 = vmatpush1.xpose.msra.mxu0 0.0
    %4398 = vmatprep.subr.mxu0 0.0
    %4399 = vmatpush1.xpose.msra.mxu0 0.0
    %4400 = vmatprep.subr.mxu0 0.0
    %4401 = vmatpush1.xpose.msra.mxu0 0.0
    %4402 = vmatprep.subr.mxu0 0.0
    %4403 = vmatpush1.xpose.msra.mxu0 0.0
    %4404 = vmatprep.subr.mxu0 0.0
    %4405 = vmatpush1.xpose.msra.mxu0 0.0
    %4406 = vmatprep.subr.mxu0 0.0
    %4407 = vmatpush1.xpose.msra.mxu0 0.0
    %4408 = vmatprep.subr.mxu0 0.0
    %4409 = vmatpush1.xpose.msra.mxu0 0.0
    %4410 = vmatprep.subr.mxu0 0.0
    %4411 = vmatpush1.xpose.msra.mxu0 0.0
    %4412 = vmatprep.subr.mxu0 0.0
    %4413 = vmatpush1.xpose.msra.mxu0 0.0
    %4414 = vmatprep.subr.mxu0 0.0
    %4415 = vmatpush1.xpose.msra.mxu0 0.0
    %4416 = vmatprep.subr.mxu0 0.0
    %4417 = vmatpush1.xpose.msra.mxu0 0.0
    %4418 = vmatprep.subr.mxu0 0.0
    %4419 = vmatpush1.xpose.msra.mxu0 0.0
    %4420 = vmatprep.subr.mxu0 0.0
    %4421 = vmatpush1.xpose.msra.mxu0 0.0
    %4422 = vmatprep.subr.mxu0 0.0
    %4423 = vmatpush1.xpose.msra.mxu0 0.0
    %4424 = vmatprep.subr.mxu0 0.0
    %4425 = vmatpush1.xpose.msra.mxu0 0.0
    %4426 = vmatprep.subr.mxu0 0.0
    %4427 = vmatpush1.xpose.msra.mxu0 0.0
    %4428 = vmatprep.subr.mxu0 0.0
    %4429 = vmatpush1.xpose.msra.mxu0 0.0
    %4430 = vmatprep.subr.mxu0 0.0
    %4431 = vmatpush1.xpose.msra.mxu0 0.0
    %4432 = vmatprep.subr.mxu0 0.0
    %4433 = vmatpush1.xpose.msra.mxu0 0.0
    %4434 = vmatprep.subr.mxu0 0.0
    %4435 = vmatpush1.xpose.msra.mxu0 0.0
    %4436 = vmatprep.subr.mxu0 0.0
    %4437 = vmatpush1.xpose.msra.mxu0 0.0
    %4438 = vmatprep.subr.mxu0 0.0
    %4439 = vmatpush1.xpose.msra.mxu0 0.0
    %4440 = vmatprep.subr.mxu0 0.0
    %4441 = vmatpush1.xpose.msra.mxu0 0.0
    %4442 = vmatprep.subr.mxu0 0.0
    %4443 = vmatpush1.xpose.msra.mxu0 0.0
    %4444 = vmatprep.subr.mxu0 0.0
    %4445 = vmatpush1.xpose.msra.mxu0 0.0
    %4446 = vmatprep.subr.mxu0 0.0
    %4447 = vmatpush1.xpose.msra.mxu0 0.0
    %4448 = vmatprep.subr.mxu0 0.0
    %4449 = vmatpush1.xpose.msra.mxu0 0.0
    %4450 = vmatprep.subr.mxu0 0.0
    %4451 = vmatpush1.xpose.msra.mxu0 0.0
    %4452 = vmatprep.subr.mxu0 0.0
    %4453 = vmatpush1.xpose.msra.mxu0 0.0
    %4454 = vmatprep.mubr.f32.mxu0 0.0
    %4455 = vmatmul.mubr.f32.gmra.mrb[0].mxu0 %v4386
    %v4456 = vpop.f32.mrb[0].mxu0
    %v4457 = vadd.f32 0.0, %v4456
    %v4458 = vpop.f32.mrb[0].mxu0
    %4459 = vdwg.mxu0
    %4460 = vrot.lane.b32.xlu0 %v301, 32
    %v4461 = vpop.permute.xlu0 %4460
    %4462 = vrot.lane.b32.xlu0 %v303, 32
    %v4463 = vpop.permute.xlu0 %4462
    %v4464 = vsel %vm358, %v4461, 0
    %v4466 = vsel %vm358, %v4463, 0
    %4468 = vmatprep.subr.mxu0 0.0
    %4469 = vmatpush1.xpose.msra.mxu0 %v4466
    %4470 = vmatprep.subr.mxu0 0.0
    %4471 = vmatpush1.xpose.msra.mxu0 0.0
    %4472 = vmatprep.subr.mxu0 0.0
    %4473 = vmatpush1.xpose.msra.mxu0 0.0
    %4474 = vmatprep.subr.mxu0 0.0
    %4475 = vmatpush1.xpose.msra.mxu0 0.0
    %4476 = vmatprep.subr.mxu0 0.0
    %4477 = vmatpush1.xpose.msra.mxu0 0.0
    %4478 = vmatprep.subr.mxu0 0.0
    %4479 = vmatpush1.xpose.msra.mxu0 0.0
    %4480 = vmatprep.subr.mxu0 0.0
    %4481 = vmatpush1.xpose.msra.mxu0 0.0
    %4482 = vmatprep.subr.mxu0 0.0
    %4483 = vmatpush1.xpose.msra.mxu0 0.0
    %4484 = vmatprep.subr.mxu0 0.0
    %4485 = vmatpush1.xpose.msra.mxu0 0.0
    %4486 = vmatprep.subr.mxu0 0.0
    %4487 = vmatpush1.xpose.msra.mxu0 0.0
    %4488 = vmatprep.subr.mxu0 0.0
    %4489 = vmatpush1.xpose.msra.mxu0 0.0
    %4490 = vmatprep.subr.mxu0 0.0
    %4491 = vmatpush1.xpose.msra.mxu0 0.0
    %4492 = vmatprep.subr.mxu0 0.0
    %4493 = vmatpush1.xpose.msra.mxu0 0.0
    %4494 = vmatprep.subr.mxu0 0.0
    %4495 = vmatpush1.xpose.msra.mxu0 0.0
    %4496 = vmatprep.subr.mxu0 0.0
    %4497 = vmatpush1.xpose.msra.mxu0 0.0
    %4498 = vmatprep.subr.mxu0 0.0
    %4499 = vmatpush1.xpose.msra.mxu0 0.0
    %4500 = vmatprep.subr.mxu0 0.0
    %4501 = vmatpush1.xpose.msra.mxu0 0.0
    %4502 = vmatprep.subr.mxu0 0.0
    %4503 = vmatpush1.xpose.msra.mxu0 0.0
    %4504 = vmatprep.subr.mxu0 0.0
    %4505 = vmatpush1.xpose.msra.mxu0 0.0
    %4506 = vmatprep.subr.mxu0 0.0
    %4507 = vmatpush1.xpose.msra.mxu0 0.0
    %4508 = vmatprep.subr.mxu0 0.0
    %4509 = vmatpush1.xpose.msra.mxu0 0.0
    %4510 = vmatprep.subr.mxu0 0.0
    %4511 = vmatpush1.xpose.msra.mxu0 0.0
    %4512 = vmatprep.subr.mxu0 0.0
    %4513 = vmatpush1.xpose.msra.mxu0 0.0
    %4514 = vmatprep.subr.mxu0 0.0
    %4515 = vmatpush1.xpose.msra.mxu0 0.0
    %4516 = vmatprep.subr.mxu0 0.0
    %4517 = vmatpush1.xpose.msra.mxu0 0.0
    %4518 = vmatprep.subr.mxu0 0.0
    %4519 = vmatpush1.xpose.msra.mxu0 0.0
    %4520 = vmatprep.subr.mxu0 0.0
    %4521 = vmatpush1.xpose.msra.mxu0 0.0
    %4522 = vmatprep.subr.mxu0 0.0
    %4523 = vmatpush1.xpose.msra.mxu0 0.0
    %4524 = vmatprep.subr.mxu0 0.0
    %4525 = vmatpush1.xpose.msra.mxu0 0.0
    %4526 = vmatprep.subr.mxu0 0.0
    %4527 = vmatpush1.xpose.msra.mxu0 0.0
    %4528 = vmatprep.subr.mxu0 0.0
    %4529 = vmatpush1.xpose.msra.mxu0 0.0
    %4530 = vmatprep.subr.mxu0 0.0
    %4531 = vmatpush1.xpose.msra.mxu0 0.0
    %4532 = vmatprep.mubr.f32.mxu0 0.0
    %4533 = vmatmul.mubr.f32.gmra.mrb[0].mxu0 %v4464
    %v4534 = vpop.f32.mrb[0].mxu0
    %v4535 = vadd.f32 0.0, %v4534
    %v4536 = vpop.f32.mrb[0].mxu0
    %4537 = vdwg.mxu0
    %4538 = vrot.lane.b32.xlu0 %v305, 32
    %v4539 = vpop.permute.xlu0 %4538
    %4540 = vrot.lane.b32.xlu0 %v307, 32
    %v4541 = vpop.permute.xlu0 %4540
    %v4542 = vsel %vm358, %v4539, 0
    %v4544 = vsel %vm358, %v4541, 0
    %4546 = vmatprep.subr.mxu0 0.0
    %4547 = vmatpush1.xpose.msra.mxu0 %v4544
    %4548 = vmatprep.subr.mxu0 0.0
    %4549 = vmatpush1.xpose.msra.mxu0 0.0
    %4550 = vmatprep.subr.mxu0 0.0
    %4551 = vmatpush1.xpose.msra.mxu0 0.0
    %4552 = vmatprep.subr.mxu0 0.0
    %4553 = vmatpush1.xpose.msra.mxu0 0.0
    %4554 = vmatprep.subr.mxu0 0.0
    %4555 = vmatpush1.xpose.msra.mxu0 0.0
    %4556 = vmatprep.subr.mxu0 0.0
    %4557 = vmatpush1.xpose.msra.mxu0 0.0
    %4558 = vmatprep.subr.mxu0 0.0
    %4559 = vmatpush1.xpose.msra.mxu0 0.0
    %4560 = vmatprep.subr.mxu0 0.0
    %4561 = vmatpush1.xpose.msra.mxu0 0.0
    %4562 = vmatprep.subr.mxu0 0.0
    %4563 = vmatpush1.xpose.msra.mxu0 0.0
    %4564 = vmatprep.subr.mxu0 0.0
    %4565 = vmatpush1.xpose.msra.mxu0 0.0
    %4566 = vmatprep.subr.mxu0 0.0
    %4567 = vmatpush1.xpose.msra.mxu0 0.0
    %4568 = vmatprep.subr.mxu0 0.0
    %4569 = vmatpush1.xpose.msra.mxu0 0.0
    %4570 = vmatprep.subr.mxu0 0.0
    %4571 = vmatpush1.xpose.msra.mxu0 0.0
    %4572 = vmatprep.subr.mxu0 0.0
    %4573 = vmatpush1.xpose.msra.mxu0 0.0
    %4574 = vmatprep.subr.mxu0 0.0
    %4575 = vmatpush1.xpose.msra.mxu0 0.0
    %4576 = vmatprep.subr.mxu0 0.0
    %4577 = vmatpush1.xpose.msra.mxu0 0.0
    %4578 = vmatprep.subr.mxu0 0.0
    %4579 = vmatpush1.xpose.msra.mxu0 0.0
    %4580 = vmatprep.subr.mxu0 0.0
    %4581 = vmatpush1.xpose.msra.mxu0 0.0
    %4582 = vmatprep.subr.mxu0 0.0
    %4583 = vmatpush1.xpose.msra.mxu0 0.0
    %4584 = vmatprep.subr.mxu0 0.0
    %4585 = vmatpush1.xpose.msra.mxu0 0.0
    %4586 = vmatprep.subr.mxu0 0.0
    %4587 = vmatpush1.xpose.msra.mxu0 0.0
    %4588 = vmatprep.subr.mxu0 0.0
    %4589 = vmatpush1.xpose.msra.mxu0 0.0
    %4590 = vmatprep.subr.mxu0 0.0
    %4591 = vmatpush1.xpose.msra.mxu0 0.0
    %4592 = vmatprep.subr.mxu0 0.0
    %4593 = vmatpush1.xpose.msra.mxu0 0.0
    %4594 = vmatprep.subr.mxu0 0.0
    %4595 = vmatpush1.xpose.msra.mxu0 0.0
    %4596 = vmatprep.subr.mxu0 0.0
    %4597 = vmatpush1.xpose.msra.mxu0 0.0
    %4598 = vmatprep.subr.mxu0 0.0
    %4599 = vmatpush1.xpose.msra.mxu0 0.0
    %4600 = vmatprep.subr.mxu0 0.0
    %4601 = vmatpush1.xpose.msra.mxu0 0.0
    %4602 = vmatprep.subr.mxu0 0.0
    %4603 = vmatpush1.xpose.msra.mxu0 0.0
    %4604 = vmatprep.subr.mxu0 0.0
    %4605 = vmatpush1.xpose.msra.mxu0 0.0
    %4606 = vmatprep.subr.mxu0 0.0
    %4607 = vmatpush1.xpose.msra.mxu0 0.0
    %4608 = vmatprep.subr.mxu0 0.0
    %4609 = vmatpush1.xpose.msra.mxu0 0.0
    %4610 = vmatprep.mubr.f32.mxu0 0.0
    %4611 = vmatmul.mubr.f32.gmra.mrb[0].mxu0 %v4542
    %v4612 = vpop.f32.mrb[0].mxu0
    %v4613 = vadd.f32 0.0, %v4612
    %v4614 = vpop.f32.mrb[0].mxu0
    %4615 = vdwg.mxu0
    %v4616 = vsel %vm663, %v4379, -inf
    %4617 = vmax.xlane.f32.xlu0 %v4616
    %v4618 = vpop.xlane.xlu0 %4617
    %v4619 = vsel %vm663, %v4457, -inf
    %4620 = vmax.xlane.f32.xlu0 %v4619
    %v4621 = vpop.xlane.xlu0 %4620
    %v4622 = vsel %vm663, %v4535, -inf
    %4623 = vmax.xlane.f32.xlu0 %v4622
    %v4624 = vpop.xlane.xlu0 %4623
    %v4625 = vsel %vm663, %v4613, -inf
    %4626 = vmax.xlane.f32.xlu0 %v4625
    %v4627 = vpop.xlane.xlu0 %4626
    %v4628 = vsub.f32 %v4379, %v4618
    %v4629 = vsub.f32 %v4457, %v4621
    %v4630 = vsub.f32 %v4535, %v4624
    %v4631 = vsub.f32 %v4613, %v4627
    %v4632 = vmul.f32 %v4628, 1.442695
    %v4633 = vpow.pop %v4632
    %v4634 = vmul.f32 %v4629, 1.442695
    %v4635 = vpow.pop %v4634
    %v4636 = vmul.f32 %v4630, 1.442695
    %v4637 = vpow.pop %v4636
    %v4638 = vmul.f32 %v4631, 1.442695
    %v4639 = vpow.pop %v4638
    %v4640 = vsel %vm663, %v4633, 0.0
    %4641 = vadd.xlane.f32.xlu0 %v4640
    %v4642 = vpop.xlane.xlu0 %4641
    %v4643 = vsel %vm663, %v4635, 0.0
    %4644 = vadd.xlane.f32.xlu0 %v4643
    %v4645 = vpop.xlane.xlu0 %4644
    %v4646 = vsel %vm663, %v4637, 0.0
    %4647 = vadd.xlane.f32.xlu0 %v4646
    %v4648 = vpop.xlane.xlu0 %4647
    %v4649 = vsel %vm663, %v4639, 0.0
    %4650 = vadd.xlane.f32.xlu0 %v4649
    %v4651 = vpop.xlane.xlu0 %4650
    %v4652 = vrcp.pop %v4642
    %v4653 = vrcp.pop %v4645
    %v4654 = vrcp.pop %v4648
    %v4655 = vrcp.pop %v4651
    %v4656 = vmul.f32 %v4633, %v4652
    %v4657 = vmul.f32 %v4635, %v4653
    %v4658 = vmul.f32 %v4637, %v4654
    %v4659 = vmul.f32 %v4639, %v4655
    %4660 = vrot.lane.b32.xlu0 %v344, 32
    %v4661 = vpop.permute.xlu0 %4660
    %v4664 = vsel %vm663, %v4656, 0
    %4666 = vmatprep.subr.mxu0 0.0
    %4667 = vmatpush1.msra.mxu0 %v4661
    %4668 = vmatprep.subr.mxu0 0.0
    %4669 = vmatpush1.msra.mxu0 0.0
    %4670 = vmatprep.subr.mxu0 0.0
    %4671 = vmatpush1.msra.mxu0 0.0
    %4672 = vmatprep.subr.mxu0 0.0
    %4673 = vmatpush1.msra.mxu0 0.0
    %4674 = vmatprep.subr.mxu0 0.0
    %4675 = vmatpush1.msra.mxu0 0.0
    %4676 = vmatprep.subr.mxu0 0.0
    %4677 = vmatpush1.msra.mxu0 0.0
    %4678 = vmatprep.subr.mxu0 0.0
    %4679 = vmatpush1.msra.mxu0 0.0
    %4680 = vmatprep.subr.mxu0 0.0
    %4681 = vmatpush1.msra.mxu0 0.0
    %4682 = vmatprep.subr.mxu0 0.0
    %4683 = vmatpush1.msra.mxu0 0.0
    %4684 = vmatprep.subr.mxu0 0.0
    %4685 = vmatpush1.msra.mxu0 0.0
    %4686 = vmatprep.subr.mxu0 0.0
    %4687 = vmatpush1.msra.mxu0 0.0
    %4688 = vmatprep.subr.mxu0 0.0
    %4689 = vmatpush1.msra.mxu0 0.0
    %4690 = vmatprep.subr.mxu0 0.0
    %4691 = vmatpush1.msra.mxu0 0.0
    %4692 = vmatprep.subr.mxu0 0.0
    %4693 = vmatpush1.msra.mxu0 0.0
    %4694 = vmatprep.subr.mxu0 0.0
    %4695 = vmatpush1.msra.mxu0 0.0
    %4696 = vmatprep.subr.mxu0 0.0
    %4697 = vmatpush1.msra.mxu0 0.0
    %4698 = vmatprep.subr.mxu0 0.0
    %4699 = vmatpush1.msra.mxu0 0.0
    %4700 = vmatprep.subr.mxu0 0.0
    %4701 = vmatpush1.msra.mxu0 0.0
    %4702 = vmatprep.subr.mxu0 0.0
    %4703 = vmatpush1.msra.mxu0 0.0
    %4704 = vmatprep.subr.mxu0 0.0
    %4705 = vmatpush1.msra.mxu0 0.0
    %4706 = vmatprep.subr.mxu0 0.0
    %4707 = vmatpush1.msra.mxu0 0.0
    %4708 = vmatprep.subr.mxu0 0.0
    %4709 = vmatpush1.msra.mxu0 0.0
    %4710 = vmatprep.subr.mxu0 0.0
    %4711 = vmatpush1.msra.mxu0 0.0
    %4712 = vmatprep.subr.mxu0 0.0
    %4713 = vmatpush1.msra.mxu0 0.0
    %4714 = vmatprep.subr.mxu0 0.0
    %4715 = vmatpush1.msra.mxu0 0.0
    %4716 = vmatprep.subr.mxu0 0.0
    %4717 = vmatpush1.msra.mxu0 0.0
    %4718 = vmatprep.subr.mxu0 0.0
    %4719 = vmatpush1.msra.mxu0 0.0
    %4720 = vmatprep.subr.mxu0 0.0
    %4721 = vmatpush1.msra.mxu0 0.0
    %4722 = vmatprep.subr.mxu0 0.0
    %4723 = vmatpush1.msra.mxu0 0.0
    %4724 = vmatprep.subr.mxu0 0.0
    %4725 = vmatpush1.msra.mxu0 0.0
    %4726 = vmatprep.subr.mxu0 0.0
    %4727 = vmatpush1.msra.mxu0 0.0
    %4728 = vmatprep.subr.mxu0 0.0
    %4729 = vmatpush1.msra.mxu0 0.0
    %4730 = vmatprep.mubr.f32.mxu0 0.0
    %4731 = vmatmul.mubr.f32.gmra.mrb[0].mxu0 %v4664
    %v4732 = vpop.f32.mrb[0].mxu0
    %v4733 = vadd.f32 0.0, %v4732
    %v4734 = vpop.f32.mrb[0].mxu0
    %4735 = vdwg.mxu0
    %4736 = vrot.lane.b32.xlu0 %v347, 32
    %v4737 = vpop.permute.xlu0 %4736
    %v4740 = vsel %vm663, %v4657, 0
    %4742 = vmatprep.subr.mxu0 0.0
    %4743 = vmatpush1.msra.mxu0 %v4737
    %4744 = vmatprep.subr.mxu0 0.0
    %4745 = vmatpush1.msra.mxu0 0.0
    %4746 = vmatprep.subr.mxu0 0.0
    %4747 = vmatpush1.msra.mxu0 0.0
    %4748 = vmatprep.subr.mxu0 0.0
    %4749 = vmatpush1.msra.mxu0 0.0
    %4750 = vmatprep.subr.mxu0 0.0
    %4751 = vmatpush1.msra.mxu0 0.0
    %4752 = vmatprep.subr.mxu0 0.0
    %4753 = vmatpush1.msra.mxu0 0.0
    %4754 = vmatprep.subr.mxu0 0.0
    %4755 = vmatpush1.msra.mxu0 0.0
    %4756 = vmatprep.subr.mxu0 0.0
    %4757 = vmatpush1.msra.mxu0 0.0
    %4758 = vmatprep.subr.mxu0 0.0
    %4759 = vmatpush1.msra.mxu0 0.0
    %4760 = vmatprep.subr.mxu0 0.0
    %4761 = vmatpush1.msra.mxu0 0.0
    %4762 = vmatprep.subr.mxu0 0.0
    %4763 = vmatpush1.msra.mxu0 0.0
    %4764 = vmatprep.subr.mxu0 0.0
    %4765 = vmatpush1.msra.mxu0 0.0
    %4766 = vmatprep.subr.mxu0 0.0
    %4767 = vmatpush1.msra.mxu0 0.0
    %4768 = vmatprep.subr.mxu0 0.0
    %4769 = vmatpush1.msra.mxu0 0.0
    %4770 = vmatprep.subr.mxu0 0.0
    %4771 = vmatpush1.msra.mxu0 0.0
    %4772 = vmatprep.subr.mxu0 0.0
    %4773 = vmatpush1.msra.mxu0 0.0
    %4774 = vmatprep.subr.mxu0 0.0
    %4775 = vmatpush1.msra.mxu0 0.0
    %4776 = vmatprep.subr.mxu0 0.0
    %4777 = vmatpush1.msra.mxu0 0.0
    %4778 = vmatprep.subr.mxu0 0.0
    %4779 = vmatpush1.msra.mxu0 0.0
    %4780 = vmatprep.subr.mxu0 0.0
    %4781 = vmatpush1.msra.mxu0 0.0
    %4782 = vmatprep.subr.mxu0 0.0
    %4783 = vmatpush1.msra.mxu0 0.0
    %4784 = vmatprep.subr.mxu0 0.0
    %4785 = vmatpush1.msra.mxu0 0.0
    %4786 = vmatprep.subr.mxu0 0.0
    %4787 = vmatpush1.msra.mxu0 0.0
    %4788 = vmatprep.subr.mxu0 0.0
    %4789 = vmatpush1.msra.mxu0 0.0
    %4790 = vmatprep.subr.mxu0 0.0
    %4791 = vmatpush1.msra.mxu0 0.0
    %4792 = vmatprep.subr.mxu0 0.0
    %4793 = vmatpush1.msra.mxu0 0.0
    %4794 = vmatprep.subr.mxu0 0.0
    %4795 = vmatpush1.msra.mxu0 0.0
    %4796 = vmatprep.subr.mxu0 0.0
    %4797 = vmatpush1.msra.mxu0 0.0
    %4798 = vmatprep.subr.mxu0 0.0
    %4799 = vmatpush1.msra.mxu0 0.0
    %4800 = vmatprep.subr.mxu0 0.0
    %4801 = vmatpush1.msra.mxu0 0.0
    %4802 = vmatprep.subr.mxu0 0.0
    %4803 = vmatpush1.msra.mxu0 0.0
    %4804 = vmatprep.subr.mxu0 0.0
    %4805 = vmatpush1.msra.mxu0 0.0
    %4806 = vmatprep.mubr.f32.mxu0 0.0
    %4807 = vmatmul.mubr.f32.gmra.mrb[0].mxu0 %v4740
    %v4808 = vpop.f32.mrb[0].mxu0
    %v4809 = vadd.f32 0.0, %v4808
    %v4810 = vpop.f32.mrb[0].mxu0
    %4811 = vdwg.mxu0
    %4812 = vrot.lane.b32.xlu0 %v352, 32
    %v4813 = vpop.permute.xlu0 %4812
    %v4816 = vsel %vm663, %v4658, 0
    %4818 = vmatprep.subr.mxu0 0.0
    %4819 = vmatpush1.msra.mxu0 %v4813
    %4820 = vmatprep.subr.mxu0 0.0
    %4821 = vmatpush1.msra.mxu0 0.0
    %4822 = vmatprep.subr.mxu0 0.0
    %4823 = vmatpush1.msra.mxu0 0.0
    %4824 = vmatprep.subr.mxu0 0.0
    %4825 = vmatpush1.msra.mxu0 0.0
    %4826 = vmatprep.subr.mxu0 0.0
    %4827 = vmatpush1.msra.mxu0 0.0
    %4828 = vmatprep.subr.mxu0 0.0
    %4829 = vmatpush1.msra.mxu0 0.0
    %4830 = vmatprep.subr.mxu0 0.0
    %4831 = vmatpush1.msra.mxu0 0.0
    %4832 = vmatprep.subr.mxu0 0.0
    %4833 = vmatpush1.msra.mxu0 0.0
    %4834 = vmatprep.subr.mxu0 0.0
    %4835 = vmatpush1.msra.mxu0 0.0
    %4836 = vmatprep.subr.mxu0 0.0
    %4837 = vmatpush1.msra.mxu0 0.0
    %4838 = vmatprep.subr.mxu0 0.0
    %4839 = vmatpush1.msra.mxu0 0.0
    %4840 = vmatprep.subr.mxu0 0.0
    %4841 = vmatpush1.msra.mxu0 0.0
    %4842 = vmatprep.subr.mxu0 0.0
    %4843 = vmatpush1.msra.mxu0 0.0
    %4844 = vmatprep.subr.mxu0 0.0
    %4845 = vmatpush1.msra.mxu0 0.0
    %4846 = vmatprep.subr.mxu0 0.0
    %4847 = vmatpush1.msra.mxu0 0.0
    %4848 = vmatprep.subr.mxu0 0.0
    %4849 = vmatpush1.msra.mxu0 0.0
    %4850 = vmatprep.subr.mxu0 0.0
    %4851 = vmatpush1.msra.mxu0 0.0
    %4852 = vmatprep.subr.mxu0 0.0
    %4853 = vmatpush1.msra.mxu0 0.0
    %4854 = vmatprep.subr.mxu0 0.0
    %4855 = vmatpush1.msra.mxu0 0.0
    %4856 = vmatprep.subr.mxu0 0.0
    %4857 = vmatpush1.msra.mxu0 0.0
    %4858 = vmatprep.subr.mxu0 0.0
    %4859 = vmatpush1.msra.mxu0 0.0
    %4860 = vmatprep.subr.mxu0 0.0
    %4861 = vmatpush1.msra.mxu0 0.0
    %4862 = vmatprep.subr.mxu0 0.0
    %4863 = vmatpush1.msra.mxu0 0.0
    %4864 = vmatprep.subr.mxu0 0.0
    %4865 = vmatpush1.msra.mxu0 0.0
    %4866 = vmatprep.subr.mxu0 0.0
    %4867 = vmatpush1.msra.mxu0 0.0
    %4868 = vmatprep.subr.mxu0 0.0
    %4869 = vmatpush1.msra.mxu0 0.0
    %4870 = vmatprep.subr.mxu0 0.0
    %4871 = vmatpush1.msra.mxu0 0.0
    %4872 = vmatprep.subr.mxu0 0.0
    %4873 = vmatpush1.msra.mxu0 0.0
    %4874 = vmatprep.subr.mxu0 0.0
    %4875 = vmatpush1.msra.mxu0 0.0
    %4876 = vmatprep.subr.mxu0 0.0
    %4877 = vmatpush1.msra.mxu0 0.0
    %4878 = vmatprep.subr.mxu0 0.0
    %4879 = vmatpush1.msra.mxu0 0.0
    %4880 = vmatprep.subr.mxu0 0.0
    %4881 = vmatpush1.msra.mxu0 0.0
    %4882 = vmatprep.mubr.f32.mxu0 0.0
    %4883 = vmatmul.mubr.f32.gmra.mrb[0].mxu0 %v4816
    %v4884 = vpop.f32.mrb[0].mxu0
    %v4885 = vadd.f32 0.0, %v4884
    %v4886 = vpop.f32.mrb[0].mxu0
    %4887 = vdwg.mxu0
    %4888 = vrot.lane.b32.xlu0 %v355, 32
    %v4889 = vpop.permute.xlu0 %4888
    %v4892 = vsel %vm663, %v4659, 0
    %4894 = vmatprep.subr.mxu0 0.0
    %4895 = vmatpush1.msra.mxu0 %v4889
    %4896 = vmatprep.subr.mxu0 0.0
    %4897 = vmatpush1.msra.mxu0 0.0
    %4898 = vmatprep.subr.mxu0 0.0
    %4899 = vmatpush1.msra.mxu0 0.0
    %4900 = vmatprep.subr.mxu0 0.0
    %4901 = vmatpush1.msra.mxu0 0.0
    %4902 = vmatprep.subr.mxu0 0.0
    %4903 = vmatpush1.msra.mxu0 0.0
    %4904 = vmatprep.subr.mxu0 0.0
    %4905 = vmatpush1.msra.mxu0 0.0
    %4906 = vmatprep.subr.mxu0 0.0
    %4907 = vmatpush1.msra.mxu0 0.0
    %4908 = vmatprep.subr.mxu0 0.0
    %4909 = vmatpush1.msra.mxu0 0.0
    %4910 = vmatprep.subr.mxu0 0.0
    %4911 = vmatpush1.msra.mxu0 0.0
    %4912 = vmatprep.subr.mxu0 0.0
    %4913 = vmatpush1.msra.mxu0 0.0
    %4914 = vmatprep.subr.mxu0 0.0
    %4915 = vmatpush1.msra.mxu0 0.0
    %4916 = vmatprep.subr.mxu0 0.0
    %4917 = vmatpush1.msra.mxu0 0.0
    %4918 = vmatprep.subr.mxu0 0.0
    %4919 = vmatpush1.msra.mxu0 0.0
    %4920 = vmatprep.subr.mxu0 0.0
    %4921 = vmatpush1.msra.mxu0 0.0
    %4922 = vmatprep.subr.mxu0 0.0
    %4923 = vmatpush1.msra.mxu0 0.0
    %4924 = vmatprep.subr.mxu0 0.0
    %4925 = vmatpush1.msra.mxu0 0.0
    %4926 = vmatprep.subr.mxu0 0.0
    %4927 = vmatpush1.msra.mxu0 0.0
    %4928 = vmatprep.subr.mxu0 0.0
    %4929 = vmatpush1.msra.mxu0 0.0
    %4930 = vmatprep.subr.mxu0 0.0
    %4931 = vmatpush1.msra.mxu0 0.0
    %4932 = vmatprep.subr.mxu0 0.0
    %4933 = vmatpush1.msra.mxu0 0.0
    %4934 = vmatprep.subr.mxu0 0.0
    %4935 = vmatpush1.msra.mxu0 0.0
    %4936 = vmatprep.subr.mxu0 0.0
    %4937 = vmatpush1.msra.mxu0 0.0
    %4938 = vmatprep.subr.mxu0 0.0
    %4939 = vmatpush1.msra.mxu0 0.0
    %4940 = vmatprep.subr.mxu0 0.0
    %4941 = vmatpush1.msra.mxu0 0.0
    %4942 = vmatprep.subr.mxu0 0.0
    %4943 = vmatpush1.msra.mxu0 0.0
    %4944 = vmatprep.subr.mxu0 0.0
    %4945 = vmatpush1.msra.mxu0 0.0
    %4946 = vmatprep.subr.mxu0 0.0
    %4947 = vmatpush1.msra.mxu0 0.0
    %4948 = vmatprep.subr.mxu0 0.0
    %4949 = vmatpush1.msra.mxu0 0.0
    %4950 = vmatprep.subr.mxu0 0.0
    %4951 = vmatpush1.msra.mxu0 0.0
    %4952 = vmatprep.subr.mxu0 0.0
    %4953 = vmatpush1.msra.mxu0 0.0
    %4954 = vmatprep.subr.mxu0 0.0
    %4955 = vmatpush1.msra.mxu0 0.0
    %4956 = vmatprep.subr.mxu0 0.0
    %4957 = vmatpush1.msra.mxu0 0.0
    %4958 = vmatprep.mubr.f32.mxu0 0.0
    %4959 = vmatmul.mubr.f32.gmra.mrb[0].mxu0 %v4892
    %v4960 = vpop.f32.mrb[0].mxu0
    %v4961 = vadd.f32 0.0, %v4960
    %v4962 = vpop.f32.mrb[0].mxu0
    %4963 = vdwg.mxu0
    %4964 = vrot.lane.b32.xlu0 %v291, 16
    %v4965 = vpop.permute.xlu0 %4964
    %4966 = vrot.lane.b32.xlu0 %v293, 16
    %v4967 = vpop.permute.xlu0 %4966
    %v4968 = vsel %vm358, %v4965, 0
    %v4970 = vsel %vm358, %v4967, 0
    %4972 = vmatprep.subr.mxu0 0.0
    %4973 = vmatpush1.xpose.msra.mxu0 %v4970
    %4974 = vmatprep.subr.mxu0 0.0
    %4975 = vmatpush1.xpose.msra.mxu0 0.0
    %4976 = vmatprep.subr.mxu0 0.0
    %4977 = vmatpush1.xpose.msra.mxu0 0.0
    %4978 = vmatprep.subr.mxu0 0.0
    %4979 = vmatpush1.xpose.msra.mxu0 0.0
    %4980 = vmatprep.subr.mxu0 0.0
    %4981 = vmatpush1.xpose.msra.mxu0 0.0
    %4982 = vmatprep.subr.mxu0 0.0
    %4983 = vmatpush1.xpose.msra.mxu0 0.0
    %4984 = vmatprep.subr.mxu0 0.0
    %4985 = vmatpush1.xpose.msra.mxu0 0.0
    %4986 = vmatprep.subr.mxu0 0.0
    %4987 = vmatpush1.xpose.msra.mxu0 0.0
    %4988 = vmatprep.subr.mxu0 0.0
    %4989 = vmatpush1.xpose.msra.mxu0 0.0
    %4990 = vmatprep.subr.mxu0 0.0
    %4991 = vmatpush1.xpose.msra.mxu0 0.0
    %4992 = vmatprep.subr.mxu0 0.0
    %4993 = vmatpush1.xpose.msra.mxu0 0.0
    %4994 = vmatprep.subr.mxu0 0.0
    %4995 = vmatpush1.xpose.msra.mxu0 0.0
    %4996 = vmatprep.subr.mxu0 0.0
    %4997 = vmatpush1.xpose.msra.mxu0 0.0
    %4998 = vmatprep.subr.mxu0 0.0
    %4999 = vmatpush1.xpose.msra.mxu0 0.0
    %5000 = vmatprep.subr.mxu0 0.0
    %5001 = vmatpush1.xpose.msra.mxu0 0.0
    %5002 = vmatprep.subr.mxu0 0.0
    %5003 = vmatpush1.xpose.msra.mxu0 0.0
    %5004 = vmatprep.subr.mxu0 0.0
    %5005 = vmatpush1.xpose.msra.mxu0 0.0
    %5006 = vmatprep.subr.mxu0 0.0
    %5007 = vmatpush1.xpose.msra.mxu0 0.0
    %5008 = vmatprep.subr.mxu0 0.0
    %5009 = vmatpush1.xpose.msra.mxu0 0.0
    %5010 = vmatprep.subr.mxu0 0.0
    %5011 = vmatpush1.xpose.msra.mxu0 0.0
    %5012 = vmatprep.subr.mxu0 0.0
    %5013 = vmatpush1.xpose.msra.mxu0 0.0
    %5014 = vmatprep.subr.mxu0 0.0
    %5015 = vmatpush1.xpose.msra.mxu0 0.0
    %5016 = vmatprep.subr.mxu0 0.0
    %5017 = vmatpush1.xpose.msra.mxu0 0.0
    %5018 = vmatprep.subr.mxu0 0.0
    %5019 = vmatpush1.xpose.msra.mxu0 0.0
    %5020 = vmatprep.subr.mxu0 0.0
    %5021 = vmatpush1.xpose.msra.mxu0 0.0
    %5022 = vmatprep.subr.mxu0 0.0
    %5023 = vmatpush1.xpose.msra.mxu0 0.0
    %5024 = vmatprep.subr.mxu0 0.0
    %5025 = vmatpush1.xpose.msra.mxu0 0.0
    %5026 = vmatprep.subr.mxu0 0.0
    %5027 = vmatpush1.xpose.msra.mxu0 0.0
    %5028 = vmatprep.subr.mxu0 0.0
    %5029 = vmatpush1.xpose.msra.mxu0 0.0
    %5030 = vmatprep.subr.mxu0 0.0
    %5031 = vmatpush1.xpose.msra.mxu0 0.0
    %5032 = vmatprep.subr.mxu0 0.0
    %5033 = vmatpush1.xpose.msra.mxu0 0.0
    %5034 = vmatprep.subr.mxu0 0.0
    %5035 = vmatpush1.xpose.msra.mxu0 0.0
    %5036 = vmatprep.mubr.f32.mxu0 0.0
    %5037 = vmatmul.mubr.f32.gmra.mrb[0].mxu0 %v4968
    %v5038 = vpop.f32.mrb[0].mxu0
    %v5039 = vadd.f32 0.0, %v5038
    %v5040 = vpop.f32.mrb[0].mxu0
    %5041 = vdwg.mxu0
    %5042 = vrot.lane.b32.xlu0 %v295, 16
    %v5043 = vpop.permute.xlu0 %5042
    %5044 = vrot.lane.b32.xlu0 %v297, 16
    %v5045 = vpop.permute.xlu0 %5044
    %v5046 = vsel %vm358, %v5043, 0
    %v5048 = vsel %vm358, %v5045, 0
    %5050 = vmatprep.subr.mxu0 0.0
    %5051 = vmatpush1.xpose.msra.mxu0 %v5048
    %5052 = vmatprep.subr.mxu0 0.0
    %5053 = vmatpush1.xpose.msra.mxu0 0.0
    %5054 = vmatprep.subr.mxu0 0.0
    %5055 = vmatpush1.xpose.msra.mxu0 0.0
    %5056 = vmatprep.subr.mxu0 0.0
    %5057 = vmatpush1.xpose.msra.mxu0 0.0
    %5058 = vmatprep.subr.mxu0 0.0
    %5059 = vmatpush1.xpose.msra.mxu0 0.0
    %5060 = vmatprep.subr.mxu0 0.0
    %5061 = vmatpush1.xpose.msra.mxu0 0.0
    %5062 = vmatprep.subr.mxu0 0.0
    %5063 = vmatpush1.xpose.msra.mxu0 0.0
    %5064 = vmatprep.subr.mxu0 0.0
    %5065 = vmatpush1.xpose.msra.mxu0 0.0
    %5066 = vmatprep.subr.mxu0 0.0
    %5067 = vmatpush1.xpose.msra.mxu0 0.0
    %5068 = vmatprep.subr.mxu0 0.0
    %5069 = vmatpush1.xpose.msra.mxu0 0.0
    %5070 = vmatprep.subr.mxu0 0.0
    %5071 = vmatpush1.xpose.msra.mxu0 0.0
    %5072 = vmatprep.subr.mxu0 0.0
    %5073 = vmatpush1.xpose.msra.mxu0 0.0
    %5074 = vmatprep.subr.mxu0 0.0
    %5075 = vmatpush1.xpose.msra.mxu0 0.0
    %5076 = vmatprep.subr.mxu0 0.0
    %5077 = vmatpush1.xpose.msra.mxu0 0.0
    %5078 = vmatprep.subr.mxu0 0.0
    %5079 = vmatpush1.xpose.msra.mxu0 0.0
    %5080 = vmatprep.subr.mxu0 0.0
    %5081 = vmatpush1.xpose.msra.mxu0 0.0
    %5082 = vmatprep.subr.mxu0 0.0
    %5083 = vmatpush1.xpose.msra.mxu0 0.0
    %5084 = vmatprep.subr.mxu0 0.0
    %5085 = vmatpush1.xpose.msra.mxu0 0.0
    %5086 = vmatprep.subr.mxu0 0.0
    %5087 = vmatpush1.xpose.msra.mxu0 0.0
    %5088 = vmatprep.subr.mxu0 0.0
    %5089 = vmatpush1.xpose.msra.mxu0 0.0
    %5090 = vmatprep.subr.mxu0 0.0
    %5091 = vmatpush1.xpose.msra.mxu0 0.0
    %5092 = vmatprep.subr.mxu0 0.0
    %5093 = vmatpush1.xpose.msra.mxu0 0.0
    %5094 = vmatprep.subr.mxu0 0.0
    %5095 = vmatpush1.xpose.msra.mxu0 0.0
    %5096 = vmatprep.subr.mxu0 0.0
    %5097 = vmatpush1.xpose.msra.mxu0 0.0
    %5098 = vmatprep.subr.mxu0 0.0
    %5099 = vmatpush1.xpose.msra.mxu0 0.0
    %5100 = vmatprep.subr.mxu0 0.0
    %5101 = vmatpush1.xpose.msra.mxu0 0.0
    %5102 = vmatprep.subr.mxu0 0.0
    %5103 = vmatpush1.xpose.msra.mxu0 0.0
    %5104 = vmatprep.subr.mxu0 0.0
    %5105 = vmatpush1.xpose.msra.mxu0 0.0
    %5106 = vmatprep.subr.mxu0 0.0
    %5107 = vmatpush1.xpose.msra.mxu0 0.0
    %5108 = vmatprep.subr.mxu0 0.0
    %5109 = vmatpush1.xpose.msra.mxu0 0.0
    %5110 = vmatprep.subr.mxu0 0.0
    %5111 = vmatpush1.xpose.msra.mxu0 0.0
    %5112 = vmatprep.subr.mxu0 0.0
    %5113 = vmatpush1.xpose.msra.mxu0 0.0
    %5114 = vmatprep.mubr.f32.mxu0 0.0
    %5115 = vmatmul.mubr.f32.gmra.mrb[0].mxu0 %v5046
    %v5116 = vpop.f32.mrb[0].mxu0
    %v5117 = vadd.f32 0.0, %v5116
    %v5118 = vpop.f32.mrb[0].mxu0
    %5119 = vdwg.mxu0
    %5120 = vrot.lane.b32.xlu0 %v301, 16
    %v5121 = vpop.permute.xlu0 %5120
    %5122 = vrot.lane.b32.xlu0 %v303, 16
    %v5123 = vpop.permute.xlu0 %5122
    %v5124 = vsel %vm358, %v5121, 0
    %v5126 = vsel %vm358, %v5123, 0
    %5128 = vmatprep.subr.mxu0 0.0
    %5129 = vmatpush1.xpose.msra.mxu0 %v5126
    %5130 = vmatprep.subr.mxu0 0.0
    %5131 = vmatpush1.xpose.msra.mxu0 0.0
    %5132 = vmatprep.subr.mxu0 0.0
    %5133 = vmatpush1.xpose.msra.mxu0 0.0
    %5134 = vmatprep.subr.mxu0 0.0
    %5135 = vmatpush1.xpose.msra.mxu0 0.0
    %5136 = vmatprep.subr.mxu0 0.0
    %5137 = vmatpush1.xpose.msra.mxu0 0.0
    %5138 = vmatprep.subr.mxu0 0.0
    %5139 = vmatpush1.xpose.msra.mxu0 0.0
    %5140 = vmatprep.subr.mxu0 0.0
    %5141 = vmatpush1.xpose.msra.mxu0 0.0
    %5142 = vmatprep.subr.mxu0 0.0
    %5143 = vmatpush1.xpose.msra.mxu0 0.0
    %5144 = vmatprep.subr.mxu0 0.0
    %5145 = vmatpush1.xpose.msra.mxu0 0.0
    %5146 = vmatprep.subr.mxu0 0.0
    %5147 = vmatpush1.xpose.msra.mxu0 0.0
    %5148 = vmatprep.subr.mxu0 0.0
    %5149 = vmatpush1.xpose.msra.mxu0 0.0
    %5150 = vmatprep.subr.mxu0 0.0
    %5151 = vmatpush1.xpose.msra.mxu0 0.0
    %5152 = vmatprep.subr.mxu0 0.0
    %5153 = vmatpush1.xpose.msra.mxu0 0.0
    %5154 = vmatprep.subr.mxu0 0.0
    %5155 = vmatpush1.xpose.msra.mxu0 0.0
    %5156 = vmatprep.subr.mxu0 0.0
    %5157 = vmatpush1.xpose.msra.mxu0 0.0
    %5158 = vmatprep.subr.mxu0 0.0
    %5159 = vmatpush1.xpose.msra.mxu0 0.0
    %5160 = vmatprep.subr.mxu0 0.0
    %5161 = vmatpush1.xpose.msra.mxu0 0.0
    %5162 = vmatprep.subr.mxu0 0.0
    %5163 = vmatpush1.xpose.msra.mxu0 0.0
    %5164 = vmatprep.subr.mxu0 0.0
    %5165 = vmatpush1.xpose.msra.mxu0 0.0
    %5166 = vmatprep.subr.mxu0 0.0
    %5167 = vmatpush1.xpose.msra.mxu0 0.0
    %5168 = vmatprep.subr.mxu0 0.0
    %5169 = vmatpush1.xpose.msra.mxu0 0.0
    %5170 = vmatprep.subr.mxu0 0.0
    %5171 = vmatpush1.xpose.msra.mxu0 0.0
    %5172 = vmatprep.subr.mxu0 0.0
    %5173 = vmatpush1.xpose.msra.mxu0 0.0
    %5174 = vmatprep.subr.mxu0 0.0
    %5175 = vmatpush1.xpose.msra.mxu0 0.0
    %5176 = vmatprep.subr.mxu0 0.0
    %5177 = vmatpush1.xpose.msra.mxu0 0.0
    %5178 = vmatprep.subr.mxu0 0.0
    %5179 = vmatpush1.xpose.msra.mxu0 0.0
    %5180 = vmatprep.subr.mxu0 0.0
    %5181 = vmatpush1.xpose.msra.mxu0 0.0
    %5182 = vmatprep.subr.mxu0 0.0
    %5183 = vmatpush1.xpose.msra.mxu0 0.0
    %5184 = vmatprep.subr.mxu0 0.0
    %5185 = vmatpush1.xpose.msra.mxu0 0.0
    %5186 = vmatprep.subr.mxu0 0.0
    %5187 = vmatpush1.xpose.msra.mxu0 0.0
    %5188 = vmatprep.subr.mxu0 0.0
    %5189 = vmatpush1.xpose.msra.mxu0 0.0
    %5190 = vmatprep.subr.mxu0 0.0
    %5191 = vmatpush1.xpose.msra.mxu0 0.0
    %5192 = vmatprep.mubr.f32.mxu0 0.0
    %5193 = vmatmul.mubr.f32.gmra.mrb[0].mxu0 %v5124
    %v5194 = vpop.f32.mrb[0].mxu0
    %v5195 = vadd.f32 0.0, %v5194
    %v5196 = vpop.f32.mrb[0].mxu0
    %5197 = vdwg.mxu0
    %5198 = vrot.lane.b32.xlu0 %v305, 16
    %v5199 = vpop.permute.xlu0 %5198
    %5200 = vrot.lane.b32.xlu0 %v307, 16
    %v5201 = vpop.permute.xlu0 %5200
    %v5202 = vsel %vm358, %v5199, 0
    %v5204 = vsel %vm358, %v5201, 0
    %5206 = vmatprep.subr.mxu0 0.0
    %5207 = vmatpush1.xpose.msra.mxu0 %v5204
    %5208 = vmatprep.subr.mxu0 0.0
    %5209 = vmatpush1.xpose.msra.mxu0 0.0
    %5210 = vmatprep.subr.mxu0 0.0
    %5211 = vmatpush1.xpose.msra.mxu0 0.0
    %5212 = vmatprep.subr.mxu0 0.0
    %5213 = vmatpush1.xpose.msra.mxu0 0.0
    %5214 = vmatprep.subr.mxu0 0.0
    %5215 = vmatpush1.xpose.msra.mxu0 0.0
    %5216 = vmatprep.subr.mxu0 0.0
    %5217 = vmatpush1.xpose.msra.mxu0 0.0
    %5218 = vmatprep.subr.mxu0 0.0
    %5219 = vmatpush1.xpose.msra.mxu0 0.0
    %5220 = vmatprep.subr.mxu0 0.0
    %5221 = vmatpush1.xpose.msra.mxu0 0.0
    %5222 = vmatprep.subr.mxu0 0.0
    %5223 = vmatpush1.xpose.msra.mxu0 0.0
    %5224 = vmatprep.subr.mxu0 0.0
    %5225 = vmatpush1.xpose.msra.mxu0 0.0
    %5226 = vmatprep.subr.mxu0 0.0
    %5227 = vmatpush1.xpose.msra.mxu0 0.0
    %5228 = vmatprep.subr.mxu0 0.0
    %5229 = vmatpush1.xpose.msra.mxu0 0.0
    %5230 = vmatprep.subr.mxu0 0.0
    %5231 = vmatpush1.xpose.msra.mxu0 0.0
    %5232 = vmatprep.subr.mxu0 0.0
    %5233 = vmatpush1.xpose.msra.mxu0 0.0
    %5234 = vmatprep.subr.mxu0 0.0
    %5235 = vmatpush1.xpose.msra.mxu0 0.0
    %5236 = vmatprep.subr.mxu0 0.0
    %5237 = vmatpush1.xpose.msra.mxu0 0.0
    %5238 = vmatprep.subr.mxu0 0.0
    %5239 = vmatpush1.xpose.msra.mxu0 0.0
    %5240 = vmatprep.subr.mxu0 0.0
    %5241 = vmatpush1.xpose.msra.mxu0 0.0
    %5242 = vmatprep.subr.mxu0 0.0
    %5243 = vmatpush1.xpose.msra.mxu0 0.0
    %5244 = vmatprep.subr.mxu0 0.0
    %5245 = vmatpush1.xpose.msra.mxu0 0.0
    %5246 = vmatprep.subr.mxu0 0.0
    %5247 = vmatpush1.xpose.msra.mxu0 0.0
    %5248 = vmatprep.subr.mxu0 0.0
    %5249 = vmatpush1.xpose.msra.mxu0 0.0
    %5250 = vmatprep.subr.mxu0 0.0
    %5251 = vmatpush1.xpose.msra.mxu0 0.0
    %5252 = vmatprep.subr.mxu0 0.0
    %5253 = vmatpush1.xpose.msra.mxu0 0.0
    %5254 = vmatprep.subr.mxu0 0.0
    %5255 = vmatpush1.xpose.msra.mxu0 0.0
    %5256 = vmatprep.subr.mxu0 0.0
    %5257 = vmatpush1.xpose.msra.mxu0 0.0
    %5258 = vmatprep.subr.mxu0 0.0
    %5259 = vmatpush1.xpose.msra.mxu0 0.0
    %5260 = vmatprep.subr.mxu0 0.0
    %5261 = vmatpush1.xpose.msra.mxu0 0.0
    %5262 = vmatprep.subr.mxu0 0.0
    %5263 = vmatpush1.xpose.msra.mxu0 0.0
    %5264 = vmatprep.subr.mxu0 0.0
    %5265 = vmatpush1.xpose.msra.mxu0 0.0
    %5266 = vmatprep.subr.mxu0 0.0
    %5267 = vmatpush1.xpose.msra.mxu0 0.0
    %5268 = vmatprep.subr.mxu0 0.0
    %5269 = vmatpush1.xpose.msra.mxu0 0.0
    %5270 = vmatprep.mubr.f32.mxu0 0.0
    %5271 = vmatmul.mubr.f32.gmra.mrb[0].mxu0 %v5202
    %v5272 = vpop.f32.mrb[0].mxu0
    %v5273 = vadd.f32 0.0, %v5272
    %v5274 = vpop.f32.mrb[0].mxu0
    %5275 = vdwg.mxu0
    %v5276 = vsel %vm663, %v5039, -inf
    %5277 = vmax.xlane.f32.xlu0 %v5276
    %v5278 = vpop.xlane.xlu0 %5277
    %v5279 = vsel %vm663, %v5117, -inf
    %5280 = vmax.xlane.f32.xlu0 %v5279
    %v5281 = vpop.xlane.xlu0 %5280
    %v5282 = vsel %vm663, %v5195, -inf
    %5283 = vmax.xlane.f32.xlu0 %v5282
    %v5284 = vpop.xlane.xlu0 %5283
    %v5285 = vsel %vm663, %v5273, -inf
    %5286 = vmax.xlane.f32.xlu0 %v5285
    %v5287 = vpop.xlane.xlu0 %5286
    %v5288 = vsub.f32 %v5039, %v5278
    %v5289 = vsub.f32 %v5117, %v5281
    %v5290 = vsub.f32 %v5195, %v5284
    %v5291 = vsub.f32 %v5273, %v5287
    %v5292 = vmul.f32 %v5288, 1.442695
    %v5293 = vpow.pop %v5292
    %v5294 = vmul.f32 %v5289, 1.442695
    %v5295 = vpow.pop %v5294
    %v5296 = vmul.f32 %v5290, 1.442695
    %v5297 = vpow.pop %v5296
    %v5298 = vmul.f32 %v5291, 1.442695
    %v5299 = vpow.pop %v5298
    %v5300 = vsel %vm663, %v5293, 0.0
    %5301 = vadd.xlane.f32.xlu0 %v5300
    %v5302 = vpop.xlane.xlu0 %5301
    %v5303 = vsel %vm663, %v5295, 0.0
    %5304 = vadd.xlane.f32.xlu0 %v5303
    %v5305 = vpop.xlane.xlu0 %5304
    %v5306 = vsel %vm663, %v5297, 0.0
    %5307 = vadd.xlane.f32.xlu0 %v5306
    %v5308 = vpop.xlane.xlu0 %5307
    %v5309 = vsel %vm663, %v5299, 0.0
    %5310 = vadd.xlane.f32.xlu0 %v5309
    %v5311 = vpop.xlane.xlu0 %5310
    %v5312 = vrcp.pop %v5302
    %v5313 = vrcp.pop %v5305
    %v5314 = vrcp.pop %v5308
    %v5315 = vrcp.pop %v5311
    %v5316 = vmul.f32 %v5293, %v5312
    %v5317 = vmul.f32 %v5295, %v5313
    %v5318 = vmul.f32 %v5297, %v5314
    %v5319 = vmul.f32 %v5299, %v5315
    %5320 = vrot.lane.b32.xlu0 %v344, 16
    %v5321 = vpop.permute.xlu0 %5320
    %v5324 = vsel %vm663, %v5316, 0
    %5326 = vmatprep.subr.mxu0 0.0
    %5327 = vmatpush1.msra.mxu0 %v5321
    %5328 = vmatprep.subr.mxu0 0.0
    %5329 = vmatpush1.msra.mxu0 0.0
    %5330 = vmatprep.subr.mxu0 0.0
    %5331 = vmatpush1.msra.mxu0 0.0
    %5332 = vmatprep.subr.mxu0 0.0
    %5333 = vmatpush1.msra.mxu0 0.0
    %5334 = vmatprep.subr.mxu0 0.0
    %5335 = vmatpush1.msra.mxu0 0.0
    %5336 = vmatprep.subr.mxu0 0.0
    %5337 = vmatpush1.msra.mxu0 0.0
    %5338 = vmatprep.subr.mxu0 0.0
    %5339 = vmatpush1.msra.mxu0 0.0
    %5340 = vmatprep.subr.mxu0 0.0
    %5341 = vmatpush1.msra.mxu0 0.0
    %5342 = vmatprep.subr.mxu0 0.0
    %5343 = vmatpush1.msra.mxu0 0.0
    %5344 = vmatprep.subr.mxu0 0.0
    %5345 = vmatpush1.msra.mxu0 0.0
    %5346 = vmatprep.subr.mxu0 0.0
    %5347 = vmatpush1.msra.mxu0 0.0
    %5348 = vmatprep.subr.mxu0 0.0
    %5349 = vmatpush1.msra.mxu0 0.0
    %5350 = vmatprep.subr.mxu0 0.0
    %5351 = vmatpush1.msra.mxu0 0.0
    %5352 = vmatprep.subr.mxu0 0.0
    %5353 = vmatpush1.msra.mxu0 0.0
    %5354 = vmatprep.subr.mxu0 0.0
    %5355 = vmatpush1.msra.mxu0 0.0
    %5356 = vmatprep.subr.mxu0 0.0
    %5357 = vmatpush1.msra.mxu0 0.0
    %5358 = vmatprep.subr.mxu0 0.0
    %5359 = vmatpush1.msra.mxu0 0.0
    %5360 = vmatprep.subr.mxu0 0.0
    %5361 = vmatpush1.msra.mxu0 0.0
    %5362 = vmatprep.subr.mxu0 0.0
    %5363 = vmatpush1.msra.mxu0 0.0
    %5364 = vmatprep.subr.mxu0 0.0
    %5365 = vmatpush1.msra.mxu0 0.0
    %5366 = vmatprep.subr.mxu0 0.0
    %5367 = vmatpush1.msra.mxu0 0.0
    %5368 = vmatprep.subr.mxu0 0.0
    %5369 = vmatpush1.msra.mxu0 0.0
    %5370 = vmatprep.subr.mxu0 0.0
    %5371 = vmatpush1.msra.mxu0 0.0
    %5372 = vmatprep.subr.mxu0 0.0
    %5373 = vmatpush1.msra.mxu0 0.0
    %5374 = vmatprep.subr.mxu0 0.0
    %5375 = vmatpush1.msra.mxu0 0.0
    %5376 = vmatprep.subr.mxu0 0.0
    %5377 = vmatpush1.msra.mxu0 0.0
    %5378 = vmatprep.subr.mxu0 0.0
    %5379 = vmatpush1.msra.mxu0 0.0
    %5380 = vmatprep.subr.mxu0 0.0
    %5381 = vmatpush1.msra.mxu0 0.0
    %5382 = vmatprep.subr.mxu0 0.0
    %5383 = vmatpush1.msra.mxu0 0.0
    %5384 = vmatprep.subr.mxu0 0.0
    %5385 = vmatpush1.msra.mxu0 0.0
    %5386 = vmatprep.subr.mxu0 0.0
    %5387 = vmatpush1.msra.mxu0 0.0
    %5388 = vmatprep.subr.mxu0 0.0
    %5389 = vmatpush1.msra.mxu0 0.0
    %5390 = vmatprep.mubr.f32.mxu0 0.0
    %5391 = vmatmul.mubr.f32.gmra.mrb[0].mxu0 %v5324
    %v5392 = vpop.f32.mrb[0].mxu0
    %v5393 = vadd.f32 0.0, %v5392
    %v5394 = vpop.f32.mrb[0].mxu0
    %5395 = vdwg.mxu0
    %5396 = vrot.lane.b32.xlu0 %v347, 16
    %v5397 = vpop.permute.xlu0 %5396
    %v5400 = vsel %vm663, %v5317, 0
    %5402 = vmatprep.subr.mxu0 0.0
    %5403 = vmatpush1.msra.mxu0 %v5397
    %5404 = vmatprep.subr.mxu0 0.0
    %5405 = vmatpush1.msra.mxu0 0.0
    %5406 = vmatprep.subr.mxu0 0.0
    %5407 = vmatpush1.msra.mxu0 0.0
    %5408 = vmatprep.subr.mxu0 0.0
    %5409 = vmatpush1.msra.mxu0 0.0
    %5410 = vmatprep.subr.mxu0 0.0
    %5411 = vmatpush1.msra.mxu0 0.0
    %5412 = vmatprep.subr.mxu0 0.0
    %5413 = vmatpush1.msra.mxu0 0.0
    %5414 = vmatprep.subr.mxu0 0.0
    %5415 = vmatpush1.msra.mxu0 0.0
    %5416 = vmatprep.subr.mxu0 0.0
    %5417 = vmatpush1.msra.mxu0 0.0
    %5418 = vmatprep.subr.mxu0 0.0
    %5419 = vmatpush1.msra.mxu0 0.0
    %5420 = vmatprep.subr.mxu0 0.0
    %5421 = vmatpush1.msra.mxu0 0.0
    %5422 = vmatprep.subr.mxu0 0.0
    %5423 = vmatpush1.msra.mxu0 0.0
    %5424 = vmatprep.subr.mxu0 0.0
    %5425 = vmatpush1.msra.mxu0 0.0
    %5426 = vmatprep.subr.mxu0 0.0
    %5427 = vmatpush1.msra.mxu0 0.0
    %5428 = vmatprep.subr.mxu0 0.0
    %5429 = vmatpush1.msra.mxu0 0.0
    %5430 = vmatprep.subr.mxu0 0.0
    %5431 = vmatpush1.msra.mxu0 0.0
    %5432 = vmatprep.subr.mxu0 0.0
    %5433 = vmatpush1.msra.mxu0 0.0
    %5434 = vmatprep.subr.mxu0 0.0
    %5435 = vmatpush1.msra.mxu0 0.0
    %5436 = vmatprep.subr.mxu0 0.0
    %5437 = vmatpush1.msra.mxu0 0.0
    %5438 = vmatprep.subr.mxu0 0.0
    %5439 = vmatpush1.msra.mxu0 0.0
    %5440 = vmatprep.subr.mxu0 0.0
    %5441 = vmatpush1.msra.mxu0 0.0
    %5442 = vmatprep.subr.mxu0 0.0
    %5443 = vmatpush1.msra.mxu0 0.0
    %5444 = vmatprep.subr.mxu0 0.0
    %5445 = vmatpush1.msra.mxu0 0.0
    %5446 = vmatprep.subr.mxu0 0.0
    %5447 = vmatpush1.msra.mxu0 0.0
    %5448 = vmatprep.subr.mxu0 0.0
    %5449 = vmatpush1.msra.mxu0 0.0
    %5450 = vmatprep.subr.mxu0 0.0
    %5451 = vmatpush1.msra.mxu0 0.0
    %5452 = vmatprep.subr.mxu0 0.0
    %5453 = vmatpush1.msra.mxu0 0.0
    %5454 = vmatprep.subr.mxu0 0.0
    %5455 = vmatpush1.msra.mxu0 0.0
    %5456 = vmatprep.subr.mxu0 0.0
    %5457 = vmatpush1.msra.mxu0 0.0
    %5458 = vmatprep.subr.mxu0 0.0
    %5459 = vmatpush1.msra.mxu0 0.0
    %5460 = vmatprep.subr.mxu0 0.0
    %5461 = vmatpush1.msra.mxu0 0.0
    %5462 = vmatprep.subr.mxu0 0.0
    %5463 = vmatpush1.msra.mxu0 0.0
    %5464 = vmatprep.subr.mxu0 0.0
    %5465 = vmatpush1.msra.mxu0 0.0
    %5466 = vmatprep.mubr.f32.mxu0 0.0
    %5467 = vmatmul.mubr.f32.gmra.mrb[0].mxu0 %v5400
    %v5468 = vpop.f32.mrb[0].mxu0
    %v5469 = vadd.f32 0.0, %v5468
    %v5470 = vpop.f32.mrb[0].mxu0
    %5471 = vdwg.mxu0
    %5472 = vrot.lane.b32.xlu0 %v352, 16
    %v5473 = vpop.permute.xlu0 %5472
    %v5476 = vsel %vm663, %v5318, 0
    %5478 = vmatprep.subr.mxu0 0.0
    %5479 = vmatpush1.msra.mxu0 %v5473
    %5480 = vmatprep.subr.mxu0 0.0
    %5481 = vmatpush1.msra.mxu0 0.0
    %5482 = vmatprep.subr.mxu0 0.0
    %5483 = vmatpush1.msra.mxu0 0.0
    %5484 = vmatprep.subr.mxu0 0.0
    %5485 = vmatpush1.msra.mxu0 0.0
    %5486 = vmatprep.subr.mxu0 0.0
    %5487 = vmatpush1.msra.mxu0 0.0
    %5488 = vmatprep.subr.mxu0 0.0
    %5489 = vmatpush1.msra.mxu0 0.0
    %5490 = vmatprep.subr.mxu0 0.0
    %5491 = vmatpush1.msra.mxu0 0.0
    %5492 = vmatprep.subr.mxu0 0.0
    %5493 = vmatpush1.msra.mxu0 0.0
    %5494 = vmatprep.subr.mxu0 0.0
    %5495 = vmatpush1.msra.mxu0 0.0
    %5496 = vmatprep.subr.mxu0 0.0
    %5497 = vmatpush1.msra.mxu0 0.0
    %5498 = vmatprep.subr.mxu0 0.0
    %5499 = vmatpush1.msra.mxu0 0.0
    %5500 = vmatprep.subr.mxu0 0.0
    %5501 = vmatpush1.msra.mxu0 0.0
    %5502 = vmatprep.subr.mxu0 0.0
    %5503 = vmatpush1.msra.mxu0 0.0
    %5504 = vmatprep.subr.mxu0 0.0
    %5505 = vmatpush1.msra.mxu0 0.0
    %5506 = vmatprep.subr.mxu0 0.0
    %5507 = vmatpush1.msra.mxu0 0.0
    %5508 = vmatprep.subr.mxu0 0.0
    %5509 = vmatpush1.msra.mxu0 0.0
    %5510 = vmatprep.subr.mxu0 0.0
    %5511 = vmatpush1.msra.mxu0 0.0
    %5512 = vmatprep.subr.mxu0 0.0
    %5513 = vmatpush1.msra.mxu0 0.0
    %5514 = vmatprep.subr.mxu0 0.0
    %5515 = vmatpush1.msra.mxu0 0.0
    %5516 = vmatprep.subr.mxu0 0.0
    %5517 = vmatpush1.msra.mxu0 0.0
    %5518 = vmatprep.subr.mxu0 0.0
    %5519 = vmatpush1.msra.mxu0 0.0
    %5520 = vmatprep.subr.mxu0 0.0
    %5521 = vmatpush1.msra.mxu0 0.0
    %5522 = vmatprep.subr.mxu0 0.0
    %5523 = vmatpush1.msra.mxu0 0.0
    %5524 = vmatprep.subr.mxu0 0.0
    %5525 = vmatpush1.msra.mxu0 0.0
    %5526 = vmatprep.subr.mxu0 0.0
    %5527 = vmatpush1.msra.mxu0 0.0
    %5528 = vmatprep.subr.mxu0 0.0
    %5529 = vmatpush1.msra.mxu0 0.0
    %5530 = vmatprep.subr.mxu0 0.0
    %5531 = vmatpush1.msra.mxu0 0.0
    %5532 = vmatprep.subr.mxu0 0.0
    %5533 = vmatpush1.msra.mxu0 0.0
    %5534 = vmatprep.subr.mxu0 0.0
    %5535 = vmatpush1.msra.mxu0 0.0
    %5536 = vmatprep.subr.mxu0 0.0
    %5537 = vmatpush1.msra.mxu0 0.0
    %5538 = vmatprep.subr.mxu0 0.0
    %5539 = vmatpush1.msra.mxu0 0.0
    %5540 = vmatprep.subr.mxu0 0.0
    %5541 = vmatpush1.msra.mxu0 0.0
    %5542 = vmatprep.mubr.f32.mxu0 0.0
    %5543 = vmatmul.mubr.f32.gmra.mrb[0].mxu0 %v5476
    %v5544 = vpop.f32.mrb[0].mxu0
    %v5545 = vadd.f32 0.0, %v5544
    %v5546 = vpop.f32.mrb[0].mxu0
    %5547 = vdwg.mxu0
    %5548 = vrot.lane.b32.xlu0 %v355, 16
    %v5549 = vpop.permute.xlu0 %5548
    %v5552 = vsel %vm663, %v5319, 0
    %5554 = vmatprep.subr.mxu0 0.0
    %5555 = vmatpush1.msra.mxu0 %v5549
    %5556 = vmatprep.subr.mxu0 0.0
    %5557 = vmatpush1.msra.mxu0 0.0
    %5558 = vmatprep.subr.mxu0 0.0
    %5559 = vmatpush1.msra.mxu0 0.0
    %5560 = vmatprep.subr.mxu0 0.0
    %5561 = vmatpush1.msra.mxu0 0.0
    %5562 = vmatprep.subr.mxu0 0.0
    %5563 = vmatpush1.msra.mxu0 0.0
    %5564 = vmatprep.subr.mxu0 0.0
    %5565 = vmatpush1.msra.mxu0 0.0
    %5566 = vmatprep.subr.mxu0 0.0
    %5567 = vmatpush1.msra.mxu0 0.0
    %5568 = vmatprep.subr.mxu0 0.0
    %5569 = vmatpush1.msra.mxu0 0.0
    %5570 = vmatprep.subr.mxu0 0.0
    %5571 = vmatpush1.msra.mxu0 0.0
    %5572 = vmatprep.subr.mxu0 0.0
    %5573 = vmatpush1.msra.mxu0 0.0
    %5574 = vmatprep.subr.mxu0 0.0
    %5575 = vmatpush1.msra.mxu0 0.0
    %5576 = vmatprep.subr.mxu0 0.0
    %5577 = vmatpush1.msra.mxu0 0.0
    %5578 = vmatprep.subr.mxu0 0.0
    %5579 = vmatpush1.msra.mxu0 0.0
    %5580 = vmatprep.subr.mxu0 0.0
    %5581 = vmatpush1.msra.mxu0 0.0
    %5582 = vmatprep.subr.mxu0 0.0
    %5583 = vmatpush1.msra.mxu0 0.0
    %5584 = vmatprep.subr.mxu0 0.0
    %5585 = vmatpush1.msra.mxu0 0.0
    %5586 = vmatprep.subr.mxu0 0.0
    %5587 = vmatpush1.msra.mxu0 0.0
    %5588 = vmatprep.subr.mxu0 0.0
    %5589 = vmatpush1.msra.mxu0 0.0
    %5590 = vmatprep.subr.mxu0 0.0
    %5591 = vmatpush1.msra.mxu0 0.0
    %5592 = vmatprep.subr.mxu0 0.0
    %5593 = vmatpush1.msra.mxu0 0.0
    %5594 = vmatprep.subr.mxu0 0.0
    %5595 = vmatpush1.msra.mxu0 0.0
    %5596 = vmatprep.subr.mxu0 0.0
    %5597 = vmatpush1.msra.mxu0 0.0
    %5598 = vmatprep.subr.mxu0 0.0
    %5599 = vmatpush1.msra.mxu0 0.0
    %5600 = vmatprep.subr.mxu0 0.0
    %5601 = vmatpush1.msra.mxu0 0.0
    %5602 = vmatprep.subr.mxu0 0.0
    %5603 = vmatpush1.msra.mxu0 0.0
    %5604 = vmatprep.subr.mxu0 0.0
    %5605 = vmatpush1.msra.mxu0 0.0
    %5606 = vmatprep.subr.mxu0 0.0
    %5607 = vmatpush1.msra.mxu0 0.0
    %5608 = vmatprep.subr.mxu0 0.0
    %5609 = vmatpush1.msra.mxu0 0.0
    %5610 = vmatprep.subr.mxu0 0.0
    %5611 = vmatpush1.msra.mxu0 0.0
    %5612 = vmatprep.subr.mxu0 0.0
    %5613 = vmatpush1.msra.mxu0 0.0
    %5614 = vmatprep.subr.mxu0 0.0
    %5615 = vmatpush1.msra.mxu0 0.0
    %5616 = vmatprep.subr.mxu0 0.0
    %5617 = vmatpush1.msra.mxu0 0.0
    %5618 = vmatprep.mubr.f32.mxu0 0.0
    %5619 = vmatmul.mubr.f32.gmra.mrb[0].mxu0 %v5552
    %v5620 = vpop.f32.mrb[0].mxu0
    %v5621 = vadd.f32 0.0, %v5620
    %v5622 = vpop.f32.mrb[0].mxu0
    %5623 = vdwg.mxu0
    %5628 = vrot.lane.b32.xlu0 %v1430, 16
    %v5629 = vpop.permute.xlu0 %5628
    %5630 = vrot.lane.b32.xlu0 %v1507, 16
    %v5631 = vpop.permute.xlu0 %5630
    %5632 = vrot.lane.b32.xlu0 %v1584, 16
    %v5633 = vpop.permute.xlu0 %5632
    %5634 = vrot.lane.b32.xlu0 %v1661, 16
    %v5635 = vpop.permute.xlu0 %5634
    %5644 = vrot.lane.b32.xlu0 %v2093, 32
    %v5645 = vpop.permute.xlu0 %5644
    %5646 = vrot.lane.b32.xlu0 %v2169, 32
    %v5647 = vpop.permute.xlu0 %5646
    %5648 = vrot.lane.b32.xlu0 %v2245, 32
    %v5649 = vpop.permute.xlu0 %5648
    %5650 = vrot.lane.b32.xlu0 %v2321, 32
    %v5651 = vpop.permute.xlu0 %5650
    %5660 = vrot.lane.b32.xlu0 %v2753, 48
    %v5661 = vpop.permute.xlu0 %5660
    %5662 = vrot.lane.b32.xlu0 %v2829, 48
    %v5663 = vpop.permute.xlu0 %5662
    %5664 = vrot.lane.b32.xlu0 %v2905, 48
    %v5665 = vpop.permute.xlu0 %5664
    %5666 = vrot.lane.b32.xlu0 %v2981, 48
    %v5667 = vpop.permute.xlu0 %5666
    %5676 = vrot.lane.b32.xlu0 %v3413, 64
    %v5677 = vpop.permute.xlu0 %5676
    %5678 = vrot.lane.b32.xlu0 %v3489, 64
    %v5679 = vpop.permute.xlu0 %5678
    %5680 = vrot.lane.b32.xlu0 %v3565, 64
    %v5681 = vpop.permute.xlu0 %5680
    %5682 = vrot.lane.b32.xlu0 %v3641, 64
    %v5683 = vpop.permute.xlu0 %5682
    %5692 = vrot.lane.b32.xlu0 %v4073, 80
    %v5693 = vpop.permute.xlu0 %5692
    %5694 = vrot.lane.b32.xlu0 %v4149, 80
    %v5695 = vpop.permute.xlu0 %5694
    %5696 = vrot.lane.b32.xlu0 %v4225, 80
    %v5697 = vpop.permute.xlu0 %5696
    %5698 = vrot.lane.b32.xlu0 %v4301, 80
    %v5699 = vpop.permute.xlu0 %5698
    %5708 = vrot.lane.b32.xlu0 %v4733, 96
    %v5709 = vpop.permute.xlu0 %5708
    %5710 = vrot.lane.b32.xlu0 %v4809, 96
    %v5711 = vpop.permute.xlu0 %5710
    %5712 = vrot.lane.b32.xlu0 %v4885, 96
    %v5713 = vpop.permute.xlu0 %5712
    %5714 = vrot.lane.b32.xlu0 %v4961, 96
    %v5715 = vpop.permute.xlu0 %5714
    %5724 = vrot.lane.b32.xlu0 %v5393, 112
    %v5725 = vpop.permute.xlu0 %5724
    %5726 = vrot.lane.b32.xlu0 %v5469, 112
    %v5727 = vpop.permute.xlu0 %5726
    %5728 = vrot.lane.b32.xlu0 %v5545, 112
    %v5729 = vpop.permute.xlu0 %5728
    %5730 = vrot.lane.b32.xlu0 %v5621, 112
    %v5731 = vpop.permute.xlu0 %5730
    %v5736 = vsel %vm358, %v778, %v5629
    %v5737 = vsel %vm358, %v851, %v5631
    %v5738 = vsel %vm358, %v924, %v5633
    %v5739 = vsel %vm358, %v997, %v5635
    %vm5740 = vcmask 261120
    %v5741 = vsel %vm5740, %v5736, %v5645
    %v5742 = vsel %vm5740, %v5737, %v5647
    %v5743 = vsel %vm5740, %v5738, %v5649
    %v5744 = vsel %vm5740, %v5739, %v5651
    %vm5745 = vcmask 392192
    %v5746 = vsel %vm5745, %v5741, %v5661
    %v5747 = vsel %vm5745, %v5742, %v5663
    %v5748 = vsel %vm5745, %v5743, %v5665
    %v5749 = vsel %vm5745, %v5744, %v5667
    %vm5750 = vcmask 523264
    %v5751 = vsel %vm5750, %v5746, %v5677
    %v5752 = vsel %vm5750, %v5747, %v5679
    %v5753 = vsel %vm5750, %v5748, %v5681
    %v5754 = vsel %vm5750, %v5749, %v5683
    %vm5755 = vcmask 654336
    %v5756 = vsel %vm5755, %v5751, %v5693
    %v5757 = vsel %vm5755, %v5752, %v5695
    %v5758 = vsel %vm5755, %v5753, %v5697
    %v5759 = vsel %vm5755, %v5754, %v5699
    %vm5760 = vcmask 785408
    %v5761 = vsel %vm5760, %v5756, %v5709
    %v5762 = vsel %vm5760, %v5757, %v5711
    %v5763 = vsel %vm5760, %v5758, %v5713
    %v5764 = vsel %vm5760, %v5759, %v5715
    %vm5765 = vcmask 916480
    %v5766 = vsel %vm5765, %v5761, %v5725
    %v5767 = vsel %vm5765, %v5762, %v5727
    %v5768 = vsel %vm5765, %v5763, %v5729
    %v5769 = vsel %vm5765, %v5764, %v5731
    %v5770 = vpack.c.bf16 %v5767, %v5766
    %v5771 = vpack.c.bf16 %v5769, %v5768
    %v5772 = vld [vmem:[#allocation7] sm:$0xf]
    %v5773 = vld [vmem:[#allocation7 + $0x4] sm:$0xf]
    %v5774 = vld [vmem:[#allocation7 + $0x8] sm:$0xf]
    %v5775 = vld [vmem:[#allocation7 + $0xc] sm:$0xf]
    %v5776 = vld [vmem:[#allocation7 + $0x10] sm:$0xf]
    %v5777 = vld [vmem:[#allocation7 + $0x14] sm:$0xf]
    %v5778 = vld [vmem:[#allocation7 + $0x18] sm:$0xf]
    %v5779 = vld [vmem:[#allocation7 + $0x1c] sm:$0xf]
    %v5780 = vld [vmem:[#allocation7 + $0x20] sm:$0xf]
    %v5781 = vld [vmem:[#allocation7 + $0x24] sm:$0xf]
    %v5782 = vld [vmem:[#allocation7 + $0x28] sm:$0xf]
    %v5783 = vld [vmem:[#allocation7 + $0x2c] sm:$0xf]
    %v5784 = vld [vmem:[#allocation7 + $0x30] sm:$0xf]
    %v5785 = vld [vmem:[#allocation7 + $0x34] sm:$0xf]
    %v5786 = vld [vmem:[#allocation7 + $0x38] sm:$0xf]
    %v5787 = vld [vmem:[#allocation7 + $0x3c] sm:$0xf]
    %v5788 = vld [vmem:[%s4] sm:$0x1]
    %v5790 = vlaneseq
    %v5791 = vshrl.u32 %v5790, 7
    %v5792 = vsub.s32 0, %v5791
    %v5793 = vrot.slane %v5788, %v5792
    %v5811 = vunpack.c.l.b16 %v5772
    %v5812 = vunpack.c.l.b16 %v5773
    %v5813 = vunpack.c.l.b16 %v5774
    %v5814 = vunpack.c.l.b16 %v5775
    %v5815 = vunpack.c.l.b16 %v5776
    %v5816 = vunpack.c.l.b16 %v5777
    %v5817 = vunpack.c.l.b16 %v5778
    %v5818 = vunpack.c.l.b16 %v5779
    %v5819 = vunpack.c.l.b16 %v5780
    %v5820 = vunpack.c.l.b16 %v5781
    %v5821 = vunpack.c.l.b16 %v5782
    %v5822 = vunpack.c.l.b16 %v5783
    %v5823 = vunpack.c.l.b16 %v5784
    %v5824 = vunpack.c.l.b16 %v5785
    %v5825 = vunpack.c.l.b16 %v5786
    %v5826 = vunpack.c.l.b16 %v5787
    %v5827 = vpack.c.b16 %v5812, %v5811
    %v5828 = vpack.c.b16 %v5814, %v5813
    %v5829 = vpack.c.b16 %v5816, %v5815
    %v5830 = vpack.c.b16 %v5818, %v5817
    %v5831 = vpack.c.b16 %v5820, %v5819
    %v5832 = vpack.c.b16 %v5822, %v5821
    %v5833 = vpack.c.b16 %v5824, %v5823
    %v5834 = vpack.c.b16 %v5826, %v5825
    %5843 = vmatprep.subr.bf16.mxu0 0
    %5844 = vmatpush1.bf16.msra.mxu0 %v5827
    %5845 = vmatprep.subr.bf16.mxu0 0
    %5846 = vmatpush1.bf16.msra.mxu0 %v5828
    %5847 = vmatprep.subr.bf16.mxu0 0
    %5848 = vmatpush1.bf16.msra.mxu0 %v5829
    %5849 = vmatprep.subr.bf16.mxu0 0
    %5850 = vmatpush1.bf16.msra.mxu0 %v5830
    %5851 = vmatprep.subr.bf16.mxu0 0
    %5852 = vmatpush1.bf16.msra.mxu0 %v5831
    %5853 = vmatprep.subr.bf16.mxu0 0
    %5854 = vmatpush1.bf16.msra.mxu0 %v5832
    %5855 = vmatprep.subr.bf16.mxu0 0
    %5856 = vmatpush1.bf16.msra.mxu0 %v5833
    %5857 = vmatprep.subr.bf16.mxu0 0
    %5858 = vmatpush1.bf16.msra.mxu0 %v5834
    %5859 = vmatprep.subr.bf16.mxu0 0
    %5860 = vmatpush1.bf16.msra.mxu0 0
    %5861 = vmatprep.subr.bf16.mxu0 0
    %5862 = vmatpush1.bf16.msra.mxu0 0
    %5863 = vmatprep.subr.bf16.mxu0 0
    %5864 = vmatpush1.bf16.msra.mxu0 0
    %5865 = vmatprep.subr.bf16.mxu0 0
    %5866 = vmatpush1.bf16.msra.mxu0 0
    %5867 = vmatprep.subr.bf16.mxu0 0
    %5868 = vmatpush1.bf16.msra.mxu0 0
    %5869 = vmatprep.subr.bf16.mxu0 0
    %5870 = vmatpush1.bf16.msra.mxu0 0
    %5871 = vmatprep.subr.bf16.mxu0 0
    %5872 = vmatpush1.bf16.msra.mxu0 0
    %5873 = vmatprep.subr.bf16.mxu0 0
    %5874 = vmatpush1.bf16.msra.mxu0 0
    %5875 = vmatprep.mubr.bf16.mxu0 0
    %5876 = vmatmul.mubr.bf16.gmra.mrb[0].mxu0 %v5770
    %v5877 = vpop.f32.mrb[0].mxu0
    %v5878 = vadd.f32 %v5793, %v5877
    %v5879 = vpop.f32.mrb[0].mxu0
    %v5880 = vpop.f32.mrb[0].mxu0
    %v5881 = vadd.f32 %v5793, %v5880
    %v5882 = vpop.f32.mrb[0].mxu0
    %5883 = vmatprep.mubr.bf16.mxu0 0
    %5884 = vmatmul.mubr.bf16.gmra.mrb[0].mxu0 %v5771
    %v5885 = vpop.f32.mrb[0].mxu0
    %v5886 = vadd.f32 %v5793, %v5885
    %v5887 = vpop.f32.mrb[0].mxu0
    %v5888 = vpop.f32.mrb[0].mxu0
    %v5889 = vadd.f32 %v5793, %v5888
    %v5890 = vpop.f32.mrb[0].mxu0
    %5891 = vdwg.mxu0
    %5892 = vst [vmem:[#allocation8] sm:$0xff] %v5878
    %5893 = vst [vmem:[#allocation8 + $0x8] sm:$0xff] %v5881
    %5894 = vst [vmem:[#allocation8 + $0x10] sm:$0xff] %v5886
    %5895 = vst [vmem:[#allocation8 + $0x18] sm:$0xff] %v5889
    // Predicated region
    $region34: #{tpu_custom_call.1} parent=1 // pred_check
      _
    $region35: #{tpu_custom_call.1} parent=1 // pred_check_branch
      %5897 = sbr.rel (0) target = $region37
    $region36: #{tpu_custom_call.1} parent=1 // pred_region
      %s5899 = ssub.s32 512, 512
      %5900 = vsyncadd [#allocation4], %s5899
      %s5901 = sshll.u32 [#allocation8], 4
      %s5902 = int_to_ptr.vmem [resolvable:$true] %s5901
      %5907 = dma.vmem_to_hbm [thread:$0]  %s5902, 512, %s5, [#allocation4], 128, 128, 8
    $region37: #{tpu_custom_call.1} parent=1 // pred_fallthru
      _
    // Predicated region
    $region38: #{tpu_custom_call.1} parent=1 // pred_check
      _
    $region39: #{tpu_custom_call.1} parent=1 // pred_check_branch
      %5909 = sbr.rel (0) target = $region41
    $region40: #{tpu_custom_call.1} parent=1 // pred_region
      %5910 = dma.done [#allocation4], 512
    $region41: #{tpu_custom_call.1} parent=1 // pred_fallthru
      _
    %5911 = vsyncpa [#allocation3], 1
    %5912 = vsyncpa [#allocation6], 1
    %5913 = vsyncpa [#allocation4], 1

</llo_original>
